<compile_context>
chip_gen: v7x
topology: tpu7x:2x2x1
jax: 0.10.0
libtpu: 0.0.40
codegen_flags: <defaults>
</compile_context>

<pallas_src>
import jax
import jax.numpy as jnp
from jax import lax
from jax.experimental import pallas as pl
from jax.experimental.pallas import tpu as pltpu  # noqa: F401  (TPU backend; kept for tuning hooks)

# --- small, forward-consistent model config -----------------------------------
HIDDEN = 32          # bert.config.hidden_size
N_HEADS = 4
HEAD_DIM = HIDDEN // N_HEADS
FFN = 4 * HIDDEN
N_LAYERS = 2
SEQ = 8
BATCH = 2
VOCAB = 100
VOCAB_PAD = 128      # lane-aligned vocab for the one-hot embedding matmul
N_CLASSES = 3
LN_EPS = 1e-12
LANE = 128           # lane-dense padded logits / slab width
NEG_INF = -1e9


def _layer_norm(x, gamma, beta):
    mu = jnp.mean(x, axis=-1, keepdims=True)
    var = jnp.mean((x - mu) ** 2, axis=-1, keepdims=True)
    return (x - mu) * lax.rsqrt(var + LN_EPS) * gamma + beta


# ------------------------------------------------------------------------------
# Single fused Pallas kernel: embeddings + N_LAYERS encoder layers + pooler +
# (folded) classifier head.  Activations live in one [B*S, H] = [16, 32] block;
# attention runs head-packed along sublanes as [N_HEADS*B*S, H] = [64, 32].
# ------------------------------------------------------------------------------
def fused_forward_kernel(ids_ref, mask_ref, word_emb_ref, pe_ref, gvec_ref,
                         wqkv_ref, wo_ref, w1_ref, w2_ref, lvec_ref,
                         pool_w_ref, head_w_ref, out_ref):
    BS = BATCH * SEQ

    # ---- global vector slab (one DMA instead of 4+) ----
    emb_ln_g = gvec_ref[0:1, :HIDDEN]
    emb_ln_b = gvec_ref[1:2, :HIDDEN]
    pool_b = gvec_ref[2:3, :HIDDEN]
    head_b = gvec_ref[3:4, :]                         # [1, 128] (folded head bias, padded)
    hm = gvec_ref[4:4 + N_HEADS, :HIDDEN]             # [N_HEADS, H] 0/1 head-lane masks

    # ---- embeddings: one-hot matmul over lane-aligned (padded) vocab ----
    ids = ids_ref[...]                                                # [BS, 1] int32
    vocab_iota = lax.broadcasted_iota(jnp.int32, (BS, VOCAB_PAD), 1)
    onehot = (vocab_iota == ids).astype(jnp.float32)                  # [BS, 128]
    x = jnp.dot(onehot, word_emb_ref[...], preferred_element_type=jnp.float32)
    x = x + pe_ref[...]                                               # pos + token-type emb
    x = _layer_norm(x, emb_ln_g, emb_ln_b)                            # [BS, H]

    # precomputed additive mask over the head-packed [N*BS, N*BS] scores
    add_mask = mask_ref[...]                                          # [64, 64]

    for l in range(N_LAYERS):                                         # static layer loop
        # per-layer vector slab (one ref, static row slices)
        bq = lvec_ref[l, 0:1, :HIDDEN]
        bk = lvec_ref[l, 1:2, :HIDDEN]
        bv = lvec_ref[l, 2:3, :HIDDEN]
        bo = lvec_ref[l, 3:4, :HIDDEN]
        ln1_g = lvec_ref[l, 4:5, :HIDDEN]
        ln1_b = lvec_ref[l, 5:6, :HIDDEN]
        b1 = lvec_ref[l, 6:7, :]                                      # [1, FFN=128]
        b2 = lvec_ref[l, 7:8, :HIDDEN]
        ln2_g = lvec_ref[l, 8:9, :HIDDEN]
        ln2_b = lvec_ref[l, 9:10, :HIDDEN]

        # -- Q/K/V projections (lane-packed, head-major columns); scale folded in Wq/bq --
        q = jnp.dot(x, wqkv_ref[l, 0], preferred_element_type=jnp.float32) + bq   # [BS, H]
        k = jnp.dot(x, wqkv_ref[l, 1], preferred_element_type=jnp.float32) + bk
        v = jnp.dot(x, wqkv_ref[l, 2], preferred_element_type=jnp.float32) + bv

        # -- pack heads along sublanes (row = head*BS + token), no lane slicing --
        # qm row (n, i) has only head n's lanes live; kr/vr are plain replicas.
        qm = jnp.concatenate([q * hm[n:n + 1, :] for n in range(N_HEADS)], axis=0)  # [N*BS, H]
        kr = jnp.concatenate([k] * N_HEADS, axis=0)                                  # [N*BS, H]
        vr = jnp.concatenate([v] * N_HEADS, axis=0)                                  # [N*BS, H]

        # -- ONE scores matmul for all heads; mask kills cross-head/cross-batch/pad --
        scores = lax.dot_general(qm, kr, (((1,), (1,)), ((), ())),
                                 preferred_element_type=jnp.float32)                 # [64, 64]
        scores = scores + add_mask
        m = jnp.max(scores, axis=-1, keepdims=True)
        p = jnp.exp(scores - m)
        denom = jnp.sum(p, axis=-1, keepdims=True)
        p = p * pl.reciprocal(denom, approx=True)                     # EUP instead of divide

        # -- ONE context matmul; collapse head row-blocks back to lane-packed [BS, H] --
        ctx_big = jnp.dot(p, vr, preferred_element_type=jnp.float32)  # [N*BS, H]
        ctx = ctx_big[0:BS, :] * hm[0:1, :]
        for n in range(1, N_HEADS):
            ctx = ctx + ctx_big[n * BS:(n + 1) * BS, :] * hm[n:n + 1, :]             # [BS, H]

        # -- ONE output projection matmul --
        attn_out = jnp.dot(ctx, wo_ref[l], preferred_element_type=jnp.float32) + bo
        h1 = _layer_norm(x + attn_out, ln1_g, ln1_b)

        # -- feed forward --
        ff = jnp.dot(h1, w1_ref[l], preferred_element_type=jnp.float32) + b1
        # TODO(synk): PyTorch BERT/ERNIE uses exact erf GELU; tanh approximation kept here.
        ff = jax.nn.gelu(ff)
        ff = jnp.dot(ff, w2_ref[l], preferred_element_type=jnp.float32) + b2
        x = _layer_norm(h1 + ff, ln2_g, ln2_b)

    # ---- pooler + folded classifier head on ALL rows -> dense (16, 128) store ----
    # (nn.Dropout(p=0.3) is identity in eval; linear->out already folded at init.)
    pooled = jnp.tanh(jnp.dot(x, pool_w_ref[...],
                              preferred_element_type=jnp.float32) + pool_b)
    out_ref[...] = (jnp.dot(pooled, head_w_ref[...],
                            preferred_element_type=jnp.float32) + head_b)


# ------------------------------------------------------------------------------
# Deterministic parameter init (synthetic stand-in for the pretrained checkpoint),
# packed into the kernel-ready layout (stacked layers, vector slabs, folded head,
# attention scale folded into Q, lane-padded vocab / logits).
# ------------------------------------------------------------------------------
def init_params(key):
    scale = 1.0 / (HEAD_DIM ** 0.5)

    def dense(k, fan_in, fan_out):
        w = jax.random.normal(k, (fan_in, fan_out), jnp.float32) * 0.02
        b = jnp.zeros((fan_out,), jnp.float32)
        return w, b

    def row128(v):
        r = jnp.zeros((LANE,), jnp.float32)
        return r.at[:v.shape[0]].set(v)

    keys = iter(jax.random.split(key, 64))

    word_emb = jax.random.normal(next(keys), (VOCAB, HIDDEN), jnp.float32) * 0.02
    word_emb = jnp.zeros((VOCAB_PAD, HIDDEN), jnp.float32).at[:VOCAB].set(word_emb)
    pos_emb = jax.random.normal(next(keys), (SEQ, HIDDEN), jnp.float32) * 0.02
    type_emb = jax.random.normal(next(keys), (2, HIDDEN), jnp.float32) * 0.02

    ones_h = jnp.ones((HIDDEN,), jnp.float32)
    zeros_h = jnp.zeros((HIDDEN,), jnp.float32)

    wqkv_l, wo_l, w1_l, w2_l, lvec_l = [], [], [], [], []
    for _ in range(N_LAYERS):
        wq, bq = dense(next(keys), HIDDEN, HIDDEN)
        wk, bk = dense(next(keys), HIDDEN, HIDDEN)
        wv, bv = dense(next(keys), HIDDEN, HIDDEN)
        wo, bo = dense(next(keys), HIDDEN, HIDDEN)
        w1, b1 = dense(next(keys), HIDDEN, FFN)
        w2, b2 = dense(next(keys), FFN, HIDDEN)
        # fold 1/sqrt(head_dim) into the Q projection (weight AND bias)
        wqkv_l.append(jnp.stack([wq * scale, wk, wv], axis=0))        # [3, H, H]
        wo_l.append(wo)                                               # [H, H] rows = (head, d)
        w1_l.append(w1)
        w2_l.append(w2)
        rows = [row128(bq * scale), row128(bk), row128(bv), row128(bo),
                row128(ones_h), row128(zeros_h),                       # LN1 gamma/beta
                row128(b1), row128(b2),
                row128(ones_h), row128(zeros_h)]                       # LN2 gamma/beta
        rows += [jnp.zeros((LANE,), jnp.float32)] * (16 - len(rows))
        lvec_l.append(jnp.stack(rows, axis=0))                         # [16, 128]

    pool_w, pool_b = dense(next(keys), HIDDEN, HIDDEN)
    lin_w, lin_b = dense(next(keys), HIDDEN, HIDDEN // 2)              # self.linear
    out_w, out_b = dense(next(keys), HIDDEN // 2, N_CLASSES)           # self.out

    # Exact fold of (dropout . linear . dropout . out) in eval mode:
    #   logits = pooled @ (lin_w @ out_w) + (lin_b @ out_w + out_b)
    head_w = lin_w @ out_w                                             # [H, n_classes]
    head_b = lin_b @ out_w + out_b                                     # [n_classes]
    head_w_pad = jnp.zeros((HIDDEN, LANE), jnp.float32).at[:, :N_CLASSES].set(head_w)

    # 0/1 head-lane masks (which lanes of the lane-packed [*, H] belong to head n)
    hm_rows = []
    for n in range(N_HEADS):
        hm_rows.append(jnp.zeros((LANE,), jnp.float32)
                       .at[n * HEAD_DIM:(n + 1) * HEAD_DIM].set(1.0))

    gvec = jnp.stack([row128(ones_h),          # embedding LN gamma
                      row128(zeros_h),         # embedding LN beta
                      row128(pool_b),          # pooler bias
                      row128(head_b)] + hm_rows, axis=0)               # [8, 128]

    # position + token-type embedding, pre-added per flattened [B*S] row.
    # TODO(synk): token_type_ids are assumed all-zero (the PyTorch forward only
    #             passes input_ids / attention_mask).
    pe = jnp.tile(pos_emb, (BATCH, 1)) + type_emb[0][None, :]          # [B*S, H]

    return {
        "word_emb": word_emb, "pe": pe, "gvec": gvec,
        "wqkv": jnp.stack(wqkv_l, axis=0),                             # [L, 3, H, H]
        "wo": jnp.stack(wo_l, axis=0),                                 # [L, H, H]
        "w1": jnp.stack(w1_l, axis=0),                                 # [L, H, FFN]
        "w2": jnp.stack(w2_l, axis=0),                                 # [L, FFN, H]
        "lvec": jnp.stack(lvec_l, axis=0),                             # [L, 16, 128]
        "pool_w": pool_w, "head_w": head_w_pad,
    }


# ------------------------------------------------------------------------------
# Full forward pass: one grid-free pallas_call (everything resident in VMEM).
# The combined additive mask (head block-diag x batch block-diag x key padding)
# is precomputed here, hoisted out of the kernel entirely.
# ------------------------------------------------------------------------------
@jax.jit
def bert_classifier_forward(params, input_ids, attention_mask):
    B, S = input_ids.shape
    BS = B * S
    BSN = BS * N_HEADS
    ids_col = input_ids.reshape(BS, 1).astype(jnp.int32)

    ridx = jnp.arange(BSN)
    head = ridx // BS                   # packed row = head * BS + token
    tok = ridx % BS
    batch = tok // S
    keyok = attention_mask.reshape(BS).astype(jnp.int32)[tok]
    keep = ((head[:, None] == head[None, :])
            & (batch[:, None] == batch[None, :])
            & (keyok[None, :] > 0))
    add_mask = jnp.where(keep, 0.0, NEG_INF).astype(jnp.float32)       # [64, 64]

    logits_pad = pl.pallas_call(
        fused_forward_kernel,
        out_shape=jax.ShapeDtypeStruct((BS, LANE), jnp.float32),       # dense (16, 128) store
    )(ids_col, add_mask, params["word_emb"], params["pe"], params["gvec"],
      params["wqkv"], params["wo"], params["w1"], params["w2"], params["lvec"],
      params["pool_w"], params["head_w"])

    # [CLS] rows (token 0 of each batch element) and the first n_classes lanes
    return logits_pad[::S, :N_CLASSES]


if __name__ == "__main__":
    root = jax.random.PRNGKey(0)
    k_ids, k_params = jax.random.split(root)

    input_ids = jax.random.randint(k_ids, (BATCH, SEQ), 0, VOCAB, dtype=jnp.int32)
    attention_mask = jnp.ones((BATCH, SEQ), dtype=jnp.int32)

    params = init_params(k_params)
    logits = bert_classifier_forward(params, input_ids, attention_mask)
    jax.block_until_ready(logits)

    assert logits.shape == (BATCH, N_CLASSES), logits.shape
    assert bool(jnp.all(jnp.isfinite(logits)))
    print("KERNEL_OK")
</pallas_src>

<mosaic_0001>
module attributes {stable_mosaic.version = 11 : i64} {
  func.func @fused_forward_kernel(%arg0: memref<16x1xi32, #tpu.memory_space<vmem>>, %arg1: memref<64x64xf32, #tpu.memory_space<vmem>>, %arg2: memref<128x32xf32, #tpu.memory_space<vmem>>, %arg3: memref<16x32xf32, #tpu.memory_space<vmem>>, %arg4: memref<8x128xf32, #tpu.memory_space<vmem>>, %arg5: memref<2x3x32x32xf32, #tpu.memory_space<vmem>>, %arg6: memref<2x32x32xf32, #tpu.memory_space<vmem>>, %arg7: memref<2x32x128xf32, #tpu.memory_space<vmem>>, %arg8: memref<2x128x32xf32, #tpu.memory_space<vmem>>, %arg9: memref<2x16x128xf32, #tpu.memory_space<vmem>>, %arg10: memref<32x32xf32, #tpu.memory_space<vmem>>, %arg11: memref<32x128xf32, #tpu.memory_space<vmem>>, %arg12: memref<16x128xf32, #tpu.memory_space<vmem>>) attributes {dimension_semantics = [], scalar_prefetch = 0 : i64, scratch_operands = 0 : i64, tpu.core_type = #tpu.core_type<tc>} {
    %c0 = arith.constant 0 : index
    %c0_0 = arith.constant 0 : index
    %0 = vector.load %arg4[%c0, %c0_0] : memref<8x128xf32, #tpu.memory_space<vmem>>, vector<1x32xf32>
    %c1 = arith.constant 1 : index
    %c0_1 = arith.constant 0 : index
    %1 = vector.load %arg4[%c1, %c0_1] : memref<8x128xf32, #tpu.memory_space<vmem>>, vector<1x32xf32>
    %c2 = arith.constant 2 : index
    %c0_2 = arith.constant 0 : index
    %2 = vector.load %arg4[%c2, %c0_2] : memref<8x128xf32, #tpu.memory_space<vmem>>, vector<1x32xf32>
    %c3 = arith.constant 3 : index
    %c0_3 = arith.constant 0 : index
    %3 = vector.load %arg4[%c3, %c0_3] : memref<8x128xf32, #tpu.memory_space<vmem>>, vector<1x128xf32>
    %c4 = arith.constant 4 : index
    %c0_4 = arith.constant 0 : index
    %4 = vector.load %arg4[%c4, %c0_4] : memref<8x128xf32, #tpu.memory_space<vmem>>, vector<4x32xf32>
    %c0_5 = arith.constant 0 : index
    %c0_6 = arith.constant 0 : index
    %5 = vector.load %arg0[%c0_5, %c0_6] : memref<16x1xi32, #tpu.memory_space<vmem>>, vector<16x1xi32>
    %6 = tpu.iota {dimensions = array<i32: 1>} : vector<16x128xi32>
    %7 = vector.broadcast %5 : vector<16x1xi32> to vector<16x128xi32>
    %8 = arith.cmpi eq, %6, %7 : vector<16x128xi32>
    %9 = arith.extui %8 : vector<16x128xi1> to vector<16x128xi32>
    %10 = arith.sitofp %9 : vector<16x128xi32> to vector<16x128xf32>
    %c0_7 = arith.constant 0 : index
    %c0_8 = arith.constant 0 : index
    %11 = vector.load %arg2[%c0_7, %c0_8] : memref<128x32xf32, #tpu.memory_space<vmem>>, vector<128x32xf32>
    %cst = arith.constant dense<0.000000e+00> : vector<16x32xf32>
    %12 = tpu.matmul %10, %11, %cst {dimension_numbers = #tpu.dot_dimension_numbers<[1], [0], [0], [1], [0, 0, 1, 1], [], []>} : vector<16x128xf32>, vector<128x32xf32>, vector<16x32xf32> -> vector<16x32xf32>
    %c0_9 = arith.constant 0 : index
    %c0_10 = arith.constant 0 : index
    %13 = vector.load %arg3[%c0_9, %c0_10] : memref<16x32xf32, #tpu.memory_space<vmem>>, vector<16x32xf32>
    %14 = arith.addf %12, %13 : vector<16x32xf32>
    %cst_11 = arith.constant dense<0.000000e+00> : vector<16xf32>
    %15 = vector.multi_reduction <add>, %14, %cst_11 [1] : vector<16x32xf32> to vector<16xf32>
    %16 = vector.shape_cast %15 : vector<16xf32> to vector<16x1xf32>
    %cst_12 = arith.constant 3.200000e+01 : f32
    %17 = vector.broadcast %cst_12 : f32 to vector<16x1xf32>
    %18 = arith.divf %16, %17 : vector<16x1xf32>
    %19 = vector.broadcast %18 : vector<16x1xf32> to vector<16x32xf32>
    %20 = arith.subf %14, %19 : vector<16x32xf32>
    %21 = arith.mulf %20, %20 : vector<16x32xf32>
    %cst_13 = arith.constant dense<0.000000e+00> : vector<16xf32>
    %22 = vector.multi_reduction <add>, %21, %cst_13 [1] : vector<16x32xf32> to vector<16xf32>
    %23 = vector.shape_cast %22 : vector<16xf32> to vector<16x1xf32>
    %cst_14 = arith.constant 3.200000e+01 : f32
    %24 = vector.broadcast %cst_14 : f32 to vector<16x1xf32>
    %25 = arith.divf %23, %24 : vector<16x1xf32>
    %26 = vector.broadcast %18 : vector<16x1xf32> to vector<16x32xf32>
    %27 = arith.subf %14, %26 : vector<16x32xf32>
    %cst_15 = arith.constant 9.99999996E-13 : f32
    %28 = vector.broadcast %cst_15 : f32 to vector<16x1xf32>
    %29 = arith.addf %25, %28 : vector<16x1xf32>
    %30 = math.rsqrt %29 : vector<16x1xf32>
    %31 = vector.broadcast %30 : vector<16x1xf32> to vector<16x32xf32>
    %32 = arith.mulf %27, %31 : vector<16x32xf32>
    %33 = vector.broadcast %0 : vector<1x32xf32> to vector<16x32xf32>
    %34 = arith.mulf %32, %33 : vector<16x32xf32>
    %35 = vector.broadcast %1 : vector<1x32xf32> to vector<16x32xf32>
    %36 = arith.addf %34, %35 : vector<16x32xf32>
    %c0_16 = arith.constant 0 : index
    %c0_17 = arith.constant 0 : index
    %37 = vector.load %arg1[%c0_16, %c0_17] : memref<64x64xf32, #tpu.memory_space<vmem>>, vector<64x64xf32>
    %c0_18 = arith.constant 0 : index
    %c0_19 = arith.constant 0 : index
    %c0_20 = arith.constant 0 : index
    %38 = vector.load %arg9[%c0_18, %c0_19, %c0_20] : memref<2x16x128xf32, #tpu.memory_space<vmem>>, vector<1x1x32xf32>
    %39 = vector.shape_cast %38 : vector<1x1x32xf32> to vector<1x32xf32>
    %c0_21 = arith.constant 0 : index
    %c1_22 = arith.constant 1 : index
    %c0_23 = arith.constant 0 : index
    %40 = vector.load %arg9[%c0_21, %c1_22, %c0_23] : memref<2x16x128xf32, #tpu.memory_space<vmem>>, vector<1x1x32xf32>
    %41 = vector.shape_cast %40 : vector<1x1x32xf32> to vector<1x32xf32>
    %c0_24 = arith.constant 0 : index
    %c2_25 = arith.constant 2 : index
    %c0_26 = arith.constant 0 : index
    %42 = vector.load %arg9[%c0_24, %c2_25, %c0_26] : memref<2x16x128xf32, #tpu.memory_space<vmem>>, vector<1x1x32xf32>
    %43 = vector.shape_cast %42 : vector<1x1x32xf32> to vector<1x32xf32>
    %c0_27 = arith.constant 0 : index
    %c3_28 = arith.constant 3 : index
    %c0_29 = arith.constant 0 : index
    %44 = vector.load %arg9[%c0_27, %c3_28, %c0_29] : memref<2x16x128xf32, #tpu.memory_space<vmem>>, vector<1x1x32xf32>
    %45 = vector.shape_cast %44 : vector<1x1x32xf32> to vector<1x32xf32>
    %c0_30 = arith.constant 0 : index
    %c4_31 = arith.constant 4 : index
    %c0_32 = arith.constant 0 : index
    %46 = vector.load %arg9[%c0_30, %c4_31, %c0_32] : memref<2x16x128xf32, #tpu.memory_space<vmem>>, vector<1x1x32xf32>
    %47 = vector.shape_cast %46 : vector<1x1x32xf32> to vector<1x32xf32>
    %c0_33 = arith.constant 0 : index
    %c5 = arith.constant 5 : index
    %c0_34 = arith.constant 0 : index
    %48 = vector.load %arg9[%c0_33, %c5, %c0_34] : memref<2x16x128xf32, #tpu.memory_space<vmem>>, vector<1x1x32xf32>
    %49 = vector.shape_cast %48 : vector<1x1x32xf32> to vector<1x32xf32>
    %c0_35 = arith.constant 0 : index
    %c6 = arith.constant 6 : index
    %c0_36 = arith.constant 0 : index
    %50 = vector.load %arg9[%c0_35, %c6, %c0_36] : memref<2x16x128xf32, #tpu.memory_space<vmem>>, vector<1x1x128xf32>
    %51 = vector.shape_cast %50 : vector<1x1x128xf32> to vector<1x128xf32>
    %c0_37 = arith.constant 0 : index
    %c7 = arith.constant 7 : index
    %c0_38 = arith.constant 0 : index
    %52 = vector.load %arg9[%c0_37, %c7, %c0_38] : memref<2x16x128xf32, #tpu.memory_space<vmem>>, vector<1x1x32xf32>
    %53 = vector.shape_cast %52 : vector<1x1x32xf32> to vector<1x32xf32>
    %c0_39 = arith.constant 0 : index
    %c8 = arith.constant 8 : index
    %c0_40 = arith.constant 0 : index
    %54 = vector.load %arg9[%c0_39, %c8, %c0_40] : memref<2x16x128xf32, #tpu.memory_space<vmem>>, vector<1x1x32xf32>
    %55 = vector.shape_cast %54 : vector<1x1x32xf32> to vector<1x32xf32>
    %c0_41 = arith.constant 0 : index
    %c9 = arith.constant 9 : index
    %c0_42 = arith.constant 0 : index
    %56 = vector.load %arg9[%c0_41, %c9, %c0_42] : memref<2x16x128xf32, #tpu.memory_space<vmem>>, vector<1x1x32xf32>
    %57 = vector.shape_cast %56 : vector<1x1x32xf32> to vector<1x32xf32>
    %c0_43 = arith.constant 0 : index
    %c0_44 = arith.constant 0 : index
    %c0_45 = arith.constant 0 : index
    %c0_46 = arith.constant 0 : index
    %58 = vector.load %arg5[%c0_43, %c0_44, %c0_45, %c0_46] : memref<2x3x32x32xf32, #tpu.memory_space<vmem>>, vector<1x1x32x32xf32>
    %59 = vector.shape_cast %58 : vector<1x1x32x32xf32> to vector<32x32xf32>
    %cst_47 = arith.constant dense<0.000000e+00> : vector<16x32xf32>
    %60 = tpu.matmul %36, %59, %cst_47 {dimension_numbers = #tpu.dot_dimension_numbers<[1], [0], [0], [1], [0, 0, 1, 1], [], []>} : vector<16x32xf32>, vector<32x32xf32>, vector<16x32xf32> -> vector<16x32xf32>
    %61 = vector.broadcast %39 : vector<1x32xf32> to vector<16x32xf32>
    %62 = arith.addf %60, %61 : vector<16x32xf32>
    %c0_48 = arith.constant 0 : index
    %c1_49 = arith.constant 1 : index
    %c0_50 = arith.constant 0 : index
    %c0_51 = arith.constant 0 : index
    %63 = vector.load %arg5[%c0_48, %c1_49, %c0_50, %c0_51] : memref<2x3x32x32xf32, #tpu.memory_space<vmem>>, vector<1x1x32x32xf32>
    %64 = vector.shape_cast %63 : vector<1x1x32x32xf32> to vector<32x32xf32>
    %cst_52 = arith.constant dense<0.000000e+00> : vector<16x32xf32>
    %65 = tpu.matmul %36, %64, %cst_52 {dimension_numbers = #tpu.dot_dimension_numbers<[1], [0], [0], [1], [0, 0, 1, 1], [], []>} : vector<16x32xf32>, vector<32x32xf32>, vector<16x32xf32> -> vector<16x32xf32>
    %66 = vector.broadcast %41 : vector<1x32xf32> to vector<16x32xf32>
    %67 = arith.addf %65, %66 : vector<16x32xf32>
    %c0_53 = arith.constant 0 : index
    %c2_54 = arith.constant 2 : index
    %c0_55 = arith.constant 0 : index
    %c0_56 = arith.constant 0 : index
    %68 = vector.load %arg5[%c0_53, %c2_54, %c0_55, %c0_56] : memref<2x3x32x32xf32, #tpu.memory_space<vmem>>, vector<1x1x32x32xf32>
    %69 = vector.shape_cast %68 : vector<1x1x32x32xf32> to vector<32x32xf32>
    %cst_57 = arith.constant dense<0.000000e+00> : vector<16x32xf32>
    %70 = tpu.matmul %36, %69, %cst_57 {dimension_numbers = #tpu.dot_dimension_numbers<[1], [0], [0], [1], [0, 0, 1, 1], [], []>} : vector<16x32xf32>, vector<32x32xf32>, vector<16x32xf32> -> vector<16x32xf32>
    %71 = vector.broadcast %43 : vector<1x32xf32> to vector<16x32xf32>
    %72 = arith.addf %70, %71 : vector<16x32xf32>
    %73 = vector.extract_strided_slice %4 {offsets = [0, 0], sizes = [1, 32], strides = [1, 1]} : vector<4x32xf32> to vector<1x32xf32>
    %74 = vector.broadcast %73 : vector<1x32xf32> to vector<16x32xf32>
    %75 = arith.mulf %62, %74 : vector<16x32xf32>
    %76 = vector.extract_strided_slice %4 {offsets = [1, 0], sizes = [1, 32], strides = [1, 1]} : vector<4x32xf32> to vector<1x32xf32>
    %77 = vector.broadcast %76 : vector<1x32xf32> to vector<16x32xf32>
    %78 = arith.mulf %62, %77 : vector<16x32xf32>
    %79 = vector.extract_strided_slice %4 {offsets = [2, 0], sizes = [1, 32], strides = [1, 1]} : vector<4x32xf32> to vector<1x32xf32>
    %80 = vector.broadcast %79 : vector<1x32xf32> to vector<16x32xf32>
    %81 = arith.mulf %62, %80 : vector<16x32xf32>
    %82 = vector.extract_strided_slice %4 {offsets = [3, 0], sizes = [1, 32], strides = [1, 1]} : vector<4x32xf32> to vector<1x32xf32>
    %83 = vector.broadcast %82 : vector<1x32xf32> to vector<16x32xf32>
    %84 = arith.mulf %62, %83 : vector<16x32xf32>
    %85 = tpu.concatenate %75, %78, %81, %84 in 0 : vector<16x32xf32>, vector<16x32xf32>, vector<16x32xf32>, vector<16x32xf32> -> vector<64x32xf32>
    %86 = tpu.concatenate %67, %67, %67, %67 in 0 : vector<16x32xf32>, vector<16x32xf32>, vector<16x32xf32>, vector<16x32xf32> -> vector<64x32xf32>
    %87 = tpu.concatenate %72, %72, %72, %72 in 0 : vector<16x32xf32>, vector<16x32xf32>, vector<16x32xf32>, vector<16x32xf32> -> vector<64x32xf32>
    %cst_58 = arith.constant dense<0.000000e+00> : vector<64x64xf32>
    %88 = tpu.matmul %85, %86, %cst_58 {dimension_numbers = #tpu.dot_dimension_numbers<[1], [1], [0], [0], [0, 0, 1, 0], [], []>} : vector<64x32xf32>, vector<64x32xf32>, vector<64x64xf32> -> vector<64x64xf32>
    %89 = arith.addf %88, %37 : vector<64x64xf32>
    %cst_59 = arith.constant dense<0xFF800000> : vector<64xf32>
    %90 = vector.multi_reduction <maximumf>, %89, %cst_59 [1] : vector<64x64xf32> to vector<64xf32>
    %91 = vector.shape_cast %90 : vector<64xf32> to vector<64x1xf32>
    %92 = vector.broadcast %91 : vector<64x1xf32> to vector<64x64xf32>
    %93 = arith.subf %89, %92 : vector<64x64xf32>
    %94 = math.exp %93 : vector<64x64xf32>
    %cst_60 = arith.constant dense<0.000000e+00> : vector<64xf32>
    %95 = vector.multi_reduction <add>, %94, %cst_60 [1] : vector<64x64xf32> to vector<64xf32>
    %96 = vector.shape_cast %95 : vector<64xf32> to vector<64x1xf32>
    %97 = tpu.reciprocal %96 {approx = true} : vector<64x1xf32> -> vector<64x1xf32>
    %98 = vector.broadcast %97 : vector<64x1xf32> to vector<64x64xf32>
    %99 = arith.mulf %94, %98 : vector<64x64xf32>
    %cst_61 = arith.constant dense<0.000000e+00> : vector<64x32xf32>
    %100 = tpu.matmul %99, %87, %cst_61 {dimension_numbers = #tpu.dot_dimension_numbers<[1], [0], [0], [1], [0, 0, 1, 1], [], []>} : vector<64x64xf32>, vector<64x32xf32>, vector<64x32xf32> -> vector<64x32xf32>
    %101 = vector.extract_strided_slice %100 {offsets = [0, 0], sizes = [16, 32], strides = [1, 1]} : vector<64x32xf32> to vector<16x32xf32>
    %102 = vector.extract_strided_slice %4 {offsets = [0, 0], sizes = [1, 32], strides = [1, 1]} : vector<4x32xf32> to vector<1x32xf32>
    %103 = vector.broadcast %102 : vector<1x32xf32> to vector<16x32xf32>
    %104 = arith.mulf %101, %103 : vector<16x32xf32>
    %105 = vector.extract_strided_slice %100 {offsets = [16, 0], sizes = [16, 32], strides = [1, 1]} : vector<64x32xf32> to vector<16x32xf32>
    %106 = vector.extract_strided_slice %4 {offsets = [1, 0], sizes = [1, 32], strides = [1, 1]} : vector<4x32xf32> to vector<1x32xf32>
    %107 = vector.broadcast %106 : vector<1x32xf32> to vector<16x32xf32>
    %108 = arith.mulf %105, %107 : vector<16x32xf32>
    %109 = arith.addf %104, %108 : vector<16x32xf32>
    %110 = vector.extract_strided_slice %100 {offsets = [32, 0], sizes = [16, 32], strides = [1, 1]} : vector<64x32xf32> to vector<16x32xf32>
    %111 = vector.extract_strided_slice %4 {offsets = [2, 0], sizes = [1, 32], strides = [1, 1]} : vector<4x32xf32> to vector<1x32xf32>
    %112 = vector.broadcast %111 : vector<1x32xf32> to vector<16x32xf32>
    %113 = arith.mulf %110, %112 : vector<16x32xf32>
    %114 = arith.addf %109, %113 : vector<16x32xf32>
    %115 = vector.extract_strided_slice %100 {offsets = [48, 0], sizes = [16, 32], strides = [1, 1]} : vector<64x32xf32> to vector<16x32xf32>
    %116 = vector.extract_strided_slice %4 {offsets = [3, 0], sizes = [1, 32], strides = [1, 1]} : vector<4x32xf32> to vector<1x32xf32>
    %117 = vector.broadcast %116 : vector<1x32xf32> to vector<16x32xf32>
    %118 = arith.mulf %115, %117 : vector<16x32xf32>
    %119 = arith.addf %114, %118 : vector<16x32xf32>
    %c0_62 = arith.constant 0 : index
    %c0_63 = arith.constant 0 : index
    %c0_64 = arith.constant 0 : index
    %120 = vector.load %arg6[%c0_62, %c0_63, %c0_64] : memref<2x32x32xf32, #tpu.memory_space<vmem>>, vector<1x32x32xf32>
    %121 = vector.shape_cast %120 : vector<1x32x32xf32> to vector<32x32xf32>
    %cst_65 = arith.constant dense<0.000000e+00> : vector<16x32xf32>
    %122 = tpu.matmul %119, %121, %cst_65 {dimension_numbers = #tpu.dot_dimension_numbers<[1], [0], [0], [1], [0, 0, 1, 1], [], []>} : vector<16x32xf32>, vector<32x32xf32>, vector<16x32xf32> -> vector<16x32xf32>
    %123 = vector.broadcast %45 : vector<1x32xf32> to vector<16x32xf32>
    %124 = arith.addf %122, %123 : vector<16x32xf32>
    %125 = arith.addf %36, %124 : vector<16x32xf32>
    %cst_66 = arith.constant dense<0.000000e+00> : vector<16xf32>
    %126 = vector.multi_reduction <add>, %125, %cst_66 [1] : vector<16x32xf32> to vector<16xf32>
    %127 = vector.shape_cast %126 : vector<16xf32> to vector<16x1xf32>
    %cst_67 = arith.constant 3.200000e+01 : f32
    %128 = vector.broadcast %cst_67 : f32 to vector<16x1xf32>
    %129 = arith.divf %127, %128 : vector<16x1xf32>
    %130 = vector.broadcast %129 : vector<16x1xf32> to vector<16x32xf32>
    %131 = arith.subf %125, %130 : vector<16x32xf32>
    %132 = arith.mulf %131, %131 : vector<16x32xf32>
    %cst_68 = arith.constant dense<0.000000e+00> : vector<16xf32>
    %133 = vector.multi_reduction <add>, %132, %cst_68 [1] : vector<16x32xf32> to vector<16xf32>
    %134 = vector.shape_cast %133 : vector<16xf32> to vector<16x1xf32>
    %cst_69 = arith.constant 3.200000e+01 : f32
    %135 = vector.broadcast %cst_69 : f32 to vector<16x1xf32>
    %136 = arith.divf %134, %135 : vector<16x1xf32>
    %137 = vector.broadcast %129 : vector<16x1xf32> to vector<16x32xf32>
    %138 = arith.subf %125, %137 : vector<16x32xf32>
    %cst_70 = arith.constant 9.99999996E-13 : f32
    %139 = vector.broadcast %cst_70 : f32 to vector<16x1xf32>
    %140 = arith.addf %136, %139 : vector<16x1xf32>
    %141 = math.rsqrt %140 : vector<16x1xf32>
    %142 = vector.broadcast %141 : vector<16x1xf32> to vector<16x32xf32>
    %143 = arith.mulf %138, %142 : vector<16x32xf32>
    %144 = vector.broadcast %47 : vector<1x32xf32> to vector<16x32xf32>
    %145 = arith.mulf %143, %144 : vector<16x32xf32>
    %146 = vector.broadcast %49 : vector<1x32xf32> to vector<16x32xf32>
    %147 = arith.addf %145, %146 : vector<16x32xf32>
    %c0_71 = arith.constant 0 : index
    %c0_72 = arith.constant 0 : index
    %c0_73 = arith.constant 0 : index
    %148 = vector.load %arg7[%c0_71, %c0_72, %c0_73] : memref<2x32x128xf32, #tpu.memory_space<vmem>>, vector<1x32x128xf32>
    %149 = vector.shape_cast %148 : vector<1x32x128xf32> to vector<32x128xf32>
    %cst_74 = arith.constant dense<0.000000e+00> : vector<16x128xf32>
    %150 = tpu.matmul %147, %149, %cst_74 {dimension_numbers = #tpu.dot_dimension_numbers<[1], [0], [0], [1], [0, 0, 1, 1], [], []>} : vector<16x32xf32>, vector<32x128xf32>, vector<16x128xf32> -> vector<16x128xf32>
    %151 = vector.broadcast %51 : vector<1x128xf32> to vector<16x128xf32>
    %152 = arith.addf %150, %151 : vector<16x128xf32>
    %153 = arith.mulf %152, %152 : vector<16x128xf32>
    %154 = arith.mulf %152, %153 : vector<16x128xf32>
    %cst_75 = arith.constant 4.471500e-02 : f32
    %155 = vector.broadcast %cst_75 : f32 to vector<16x128xf32>
    %156 = arith.mulf %155, %154 : vector<16x128xf32>
    %157 = arith.addf %152, %156 : vector<16x128xf32>
    %cst_76 = arith.constant 0.797884583 : f32
    %158 = vector.broadcast %cst_76 : f32 to vector<16x128xf32>
    %159 = arith.mulf %158, %157 : vector<16x128xf32>
    %160 = math.tanh %159 : vector<16x128xf32>
    %cst_77 = arith.constant 1.000000e+00 : f32
    %161 = vector.broadcast %cst_77 : f32 to vector<16x128xf32>
    %162 = arith.addf %161, %160 : vector<16x128xf32>
    %cst_78 = arith.constant 5.000000e-01 : f32
    %163 = vector.broadcast %cst_78 : f32 to vector<16x128xf32>
    %164 = arith.mulf %163, %162 : vector<16x128xf32>
    %165 = arith.mulf %152, %164 : vector<16x128xf32>
    %c0_79 = arith.constant 0 : index
    %c0_80 = arith.constant 0 : index
    %c0_81 = arith.constant 0 : index
    %166 = vector.load %arg8[%c0_79, %c0_80, %c0_81] : memref<2x128x32xf32, #tpu.memory_space<vmem>>, vector<1x128x32xf32>
    %167 = vector.shape_cast %166 : vector<1x128x32xf32> to vector<128x32xf32>
    %cst_82 = arith.constant dense<0.000000e+00> : vector<16x32xf32>
    %168 = tpu.matmul %165, %167, %cst_82 {dimension_numbers = #tpu.dot_dimension_numbers<[1], [0], [0], [1], [0, 0, 1, 1], [], []>} : vector<16x128xf32>, vector<128x32xf32>, vector<16x32xf32> -> vector<16x32xf32>
    %169 = vector.broadcast %53 : vector<1x32xf32> to vector<16x32xf32>
    %170 = arith.addf %168, %169 : vector<16x32xf32>
    %171 = arith.addf %147, %170 : vector<16x32xf32>
    %cst_83 = arith.constant dense<0.000000e+00> : vector<16xf32>
    %172 = vector.multi_reduction <add>, %171, %cst_83 [1] : vector<16x32xf32> to vector<16xf32>
    %173 = vector.shape_cast %172 : vector<16xf32> to vector<16x1xf32>
    %cst_84 = arith.constant 3.200000e+01 : f32
    %174 = vector.broadcast %cst_84 : f32 to vector<16x1xf32>
    %175 = arith.divf %173, %174 : vector<16x1xf32>
    %176 = vector.broadcast %175 : vector<16x1xf32> to vector<16x32xf32>
    %177 = arith.subf %171, %176 : vector<16x32xf32>
    %178 = arith.mulf %177, %177 : vector<16x32xf32>
    %cst_85 = arith.constant dense<0.000000e+00> : vector<16xf32>
    %179 = vector.multi_reduction <add>, %178, %cst_85 [1] : vector<16x32xf32> to vector<16xf32>
    %180 = vector.shape_cast %179 : vector<16xf32> to vector<16x1xf32>
    %cst_86 = arith.constant 3.200000e+01 : f32
    %181 = vector.broadcast %cst_86 : f32 to vector<16x1xf32>
    %182 = arith.divf %180, %181 : vector<16x1xf32>
    %183 = vector.broadcast %175 : vector<16x1xf32> to vector<16x32xf32>
    %184 = arith.subf %171, %183 : vector<16x32xf32>
    %cst_87 = arith.constant 9.99999996E-13 : f32
    %185 = vector.broadcast %cst_87 : f32 to vector<16x1xf32>
    %186 = arith.addf %182, %185 : vector<16x1xf32>
    %187 = math.rsqrt %186 : vector<16x1xf32>
    %188 = vector.broadcast %187 : vector<16x1xf32> to vector<16x32xf32>
    %189 = arith.mulf %184, %188 : vector<16x32xf32>
    %190 = vector.broadcast %55 : vector<1x32xf32> to vector<16x32xf32>
    %191 = arith.mulf %189, %190 : vector<16x32xf32>
    %192 = vector.broadcast %57 : vector<1x32xf32> to vector<16x32xf32>
    %193 = arith.addf %191, %192 : vector<16x32xf32>
    %c1_88 = arith.constant 1 : index
    %c0_89 = arith.constant 0 : index
    %c0_90 = arith.constant 0 : index
    %194 = vector.load %arg9[%c1_88, %c0_89, %c0_90] : memref<2x16x128xf32, #tpu.memory_space<vmem>>, vector<1x1x32xf32>
    %195 = vector.shape_cast %194 : vector<1x1x32xf32> to vector<1x32xf32>
    %c1_91 = arith.constant 1 : index
    %c1_92 = arith.constant 1 : index
    %c0_93 = arith.constant 0 : index
    %196 = vector.load %arg9[%c1_91, %c1_92, %c0_93] : memref<2x16x128xf32, #tpu.memory_space<vmem>>, vector<1x1x32xf32>
    %197 = vector.shape_cast %196 : vector<1x1x32xf32> to vector<1x32xf32>
    %c1_94 = arith.constant 1 : index
    %c2_95 = arith.constant 2 : index
    %c0_96 = arith.constant 0 : index
    %198 = vector.load %arg9[%c1_94, %c2_95, %c0_96] : memref<2x16x128xf32, #tpu.memory_space<vmem>>, vector<1x1x32xf32>
    %199 = vector.shape_cast %198 : vector<1x1x32xf32> to vector<1x32xf32>
    %c1_97 = arith.constant 1 : index
    %c3_98 = arith.constant 3 : index
    %c0_99 = arith.constant 0 : index
    %200 = vector.load %arg9[%c1_97, %c3_98, %c0_99] : memref<2x16x128xf32, #tpu.memory_space<vmem>>, vector<1x1x32xf32>
    %201 = vector.shape_cast %200 : vector<1x1x32xf32> to vector<1x32xf32>
    %c1_100 = arith.constant 1 : index
    %c4_101 = arith.constant 4 : index
    %c0_102 = arith.constant 0 : index
    %202 = vector.load %arg9[%c1_100, %c4_101, %c0_102] : memref<2x16x128xf32, #tpu.memory_space<vmem>>, vector<1x1x32xf32>
    %203 = vector.shape_cast %202 : vector<1x1x32xf32> to vector<1x32xf32>
    %c1_103 = arith.constant 1 : index
    %c5_104 = arith.constant 5 : index
    %c0_105 = arith.constant 0 : index
    %204 = vector.load %arg9[%c1_103, %c5_104, %c0_105] : memref<2x16x128xf32, #tpu.memory_space<vmem>>, vector<1x1x32xf32>
    %205 = vector.shape_cast %204 : vector<1x1x32xf32> to vector<1x32xf32>
    %c1_106 = arith.constant 1 : index
    %c6_107 = arith.constant 6 : index
    %c0_108 = arith.constant 0 : index
    %206 = vector.load %arg9[%c1_106, %c6_107, %c0_108] : memref<2x16x128xf32, #tpu.memory_space<vmem>>, vector<1x1x128xf32>
    %207 = vector.shape_cast %206 : vector<1x1x128xf32> to vector<1x128xf32>
    %c1_109 = arith.constant 1 : index
    %c7_110 = arith.constant 7 : index
    %c0_111 = arith.constant 0 : index
    %208 = vector.load %arg9[%c1_109, %c7_110, %c0_111] : memref<2x16x128xf32, #tpu.memory_space<vmem>>, vector<1x1x32xf32>
    %209 = vector.shape_cast %208 : vector<1x1x32xf32> to vector<1x32xf32>
    %c1_112 = arith.constant 1 : index
    %c8_113 = arith.constant 8 : index
    %c0_114 = arith.constant 0 : index
    %210 = vector.load %arg9[%c1_112, %c8_113, %c0_114] : memref<2x16x128xf32, #tpu.memory_space<vmem>>, vector<1x1x32xf32>
    %211 = vector.shape_cast %210 : vector<1x1x32xf32> to vector<1x32xf32>
    %c1_115 = arith.constant 1 : index
    %c9_116 = arith.constant 9 : index
    %c0_117 = arith.constant 0 : index
    %212 = vector.load %arg9[%c1_115, %c9_116, %c0_117] : memref<2x16x128xf32, #tpu.memory_space<vmem>>, vector<1x1x32xf32>
    %213 = vector.shape_cast %212 : vector<1x1x32xf32> to vector<1x32xf32>
    %c1_118 = arith.constant 1 : index
    %c0_119 = arith.constant 0 : index
    %c0_120 = arith.constant 0 : index
    %c0_121 = arith.constant 0 : index
    %214 = vector.load %arg5[%c1_118, %c0_119, %c0_120, %c0_121] : memref<2x3x32x32xf32, #tpu.memory_space<vmem>>, vector<1x1x32x32xf32>
    %215 = vector.shape_cast %214 : vector<1x1x32x32xf32> to vector<32x32xf32>
    %cst_122 = arith.constant dense<0.000000e+00> : vector<16x32xf32>
    %216 = tpu.matmul %193, %215, %cst_122 {dimension_numbers = #tpu.dot_dimension_numbers<[1], [0], [0], [1], [0, 0, 1, 1], [], []>} : vector<16x32xf32>, vector<32x32xf32>, vector<16x32xf32> -> vector<16x32xf32>
    %217 = vector.broadcast %195 : vector<1x32xf32> to vector<16x32xf32>
    %218 = arith.addf %216, %217 : vector<16x32xf32>
    %c1_123 = arith.constant 1 : index
    %c1_124 = arith.constant 1 : index
    %c0_125 = arith.constant 0 : index
    %c0_126 = arith.constant 0 : index
    %219 = vector.load %arg5[%c1_123, %c1_124, %c0_125, %c0_126] : memref<2x3x32x32xf32, #tpu.memory_space<vmem>>, vector<1x1x32x32xf32>
    %220 = vector.shape_cast %219 : vector<1x1x32x32xf32> to vector<32x32xf32>
    %cst_127 = arith.constant dense<0.000000e+00> : vector<16x32xf32>
    %221 = tpu.matmul %193, %220, %cst_127 {dimension_numbers = #tpu.dot_dimension_numbers<[1], [0], [0], [1], [0, 0, 1, 1], [], []>} : vector<16x32xf32>, vector<32x32xf32>, vector<16x32xf32> -> vector<16x32xf32>
    %222 = vector.broadcast %197 : vector<1x32xf32> to vector<16x32xf32>
    %223 = arith.addf %221, %222 : vector<16x32xf32>
    %c1_128 = arith.constant 1 : index
    %c2_129 = arith.constant 2 : index
    %c0_130 = arith.constant 0 : index
    %c0_131 = arith.constant 0 : index
    %224 = vector.load %arg5[%c1_128, %c2_129, %c0_130, %c0_131] : memref<2x3x32x32xf32, #tpu.memory_space<vmem>>, vector<1x1x32x32xf32>
    %225 = vector.shape_cast %224 : vector<1x1x32x32xf32> to vector<32x32xf32>
    %cst_132 = arith.constant dense<0.000000e+00> : vector<16x32xf32>
    %226 = tpu.matmul %193, %225, %cst_132 {dimension_numbers = #tpu.dot_dimension_numbers<[1], [0], [0], [1], [0, 0, 1, 1], [], []>} : vector<16x32xf32>, vector<32x32xf32>, vector<16x32xf32> -> vector<16x32xf32>
    %227 = vector.broadcast %199 : vector<1x32xf32> to vector<16x32xf32>
    %228 = arith.addf %226, %227 : vector<16x32xf32>
    %229 = vector.extract_strided_slice %4 {offsets = [0, 0], sizes = [1, 32], strides = [1, 1]} : vector<4x32xf32> to vector<1x32xf32>
    %230 = vector.broadcast %229 : vector<1x32xf32> to vector<16x32xf32>
    %231 = arith.mulf %218, %230 : vector<16x32xf32>
    %232 = vector.extract_strided_slice %4 {offsets = [1, 0], sizes = [1, 32], strides = [1, 1]} : vector<4x32xf32> to vector<1x32xf32>
    %233 = vector.broadcast %232 : vector<1x32xf32> to vector<16x32xf32>
    %234 = arith.mulf %218, %233 : vector<16x32xf32>
    %235 = vector.extract_strided_slice %4 {offsets = [2, 0], sizes = [1, 32], strides = [1, 1]} : vector<4x32xf32> to vector<1x32xf32>
    %236 = vector.broadcast %235 : vector<1x32xf32> to vector<16x32xf32>
    %237 = arith.mulf %218, %236 : vector<16x32xf32>
    %238 = vector.extract_strided_slice %4 {offsets = [3, 0], sizes = [1, 32], strides = [1, 1]} : vector<4x32xf32> to vector<1x32xf32>
    %239 = vector.broadcast %238 : vector<1x32xf32> to vector<16x32xf32>
    %240 = arith.mulf %218, %239 : vector<16x32xf32>
    %241 = tpu.concatenate %231, %234, %237, %240 in 0 : vector<16x32xf32>, vector<16x32xf32>, vector<16x32xf32>, vector<16x32xf32> -> vector<64x32xf32>
    %242 = tpu.concatenate %223, %223, %223, %223 in 0 : vector<16x32xf32>, vector<16x32xf32>, vector<16x32xf32>, vector<16x32xf32> -> vector<64x32xf32>
    %243 = tpu.concatenate %228, %228, %228, %228 in 0 : vector<16x32xf32>, vector<16x32xf32>, vector<16x32xf32>, vector<16x32xf32> -> vector<64x32xf32>
    %cst_133 = arith.constant dense<0.000000e+00> : vector<64x64xf32>
    %244 = tpu.matmul %241, %242, %cst_133 {dimension_numbers = #tpu.dot_dimension_numbers<[1], [1], [0], [0], [0, 0, 1, 0], [], []>} : vector<64x32xf32>, vector<64x32xf32>, vector<64x64xf32> -> vector<64x64xf32>
    %245 = arith.addf %244, %37 : vector<64x64xf32>
    %cst_134 = arith.constant dense<0xFF800000> : vector<64xf32>
    %246 = vector.multi_reduction <maximumf>, %245, %cst_134 [1] : vector<64x64xf32> to vector<64xf32>
    %247 = vector.shape_cast %246 : vector<64xf32> to vector<64x1xf32>
    %248 = vector.broadcast %247 : vector<64x1xf32> to vector<64x64xf32>
    %249 = arith.subf %245, %248 : vector<64x64xf32>
    %250 = math.exp %249 : vector<64x64xf32>
    %cst_135 = arith.constant dense<0.000000e+00> : vector<64xf32>
    %251 = vector.multi_reduction <add>, %250, %cst_135 [1] : vector<64x64xf32> to vector<64xf32>
    %252 = vector.shape_cast %251 : vector<64xf32> to vector<64x1xf32>
    %253 = tpu.reciprocal %252 {approx = true} : vector<64x1xf32> -> vector<64x1xf32>
    %254 = vector.broadcast %253 : vector<64x1xf32> to vector<64x64xf32>
    %255 = arith.mulf %250, %254 : vector<64x64xf32>
    %cst_136 = arith.constant dense<0.000000e+00> : vector<64x32xf32>
    %256 = tpu.matmul %255, %243, %cst_136 {dimension_numbers = #tpu.dot_dimension_numbers<[1], [0], [0], [1], [0, 0, 1, 1], [], []>} : vector<64x64xf32>, vector<64x32xf32>, vector<64x32xf32> -> vector<64x32xf32>
    %257 = vector.extract_strided_slice %256 {offsets = [0, 0], sizes = [16, 32], strides = [1, 1]} : vector<64x32xf32> to vector<16x32xf32>
    %258 = vector.extract_strided_slice %4 {offsets = [0, 0], sizes = [1, 32], strides = [1, 1]} : vector<4x32xf32> to vector<1x32xf32>
    %259 = vector.broadcast %258 : vector<1x32xf32> to vector<16x32xf32>
    %260 = arith.mulf %257, %259 : vector<16x32xf32>
    %261 = vector.extract_strided_slice %256 {offsets = [16, 0], sizes = [16, 32], strides = [1, 1]} : vector<64x32xf32> to vector<16x32xf32>
    %262 = vector.extract_strided_slice %4 {offsets = [1, 0], sizes = [1, 32], strides = [1, 1]} : vector<4x32xf32> to vector<1x32xf32>
    %263 = vector.broadcast %262 : vector<1x32xf32> to vector<16x32xf32>
    %264 = arith.mulf %261, %263 : vector<16x32xf32>
    %265 = arith.addf %260, %264 : vector<16x32xf32>
    %266 = vector.extract_strided_slice %256 {offsets = [32, 0], sizes = [16, 32], strides = [1, 1]} : vector<64x32xf32> to vector<16x32xf32>
    %267 = vector.extract_strided_slice %4 {offsets = [2, 0], sizes = [1, 32], strides = [1, 1]} : vector<4x32xf32> to vector<1x32xf32>
    %268 = vector.broadcast %267 : vector<1x32xf32> to vector<16x32xf32>
    %269 = arith.mulf %266, %268 : vector<16x32xf32>
    %270 = arith.addf %265, %269 : vector<16x32xf32>
    %271 = vector.extract_strided_slice %256 {offsets = [48, 0], sizes = [16, 32], strides = [1, 1]} : vector<64x32xf32> to vector<16x32xf32>
    %272 = vector.extract_strided_slice %4 {offsets = [3, 0], sizes = [1, 32], strides = [1, 1]} : vector<4x32xf32> to vector<1x32xf32>
    %273 = vector.broadcast %272 : vector<1x32xf32> to vector<16x32xf32>
    %274 = arith.mulf %271, %273 : vector<16x32xf32>
    %275 = arith.addf %270, %274 : vector<16x32xf32>
    %c1_137 = arith.constant 1 : index
    %c0_138 = arith.constant 0 : index
    %c0_139 = arith.constant 0 : index
    %276 = vector.load %arg6[%c1_137, %c0_138, %c0_139] : memref<2x32x32xf32, #tpu.memory_space<vmem>>, vector<1x32x32xf32>
    %277 = vector.shape_cast %276 : vector<1x32x32xf32> to vector<32x32xf32>
    %cst_140 = arith.constant dense<0.000000e+00> : vector<16x32xf32>
    %278 = tpu.matmul %275, %277, %cst_140 {dimension_numbers = #tpu.dot_dimension_numbers<[1], [0], [0], [1], [0, 0, 1, 1], [], []>} : vector<16x32xf32>, vector<32x32xf32>, vector<16x32xf32> -> vector<16x32xf32>
    %279 = vector.broadcast %201 : vector<1x32xf32> to vector<16x32xf32>
    %280 = arith.addf %278, %279 : vector<16x32xf32>
    %281 = arith.addf %193, %280 : vector<16x32xf32>
    %cst_141 = arith.constant dense<0.000000e+00> : vector<16xf32>
    %282 = vector.multi_reduction <add>, %281, %cst_141 [1] : vector<16x32xf32> to vector<16xf32>
    %283 = vector.shape_cast %282 : vector<16xf32> to vector<16x1xf32>
    %cst_142 = arith.constant 3.200000e+01 : f32
    %284 = vector.broadcast %cst_142 : f32 to vector<16x1xf32>
    %285 = arith.divf %283, %284 : vector<16x1xf32>
    %286 = vector.broadcast %285 : vector<16x1xf32> to vector<16x32xf32>
    %287 = arith.subf %281, %286 : vector<16x32xf32>
    %288 = arith.mulf %287, %287 : vector<16x32xf32>
    %cst_143 = arith.constant dense<0.000000e+00> : vector<16xf32>
    %289 = vector.multi_reduction <add>, %288, %cst_143 [1] : vector<16x32xf32> to vector<16xf32>
    %290 = vector.shape_cast %289 : vector<16xf32> to vector<16x1xf32>
    %cst_144 = arith.constant 3.200000e+01 : f32
    %291 = vector.broadcast %cst_144 : f32 to vector<16x1xf32>
    %292 = arith.divf %290, %291 : vector<16x1xf32>
    %293 = vector.broadcast %285 : vector<16x1xf32> to vector<16x32xf32>
    %294 = arith.subf %281, %293 : vector<16x32xf32>
    %cst_145 = arith.constant 9.99999996E-13 : f32
    %295 = vector.broadcast %cst_145 : f32 to vector<16x1xf32>
    %296 = arith.addf %292, %295 : vector<16x1xf32>
    %297 = math.rsqrt %296 : vector<16x1xf32>
    %298 = vector.broadcast %297 : vector<16x1xf32> to vector<16x32xf32>
    %299 = arith.mulf %294, %298 : vector<16x32xf32>
    %300 = vector.broadcast %203 : vector<1x32xf32> to vector<16x32xf32>
    %301 = arith.mulf %299, %300 : vector<16x32xf32>
    %302 = vector.broadcast %205 : vector<1x32xf32> to vector<16x32xf32>
    %303 = arith.addf %301, %302 : vector<16x32xf32>
    %c1_146 = arith.constant 1 : index
    %c0_147 = arith.constant 0 : index
    %c0_148 = arith.constant 0 : index
    %304 = vector.load %arg7[%c1_146, %c0_147, %c0_148] : memref<2x32x128xf32, #tpu.memory_space<vmem>>, vector<1x32x128xf32>
    %305 = vector.shape_cast %304 : vector<1x32x128xf32> to vector<32x128xf32>
    %cst_149 = arith.constant dense<0.000000e+00> : vector<16x128xf32>
    %306 = tpu.matmul %303, %305, %cst_149 {dimension_numbers = #tpu.dot_dimension_numbers<[1], [0], [0], [1], [0, 0, 1, 1], [], []>} : vector<16x32xf32>, vector<32x128xf32>, vector<16x128xf32> -> vector<16x128xf32>
    %307 = vector.broadcast %207 : vector<1x128xf32> to vector<16x128xf32>
    %308 = arith.addf %306, %307 : vector<16x128xf32>
    %309 = arith.mulf %308, %308 : vector<16x128xf32>
    %310 = arith.mulf %308, %309 : vector<16x128xf32>
    %cst_150 = arith.constant 4.471500e-02 : f32
    %311 = vector.broadcast %cst_150 : f32 to vector<16x128xf32>
    %312 = arith.mulf %311, %310 : vector<16x128xf32>
    %313 = arith.addf %308, %312 : vector<16x128xf32>
    %cst_151 = arith.constant 0.797884583 : f32
    %314 = vector.broadcast %cst_151 : f32 to vector<16x128xf32>
    %315 = arith.mulf %314, %313 : vector<16x128xf32>
    %316 = math.tanh %315 : vector<16x128xf32>
    %cst_152 = arith.constant 1.000000e+00 : f32
    %317 = vector.broadcast %cst_152 : f32 to vector<16x128xf32>
    %318 = arith.addf %317, %316 : vector<16x128xf32>
    %cst_153 = arith.constant 5.000000e-01 : f32
    %319 = vector.broadcast %cst_153 : f32 to vector<16x128xf32>
    %320 = arith.mulf %319, %318 : vector<16x128xf32>
    %321 = arith.mulf %308, %320 : vector<16x128xf32>
    %c1_154 = arith.constant 1 : index
    %c0_155 = arith.constant 0 : index
    %c0_156 = arith.constant 0 : index
    %322 = vector.load %arg8[%c1_154, %c0_155, %c0_156] : memref<2x128x32xf32, #tpu.memory_space<vmem>>, vector<1x128x32xf32>
    %323 = vector.shape_cast %322 : vector<1x128x32xf32> to vector<128x32xf32>
    %cst_157 = arith.constant dense<0.000000e+00> : vector<16x32xf32>
    %324 = tpu.matmul %321, %323, %cst_157 {dimension_numbers = #tpu.dot_dimension_numbers<[1], [0], [0], [1], [0, 0, 1, 1], [], []>} : vector<16x128xf32>, vector<128x32xf32>, vector<16x32xf32> -> vector<16x32xf32>
    %325 = vector.broadcast %209 : vector<1x32xf32> to vector<16x32xf32>
    %326 = arith.addf %324, %325 : vector<16x32xf32>
    %327 = arith.addf %303, %326 : vector<16x32xf32>
    %cst_158 = arith.constant dense<0.000000e+00> : vector<16xf32>
    %328 = vector.multi_reduction <add>, %327, %cst_158 [1] : vector<16x32xf32> to vector<16xf32>
    %329 = vector.shape_cast %328 : vector<16xf32> to vector<16x1xf32>
    %cst_159 = arith.constant 3.200000e+01 : f32
    %330 = vector.broadcast %cst_159 : f32 to vector<16x1xf32>
    %331 = arith.divf %329, %330 : vector<16x1xf32>
    %332 = vector.broadcast %331 : vector<16x1xf32> to vector<16x32xf32>
    %333 = arith.subf %327, %332 : vector<16x32xf32>
    %334 = arith.mulf %333, %333 : vector<16x32xf32>
    %cst_160 = arith.constant dense<0.000000e+00> : vector<16xf32>
    %335 = vector.multi_reduction <add>, %334, %cst_160 [1] : vector<16x32xf32> to vector<16xf32>
    %336 = vector.shape_cast %335 : vector<16xf32> to vector<16x1xf32>
    %cst_161 = arith.constant 3.200000e+01 : f32
    %337 = vector.broadcast %cst_161 : f32 to vector<16x1xf32>
    %338 = arith.divf %336, %337 : vector<16x1xf32>
    %339 = vector.broadcast %331 : vector<16x1xf32> to vector<16x32xf32>
    %340 = arith.subf %327, %339 : vector<16x32xf32>
    %cst_162 = arith.constant 9.99999996E-13 : f32
    %341 = vector.broadcast %cst_162 : f32 to vector<16x1xf32>
    %342 = arith.addf %338, %341 : vector<16x1xf32>
    %343 = math.rsqrt %342 : vector<16x1xf32>
    %344 = vector.broadcast %343 : vector<16x1xf32> to vector<16x32xf32>
    %345 = arith.mulf %340, %344 : vector<16x32xf32>
    %346 = vector.broadcast %211 : vector<1x32xf32> to vector<16x32xf32>
    %347 = arith.mulf %345, %346 : vector<16x32xf32>
    %348 = vector.broadcast %213 : vector<1x32xf32> to vector<16x32xf32>
    %349 = arith.addf %347, %348 : vector<16x32xf32>
    %c0_163 = arith.constant 0 : index
    %c0_164 = arith.constant 0 : index
    %350 = vector.load %arg10[%c0_163, %c0_164] : memref<32x32xf32, #tpu.memory_space<vmem>>, vector<32x32xf32>
    %cst_165 = arith.constant dense<0.000000e+00> : vector<16x32xf32>
    %351 = tpu.matmul %349, %350, %cst_165 {dimension_numbers = #tpu.dot_dimension_numbers<[1], [0], [0], [1], [0, 0, 1, 1], [], []>} : vector<16x32xf32>, vector<32x32xf32>, vector<16x32xf32> -> vector<16x32xf32>
    %352 = vector.broadcast %2 : vector<1x32xf32> to vector<16x32xf32>
    %353 = arith.addf %351, %352 : vector<16x32xf32>
    %354 = math.tanh %353 : vector<16x32xf32>
    %c0_166 = arith.constant 0 : index
    %c0_167 = arith.constant 0 : index
    %355 = vector.load %arg11[%c0_166, %c0_167] : memref<32x128xf32, #tpu.memory_space<vmem>>, vector<32x128xf32>
    %cst_168 = arith.constant dense<0.000000e+00> : vector<16x128xf32>
    %356 = tpu.matmul %354, %355, %cst_168 {dimension_numbers = #tpu.dot_dimension_numbers<[1], [0], [0], [1], [0, 0, 1, 1], [], []>} : vector<16x32xf32>, vector<32x128xf32>, vector<16x128xf32> -> vector<16x128xf32>
    %357 = vector.broadcast %3 : vector<1x128xf32> to vector<16x128xf32>
    %358 = arith.addf %356, %357 : vector<16x128xf32>
    %c0_169 = arith.constant 0 : index
    %c0_170 = arith.constant 0 : index
    %359 = vector.load %arg12[%c0_169, %c0_170] : memref<16x128xf32, #tpu.memory_space<vmem>>, vector<16x128xf32>
    tpu.vector_store %arg12[%c0_169, %c0_170], %358 {strides = array<i32>} : memref<16x128xf32, #tpu.memory_space<vmem>>, vector<16x128xf32>,
    return
  }
}

</mosaic_0001>

<llo_original>
// kernel: bert_classifier_forward.1
$region0: #{bert_classifier_forward.1}
  #allocation0 [shape = 'u32[]', space=smem, size = 0x4, offset = 0x4, fixed_abs, tag = 'smem constant byte address 0x4 - core index']
  #allocation1 [shape = 'u32[144,128]{1,0:T(1,128)}', space=vmem, size = 0x12000, scoped, tag = 'internal scratch']
  %s0 = inlined_call_operand.vmem [shape: s32[16,1], index: 0, kind: input, shape index: {}]
  %s1 = inlined_call_operand.vmem [shape: f32[64,64], index: 1, kind: input, shape index: {}]
  %s2 = inlined_call_operand.vmem [shape: f32[128,32], index: 2, kind: input, shape index: {}]
  %s3 = inlined_call_operand.vmem [shape: f32[16,32], index: 3, kind: input, shape index: {}]
  %s4 = inlined_call_operand.vmem [shape: f32[8,128], index: 4, kind: input, shape index: {}]
  %s5 = inlined_call_operand.vmem [shape: f32[2,3,32,32], index: 5, kind: input, shape index: {}]
  %s6 = inlined_call_operand.vmem [shape: f32[2,32,32], index: 6, kind: input, shape index: {}]
  %s7 = inlined_call_operand.vmem [shape: f32[2,32,128], index: 7, kind: input, shape index: {}]
  %s8 = inlined_call_operand.vmem [shape: f32[2,128,32], index: 8, kind: input, shape index: {}]
  %s9 = inlined_call_operand.vmem [shape: f32[2,16,128], index: 9, kind: input, shape index: {}]
  %s10 = inlined_call_operand.vmem [shape: f32[32,32], index: 10, kind: input, shape index: {}]
  %s11 = inlined_call_operand.vmem [shape: f32[32,128], index: 11, kind: input, shape index: {}]
  %s12 = inlined_call_operand.vmem [shape: f32[16,128], index: 12, kind: output, shape index: {}]
  %s13 = sld [smem:[#allocation0]]
  $region58: #{bert_classifier_forward.1} parent=0
    _
  %s15 = ssub.s32 1, %s13
  %s16 = scalar_select 0, %s15, %s13
  // Predicated region
  $region2: #{bert_classifier_forward.1} parent=0 // pred_check
    _
  $region3: #{bert_classifier_forward.1} parent=0 // pred_check_branch
    %18 = sbr.rel (0) target = $region5
  $region4: #{bert_classifier_forward.1} parent=0 // pred_region
    _
  $region5: #{bert_classifier_forward.1} parent=0 // pred_fallthru
    _
  // Predicated region
  $region6: #{bert_classifier_forward.1} parent=0 // pred_check
    _
  $region7: #{bert_classifier_forward.1} parent=0 // pred_check_branch
    %20 = sbr.rel (0) target = $region9
  $region8: #{bert_classifier_forward.1} parent=0 // pred_region
    _
  $region9: #{bert_classifier_forward.1} parent=0 // pred_fallthru
    _
  // Predicated region
  $region10: #{bert_classifier_forward.1} parent=0 // pred_check
    _
  $region11: #{bert_classifier_forward.1} parent=0 // pred_check_branch
    %22 = sbr.rel (0) target = $region13
  $region12: #{bert_classifier_forward.1} parent=0 // pred_region
    _
  $region13: #{bert_classifier_forward.1} parent=0 // pred_fallthru
    _
  // Predicated region
  $region14: #{bert_classifier_forward.1} parent=0 // pred_check
    _
  $region15: #{bert_classifier_forward.1} parent=0 // pred_check_branch
    %24 = sbr.rel (0) target = $region17
  $region16: #{bert_classifier_forward.1} parent=0 // pred_region
    _
  $region17: #{bert_classifier_forward.1} parent=0 // pred_fallthru
    _
  // Predicated region
  $region18: #{bert_classifier_forward.1} parent=0 // pred_check
    _
  $region19: #{bert_classifier_forward.1} parent=0 // pred_check_branch
    %26 = sbr.rel (0) target = $region21
  $region20: #{bert_classifier_forward.1} parent=0 // pred_region
    _
  $region21: #{bert_classifier_forward.1} parent=0 // pred_fallthru
    _
  // Predicated region
  $region22: #{bert_classifier_forward.1} parent=0 // pred_check
    _
  $region23: #{bert_classifier_forward.1} parent=0 // pred_check_branch
    %28 = sbr.rel (0) target = $region25
  $region24: #{bert_classifier_forward.1} parent=0 // pred_region
    _
  $region25: #{bert_classifier_forward.1} parent=0 // pred_fallthru
    _
  // Predicated region
  $region26: #{bert_classifier_forward.1} parent=0 // pred_check
    _
  $region27: #{bert_classifier_forward.1} parent=0 // pred_check_branch
    %30 = sbr.rel (0) target = $region29
  $region28: #{bert_classifier_forward.1} parent=0 // pred_region
    _
  $region29: #{bert_classifier_forward.1} parent=0 // pred_fallthru
    _
  // Predicated region
  $region30: #{bert_classifier_forward.1} parent=0 // pred_check
    _
  $region31: #{bert_classifier_forward.1} parent=0 // pred_check_branch
    %32 = sbr.rel (0) target = $region33
  $region32: #{bert_classifier_forward.1} parent=0 // pred_region
    _
  $region33: #{bert_classifier_forward.1} parent=0 // pred_fallthru
    _
  // Predicated region
  $region34: #{bert_classifier_forward.1} parent=0 // pred_check
    _
  $region35: #{bert_classifier_forward.1} parent=0 // pred_check_branch
    %34 = sbr.rel (0) target = $region37
  $region36: #{bert_classifier_forward.1} parent=0 // pred_region
    _
  $region37: #{bert_classifier_forward.1} parent=0 // pred_fallthru
    _
  // Predicated region
  $region38: #{bert_classifier_forward.1} parent=0 // pred_check
    _
  $region39: #{bert_classifier_forward.1} parent=0 // pred_check_branch
    %36 = sbr.rel (0) target = $region41
  $region40: #{bert_classifier_forward.1} parent=0 // pred_region
    _
  $region41: #{bert_classifier_forward.1} parent=0 // pred_fallthru
    _
  // Predicated region
  $region42: #{bert_classifier_forward.1} parent=0 // pred_check
    _
  $region43: #{bert_classifier_forward.1} parent=0 // pred_check_branch
    %38 = sbr.rel (0) target = $region45
  $region44: #{bert_classifier_forward.1} parent=0 // pred_region
    _
  $region45: #{bert_classifier_forward.1} parent=0 // pred_fallthru
    _
  // Predicated region
  $region46: #{bert_classifier_forward.1} parent=0 // pred_check
    _
  $region47: #{bert_classifier_forward.1} parent=0 // pred_check_branch
    %40 = sbr.rel (0) target = $region49
  $region48: #{bert_classifier_forward.1} parent=0 // pred_region
    _
  $region49: #{bert_classifier_forward.1} parent=0 // pred_fallthru
    _
  %v41 = vld [vmem:[%s4] sm:$0x1]
  %v42 = vld [vmem:[%s4 + $0x1] sm:$0x1]
  %v43 = vld [vmem:[%s4 + $0x2] sm:$0x1]
  %v44 = vld [vmem:[%s4 + $0x3] sm:$0x1]
  %v45 = vld [vmem:[%s4 + $0x4] sm:$0xf]
  %v46 = vld [vmem:[%s0] sm:$0xff]
  %v47 = vld [vmem:[%s0 + $0x8] sm:$0xff]
  %v48 = vlaneseq
  %v49 = vand.u32 %v48, 127
  %50 = vset.pattern.permute.xlu0 0
  %51 = vperm.xlu0 %50, %v46
  %v52 = vpop.permute.xlu0 %51
  %53 = vset.pattern.permute.xlu0 0
  %54 = vperm.xlu0 %53, %v47
  %v55 = vpop.permute.xlu0 %54
  %vm56 = vcmp.eq.s32.totalorder %v49, %v52
  %vm57 = vcmp.eq.s32.totalorder %v49, %v55
  %v58 = vsel %vm56, 1, 0
  %v59 = vsel %vm57, 1, 0
  %v60 = vcvt.s32.f32 %v58
  %v61 = vcvt.s32.f32 %v59
  %v62 = vld [vmem:[%s2] sm:$0xff]
  %v63 = vld [vmem:[%s2 + $0x8] sm:$0xff]
  %v64 = vld [vmem:[%s2 + $0x10] sm:$0xff]
  %v65 = vld [vmem:[%s2 + $0x18] sm:$0xff]
  %v66 = vld [vmem:[%s2 + $0x20] sm:$0xff]
  %v67 = vld [vmem:[%s2 + $0x28] sm:$0xff]
  %v68 = vld [vmem:[%s2 + $0x30] sm:$0xff]
  %v69 = vld [vmem:[%s2 + $0x38] sm:$0xff]
  %v70 = vld [vmem:[%s2 + $0x40] sm:$0xff]
  %v71 = vld [vmem:[%s2 + $0x48] sm:$0xff]
  %v72 = vld [vmem:[%s2 + $0x50] sm:$0xff]
  %v73 = vld [vmem:[%s2 + $0x58] sm:$0xff]
  %v74 = vld [vmem:[%s2 + $0x60] sm:$0xff]
  %v75 = vld [vmem:[%s2 + $0x68] sm:$0xff]
  %v76 = vld [vmem:[%s2 + $0x70] sm:$0xff]
  %v77 = vld [vmem:[%s2 + $0x78] sm:$0xff]
  %v78 = vld [vmem:[%s3] sm:$0xff]
  %v79 = vld [vmem:[%s3 + $0x8] sm:$0xff]
  %80 = vmatprep.subr.mxu0 0.0
  %81 = vmatpush1.msra.mxu0 %v62
  %82 = vmatprep.subr.mxu0 0.0
  %83 = vmatpush1.msra.mxu0 %v63
  %84 = vmatprep.subr.mxu0 0.0
  %85 = vmatpush1.msra.mxu0 %v64
  %86 = vmatprep.subr.mxu0 0.0
  %87 = vmatpush1.msra.mxu0 %v65
  %88 = vmatprep.subr.mxu0 0.0
  %89 = vmatpush1.msra.mxu0 %v66
  %90 = vmatprep.subr.mxu0 0.0
  %91 = vmatpush1.msra.mxu0 %v67
  %92 = vmatprep.subr.mxu0 0.0
  %93 = vmatpush1.msra.mxu0 %v68
  %94 = vmatprep.subr.mxu0 0.0
  %95 = vmatpush1.msra.mxu0 %v69
  %96 = vmatprep.subr.mxu0 0.0
  %97 = vmatpush1.msra.mxu0 %v70
  %98 = vmatprep.subr.mxu0 0.0
  %99 = vmatpush1.msra.mxu0 %v71
  %100 = vmatprep.subr.mxu0 0.0
  %101 = vmatpush1.msra.mxu0 %v72
  %102 = vmatprep.subr.mxu0 0.0
  %103 = vmatpush1.msra.mxu0 %v73
  %104 = vmatprep.subr.mxu0 0.0
  %105 = vmatpush1.msra.mxu0 %v74
  %106 = vmatprep.subr.mxu0 0.0
  %107 = vmatpush1.msra.mxu0 %v75
  %108 = vmatprep.subr.mxu0 0.0
  %109 = vmatpush1.msra.mxu0 %v76
  %110 = vmatprep.subr.mxu0 0.0
  %111 = vmatpush1.msra.mxu0 %v77
  %112 = vmatprep.subr.mxu0 0.0
  %113 = vmatpush1.msra.mxu0 0.0
  %114 = vmatprep.subr.mxu0 0.0
  %115 = vmatpush1.msra.mxu0 0.0
  %116 = vmatprep.subr.mxu0 0.0
  %117 = vmatpush1.msra.mxu0 0.0
  %118 = vmatprep.subr.mxu0 0.0
  %119 = vmatpush1.msra.mxu0 0.0
  %120 = vmatprep.subr.mxu0 0.0
  %121 = vmatpush1.msra.mxu0 0.0
  %122 = vmatprep.subr.mxu0 0.0
  %123 = vmatpush1.msra.mxu0 0.0
  %124 = vmatprep.subr.mxu0 0.0
  %125 = vmatpush1.msra.mxu0 0.0
  %126 = vmatprep.subr.mxu0 0.0
  %127 = vmatpush1.msra.mxu0 0.0
  %128 = vmatprep.subr.mxu0 0.0
  %129 = vmatpush1.msra.mxu0 0.0
  %130 = vmatprep.subr.mxu0 0.0
  %131 = vmatpush1.msra.mxu0 0.0
  %132 = vmatprep.subr.mxu0 0.0
  %133 = vmatpush1.msra.mxu0 0.0
  %134 = vmatprep.subr.mxu0 0.0
  %135 = vmatpush1.msra.mxu0 0.0
  %136 = vmatprep.subr.mxu0 0.0
  %137 = vmatpush1.msra.mxu0 0.0
  %138 = vmatprep.subr.mxu0 0.0
  %139 = vmatpush1.msra.mxu0 0.0
  %140 = vmatprep.subr.mxu0 0.0
  %141 = vmatpush1.msra.mxu0 0.0
  %142 = vmatprep.subr.mxu0 0.0
  %143 = vmatpush1.msra.mxu0 0.0
  %144 = vmatprep.mubr.f32.mxu0 0.0
  %145 = vmatmul.mubr.f32.gmra.mrb[0].mxu0 %v60
  %v146 = vpop.f32.mrb[0].mxu0
  %v147 = vadd.f32 %v78, %v146
  %v148 = vpop.f32.mrb[0].mxu0
  %149 = vmatprep.mubr.f32.mxu0 0.0
  %150 = vmatmul.mubr.f32.gmra.mrb[0].mxu0 %v61
  %v151 = vpop.f32.mrb[0].mxu0
  %v152 = vadd.f32 %v79, %v151
  %v153 = vpop.f32.mrb[0].mxu0
  %154 = vdwg.mxu0
  %vm155 = vcmask 261120
  %v156 = vsel %vm155, %v147, 0.0
  %157 = vadd.xlane.f32.xlu0 %v156
  %v158 = vpop.xlane.xlu0 %157
  %v159 = vsel %vm155, %v152, 0.0
  %160 = vadd.xlane.f32.xlu0 %v159
  %v161 = vpop.xlane.xlu0 %160
  %v162 = vrcp.pop 32.0
  %v163 = vmul.f32 %v158, %v162
  %v164 = vmul.f32 %v161, %v162
  %v165 = vsub.f32 %v147, %v163
  %v166 = vsub.f32 %v152, %v164
  %v167 = vmul.f32 %v165, %v165
  %v168 = vmul.f32 %v166, %v166
  %v169 = vsel %vm155, %v167, 0.0
  %170 = vadd.xlane.f32.xlu0 %v169
  %v171 = vpop.xlane.xlu0 %170
  %v172 = vsel %vm155, %v168, 0.0
  %173 = vadd.xlane.f32.xlu0 %v172
  %v174 = vpop.xlane.xlu0 %173
  %v175 = vmul.f32 %v171, %v162
  %v176 = vmul.f32 %v174, %v162
  %v177 = vadd.f32 %v175, 1e-12
  %v178 = vadd.f32 %v176, 1e-12
  %v179 = vrsqrt.pop %v177
  %v180 = vrsqrt.pop %v178
  %v181 = vmul.f32 %v165, %v179
  %v182 = vmul.f32 %v166, %v180
  %v183 = vlaneseq
  %v184 = vshrl.u32 %v183, 7
  %v185 = vsub.s32 0, %v184
  %v186 = vrot.slane %v41, %v185
  %v187 = vmul.f32 %v181, %v186
  %v188 = vmul.f32 %v182, %v186
  %v189 = vlaneseq
  %v190 = vshrl.u32 %v189, 7
  %v191 = vsub.s32 0, %v190
  %v192 = vrot.slane %v42, %v191
  %v193 = vadd.f32 %v187, %v192
  %v194 = vadd.f32 %v188, %v192
  %v195 = vld [vmem:[%s1] sm:$0xff]
  %v196 = vld [vmem:[%s1 + $0x8] sm:$0xff]
  %v197 = vld [vmem:[%s1 + $0x10] sm:$0xff]
  %v198 = vld [vmem:[%s1 + $0x18] sm:$0xff]
  %v199 = vld [vmem:[%s1 + $0x20] sm:$0xff]
  %v200 = vld [vmem:[%s1 + $0x28] sm:$0xff]
  %v201 = vld [vmem:[%s1 + $0x30] sm:$0xff]
  %v202 = vld [vmem:[%s1 + $0x38] sm:$0xff]
  %v203 = vld [vmem:[%s9] sm:$0x1]
  %v204 = vld [vmem:[%s9 + $0x1] sm:$0x1]
  %v205 = vld [vmem:[%s9 + $0x2] sm:$0x1]
  %v206 = vld [vmem:[%s9 + $0x3] sm:$0x1]
  %v207 = vld [vmem:[%s9 + $0x4] sm:$0x1]
  %v208 = vld [vmem:[%s9 + $0x5] sm:$0x1]
  %v209 = vld [vmem:[%s9 + $0x6] sm:$0x1]
  %v210 = vld [vmem:[%s9 + $0x7] sm:$0x1]
  %v211 = vld [vmem:[%s9 + $0x8] sm:$0x1]
  %v212 = vld [vmem:[%s9 + $0x9] sm:$0x1]
  %v213 = vld [vmem:[%s5] sm:$0xff]
  %v214 = vld [vmem:[%s5 + $0x8] sm:$0xff]
  %v215 = vld [vmem:[%s5 + $0x10] sm:$0xff]
  %v216 = vld [vmem:[%s5 + $0x18] sm:$0xff]
  %v217 = vlaneseq
  %v218 = vshrl.u32 %v217, 7
  %v219 = vsub.s32 0, %v218
  %v220 = vrot.slane %v203, %v219
  %v222 = vsel %vm155, %v193, 0
  %v225 = vsel %vm155, %v194, 0
  %227 = vmatprep.subr.mxu0 0.0
  %228 = vmatpush1.msra.mxu0 %v213
  %229 = vmatprep.subr.mxu0 0.0
  %230 = vmatpush1.msra.mxu0 %v214
  %231 = vmatprep.subr.mxu0 0.0
  %232 = vmatpush1.msra.mxu0 %v215
  %233 = vmatprep.subr.mxu0 0.0
  %234 = vmatpush1.msra.mxu0 %v216
  %235 = vmatprep.subr.mxu0 0.0
  %236 = vmatpush1.msra.mxu0 0.0
  %237 = vmatprep.subr.mxu0 0.0
  %238 = vmatpush1.msra.mxu0 0.0
  %239 = vmatprep.subr.mxu0 0.0
  %240 = vmatpush1.msra.mxu0 0.0
  %241 = vmatprep.subr.mxu0 0.0
  %242 = vmatpush1.msra.mxu0 0.0
  %243 = vmatprep.subr.mxu0 0.0
  %244 = vmatpush1.msra.mxu0 0.0
  %245 = vmatprep.subr.mxu0 0.0
  %246 = vmatpush1.msra.mxu0 0.0
  %247 = vmatprep.subr.mxu0 0.0
  %248 = vmatpush1.msra.mxu0 0.0
  %249 = vmatprep.subr.mxu0 0.0
  %250 = vmatpush1.msra.mxu0 0.0
  %251 = vmatprep.subr.mxu0 0.0
  %252 = vmatpush1.msra.mxu0 0.0
  %253 = vmatprep.subr.mxu0 0.0
  %254 = vmatpush1.msra.mxu0 0.0
  %255 = vmatprep.subr.mxu0 0.0
  %256 = vmatpush1.msra.mxu0 0.0
  %257 = vmatprep.subr.mxu0 0.0
  %258 = vmatpush1.msra.mxu0 0.0
  %259 = vmatprep.subr.mxu0 0.0
  %260 = vmatpush1.msra.mxu0 0.0
  %261 = vmatprep.subr.mxu0 0.0
  %262 = vmatpush1.msra.mxu0 0.0
  %263 = vmatprep.subr.mxu0 0.0
  %264 = vmatpush1.msra.mxu0 0.0
  %265 = vmatprep.subr.mxu0 0.0
  %266 = vmatpush1.msra.mxu0 0.0
  %267 = vmatprep.subr.mxu0 0.0
  %268 = vmatpush1.msra.mxu0 0.0
  %269 = vmatprep.subr.mxu0 0.0
  %270 = vmatpush1.msra.mxu0 0.0
  %271 = vmatprep.subr.mxu0 0.0
  %272 = vmatpush1.msra.mxu0 0.0
  %273 = vmatprep.subr.mxu0 0.0
  %274 = vmatpush1.msra.mxu0 0.0
  %275 = vmatprep.subr.mxu0 0.0
  %276 = vmatpush1.msra.mxu0 0.0
  %277 = vmatprep.subr.mxu0 0.0
  %278 = vmatpush1.msra.mxu0 0.0
  %279 = vmatprep.subr.mxu0 0.0
  %280 = vmatpush1.msra.mxu0 0.0
  %281 = vmatprep.subr.mxu0 0.0
  %282 = vmatpush1.msra.mxu0 0.0
  %283 = vmatprep.subr.mxu0 0.0
  %284 = vmatpush1.msra.mxu0 0.0
  %285 = vmatprep.subr.mxu0 0.0
  %286 = vmatpush1.msra.mxu0 0.0
  %287 = vmatprep.subr.mxu0 0.0
  %288 = vmatpush1.msra.mxu0 0.0
  %289 = vmatprep.subr.mxu0 0.0
  %290 = vmatpush1.msra.mxu0 0.0
  %291 = vmatprep.mubr.f32.mxu0 0.0
  %292 = vmatmul.mubr.f32.gmra.mrb[0].mxu0 %v222
  %v293 = vpop.f32.mrb[0].mxu0
  %v294 = vadd.f32 %v220, %v293
  %v295 = vpop.f32.mrb[0].mxu0
  %296 = vmatprep.mubr.f32.mxu0 0.0
  %297 = vmatmul.mubr.f32.gmra.mrb[0].mxu0 %v225
  %v298 = vpop.f32.mrb[0].mxu0
  %v299 = vadd.f32 %v220, %v298
  %v300 = vpop.f32.mrb[0].mxu0
  %301 = vdwg.mxu0
  %s302 = scalar_lea.vmem %s5, 32
  %v303 = vld [vmem:[%s302] sm:$0xff]
  %v304 = vld [vmem:[%s302 + $0x8] sm:$0xff]
  %v305 = vld [vmem:[%s302 + $0x10] sm:$0xff]
  %v306 = vld [vmem:[%s302 + $0x18] sm:$0xff]
  %v307 = vlaneseq
  %v308 = vshrl.u32 %v307, 7
  %v309 = vsub.s32 0, %v308
  %v310 = vrot.slane %v204, %v309
  %311 = vmatprep.subr.mxu0 0.0
  %312 = vmatpush1.msra.mxu0 %v303
  %313 = vmatprep.subr.mxu0 0.0
  %314 = vmatpush1.msra.mxu0 %v304
  %315 = vmatprep.subr.mxu0 0.0
  %316 = vmatpush1.msra.mxu0 %v305
  %317 = vmatprep.subr.mxu0 0.0
  %318 = vmatpush1.msra.mxu0 %v306
  %319 = vmatprep.subr.mxu0 0.0
  %320 = vmatpush1.msra.mxu0 0.0
  %321 = vmatprep.subr.mxu0 0.0
  %322 = vmatpush1.msra.mxu0 0.0
  %323 = vmatprep.subr.mxu0 0.0
  %324 = vmatpush1.msra.mxu0 0.0
  %325 = vmatprep.subr.mxu0 0.0
  %326 = vmatpush1.msra.mxu0 0.0
  %327 = vmatprep.subr.mxu0 0.0
  %328 = vmatpush1.msra.mxu0 0.0
  %329 = vmatprep.subr.mxu0 0.0
  %330 = vmatpush1.msra.mxu0 0.0
  %331 = vmatprep.subr.mxu0 0.0
  %332 = vmatpush1.msra.mxu0 0.0
  %333 = vmatprep.subr.mxu0 0.0
  %334 = vmatpush1.msra.mxu0 0.0
  %335 = vmatprep.subr.mxu0 0.0
  %336 = vmatpush1.msra.mxu0 0.0
  %337 = vmatprep.subr.mxu0 0.0
  %338 = vmatpush1.msra.mxu0 0.0
  %339 = vmatprep.subr.mxu0 0.0
  %340 = vmatpush1.msra.mxu0 0.0
  %341 = vmatprep.subr.mxu0 0.0
  %342 = vmatpush1.msra.mxu0 0.0
  %343 = vmatprep.subr.mxu0 0.0
  %344 = vmatpush1.msra.mxu0 0.0
  %345 = vmatprep.subr.mxu0 0.0
  %346 = vmatpush1.msra.mxu0 0.0
  %347 = vmatprep.subr.mxu0 0.0
  %348 = vmatpush1.msra.mxu0 0.0
  %349 = vmatprep.subr.mxu0 0.0
  %350 = vmatpush1.msra.mxu0 0.0
  %351 = vmatprep.subr.mxu0 0.0
  %352 = vmatpush1.msra.mxu0 0.0
  %353 = vmatprep.subr.mxu0 0.0
  %354 = vmatpush1.msra.mxu0 0.0
  %355 = vmatprep.subr.mxu0 0.0
  %356 = vmatpush1.msra.mxu0 0.0
  %357 = vmatprep.subr.mxu0 0.0
  %358 = vmatpush1.msra.mxu0 0.0
  %359 = vmatprep.subr.mxu0 0.0
  %360 = vmatpush1.msra.mxu0 0.0
  %361 = vmatprep.subr.mxu0 0.0
  %362 = vmatpush1.msra.mxu0 0.0
  %363 = vmatprep.subr.mxu0 0.0
  %364 = vmatpush1.msra.mxu0 0.0
  %365 = vmatprep.subr.mxu0 0.0
  %366 = vmatpush1.msra.mxu0 0.0
  %367 = vmatprep.subr.mxu0 0.0
  %368 = vmatpush1.msra.mxu0 0.0
  %369 = vmatprep.subr.mxu0 0.0
  %370 = vmatpush1.msra.mxu0 0.0
  %371 = vmatprep.subr.mxu0 0.0
  %372 = vmatpush1.msra.mxu0 0.0
  %373 = vmatprep.subr.mxu0 0.0
  %374 = vmatpush1.msra.mxu0 0.0
  %375 = vmatprep.mubr.f32.mxu0 0.0
  %376 = vmatmul.mubr.f32.gmra.mrb[0].mxu0 %v222
  %v377 = vpop.f32.mrb[0].mxu0
  %v378 = vadd.f32 %v310, %v377
  %v379 = vpop.f32.mrb[0].mxu0
  %380 = vmatprep.mubr.f32.mxu0 0.0
  %381 = vmatmul.mubr.f32.gmra.mrb[0].mxu0 %v225
  %v382 = vpop.f32.mrb[0].mxu0
  %v383 = vadd.f32 %v310, %v382
  %v384 = vpop.f32.mrb[0].mxu0
  %385 = vdwg.mxu0
  %s386 = scalar_lea.vmem %s5, 64
  %v387 = vld [vmem:[%s386] sm:$0xff]
  %v388 = vld [vmem:[%s386 + $0x8] sm:$0xff]
  %v389 = vld [vmem:[%s386 + $0x10] sm:$0xff]
  %v390 = vld [vmem:[%s386 + $0x18] sm:$0xff]
  %v391 = vlaneseq
  %v392 = vshrl.u32 %v391, 7
  %v393 = vsub.s32 0, %v392
  %v394 = vrot.slane %v205, %v393
  %395 = vmatprep.subr.mxu0 0.0
  %396 = vmatpush1.msra.mxu0 %v387
  %397 = vmatprep.subr.mxu0 0.0
  %398 = vmatpush1.msra.mxu0 %v388
  %399 = vmatprep.subr.mxu0 0.0
  %400 = vmatpush1.msra.mxu0 %v389
  %401 = vmatprep.subr.mxu0 0.0
  %402 = vmatpush1.msra.mxu0 %v390
  %403 = vmatprep.subr.mxu0 0.0
  %404 = vmatpush1.msra.mxu0 0.0
  %405 = vmatprep.subr.mxu0 0.0
  %406 = vmatpush1.msra.mxu0 0.0
  %407 = vmatprep.subr.mxu0 0.0
  %408 = vmatpush1.msra.mxu0 0.0
  %409 = vmatprep.subr.mxu0 0.0
  %410 = vmatpush1.msra.mxu0 0.0
  %411 = vmatprep.subr.mxu0 0.0
  %412 = vmatpush1.msra.mxu0 0.0
  %413 = vmatprep.subr.mxu0 0.0
  %414 = vmatpush1.msra.mxu0 0.0
  %415 = vmatprep.subr.mxu0 0.0
  %416 = vmatpush1.msra.mxu0 0.0
  %417 = vmatprep.subr.mxu0 0.0
  %418 = vmatpush1.msra.mxu0 0.0
  %419 = vmatprep.subr.mxu0 0.0
  %420 = vmatpush1.msra.mxu0 0.0
  %421 = vmatprep.subr.mxu0 0.0
  %422 = vmatpush1.msra.mxu0 0.0
  %423 = vmatprep.subr.mxu0 0.0
  %424 = vmatpush1.msra.mxu0 0.0
  %425 = vmatprep.subr.mxu0 0.0
  %426 = vmatpush1.msra.mxu0 0.0
  %427 = vmatprep.subr.mxu0 0.0
  %428 = vmatpush1.msra.mxu0 0.0
  %429 = vmatprep.subr.mxu0 0.0
  %430 = vmatpush1.msra.mxu0 0.0
  %431 = vmatprep.subr.mxu0 0.0
  %432 = vmatpush1.msra.mxu0 0.0
  %433 = vmatprep.subr.mxu0 0.0
  %434 = vmatpush1.msra.mxu0 0.0
  %435 = vmatprep.subr.mxu0 0.0
  %436 = vmatpush1.msra.mxu0 0.0
  %437 = vmatprep.subr.mxu0 0.0
  %438 = vmatpush1.msra.mxu0 0.0
  %439 = vmatprep.subr.mxu0 0.0
  %440 = vmatpush1.msra.mxu0 0.0
  %441 = vmatprep.subr.mxu0 0.0
  %442 = vmatpush1.msra.mxu0 0.0
  %443 = vmatprep.subr.mxu0 0.0
  %444 = vmatpush1.msra.mxu0 0.0
  %445 = vmatprep.subr.mxu0 0.0
  %446 = vmatpush1.msra.mxu0 0.0
  %447 = vmatprep.subr.mxu0 0.0
  %448 = vmatpush1.msra.mxu0 0.0
  %449 = vmatprep.subr.mxu0 0.0
  %450 = vmatpush1.msra.mxu0 0.0
  %451 = vmatprep.subr.mxu0 0.0
  %452 = vmatpush1.msra.mxu0 0.0
  %453 = vmatprep.subr.mxu0 0.0
  %454 = vmatpush1.msra.mxu0 0.0
  %455 = vmatprep.subr.mxu0 0.0
  %456 = vmatpush1.msra.mxu0 0.0
  %457 = vmatprep.subr.mxu0 0.0
  %458 = vmatpush1.msra.mxu0 0.0
  %459 = vmatprep.mubr.f32.mxu0 0.0
  %460 = vmatmul.mubr.f32.gmra.mrb[0].mxu0 %v222
  %v461 = vpop.f32.mrb[0].mxu0
  %v462 = vadd.f32 %v394, %v461
  %v463 = vpop.f32.mrb[0].mxu0
  %464 = vmatprep.mubr.f32.mxu0 0.0
  %465 = vmatmul.mubr.f32.gmra.mrb[0].mxu0 %v225
  %v466 = vpop.f32.mrb[0].mxu0
  %v467 = vadd.f32 %v394, %v466
  %v468 = vpop.f32.mrb[0].mxu0
  %469 = vdwg.mxu0
  %v470 = vlaneseq
  %v471 = vshrl.u32 %v470, 7
  %v472 = vsub.s32 0, %v471
  %v473 = vrot.slane %v45, %v472
  %v474 = vmul.f32 %v294, %v473
  %v475 = vmul.f32 %v299, %v473
  %v476 = vlaneseq
  %v477 = vshrl.u32 %v476, 7
  %v478 = vsub.s32 1, %v477
  %v479 = vrot.slane %v45, %v478
  %v480 = vmul.f32 %v294, %v479
  %v481 = vmul.f32 %v299, %v479
  %v482 = vlaneseq
  %v483 = vshrl.u32 %v482, 7
  %v484 = vsub.s32 2, %v483
  %v485 = vrot.slane %v45, %v484
  %v486 = vmul.f32 %v294, %v485
  %v487 = vmul.f32 %v299, %v485
  %v488 = vlaneseq
  %v489 = vshrl.u32 %v488, 7
  %v490 = vsub.s32 3, %v489
  %v491 = vrot.slane %v45, %v490
  %v492 = vmul.f32 %v294, %v491
  %v493 = vmul.f32 %v299, %v491
  %v495 = vsel %vm155, %v474, 0
  %v498 = vsel %vm155, %v475, 0
  %v501 = vsel %vm155, %v480, 0
  %v504 = vsel %vm155, %v481, 0
  %v507 = vsel %vm155, %v486, 0
  %v510 = vsel %vm155, %v487, 0
  %v513 = vsel %vm155, %v492, 0
  %v516 = vsel %vm155, %v493, 0
  %v519 = vsel %vm155, %v378, 0
  %v522 = vsel %vm155, %v383, 0
  %524 = vmatprep.subr.mxu0 0.0
  %525 = vmatpush1.xpose.msra.mxu0 %v519
  %526 = vmatprep.subr.mxu0 0.0
  %527 = vmatpush1.xpose.msra.mxu0 %v522
  %528 = vmatprep.subr.mxu0 0.0
  %529 = vmatpush1.xpose.msra.mxu0 %v519
  %530 = vmatprep.subr.mxu0 0.0
  %531 = vmatpush1.xpose.msra.mxu0 %v522
  %532 = vmatprep.subr.mxu0 0.0
  %533 = vmatpush1.xpose.msra.mxu0 %v519
  %534 = vmatprep.subr.mxu0 0.0
  %535 = vmatpush1.xpose.msra.mxu0 %v522
  %536 = vmatprep.subr.mxu0 0.0
  %537 = vmatpush1.xpose.msra.mxu0 %v519
  %538 = vmatprep.subr.mxu0 0.0
  %539 = vmatpush1.xpose.msra.mxu0 %v522
  %540 = vmatprep.subr.mxu0 0.0
  %541 = vmatpush1.xpose.msra.mxu0 0.0
  %542 = vmatprep.subr.mxu0 0.0
  %543 = vmatpush1.xpose.msra.mxu0 0.0
  %544 = vmatprep.subr.mxu0 0.0
  %545 = vmatpush1.xpose.msra.mxu0 0.0
  %546 = vmatprep.subr.mxu0 0.0
  %547 = vmatpush1.xpose.msra.mxu0 0.0
  %548 = vmatprep.subr.mxu0 0.0
  %549 = vmatpush1.xpose.msra.mxu0 0.0
  %550 = vmatprep.subr.mxu0 0.0
  %551 = vmatpush1.xpose.msra.mxu0 0.0
  %552 = vmatprep.subr.mxu0 0.0
  %553 = vmatpush1.xpose.msra.mxu0 0.0
  %554 = vmatprep.subr.mxu0 0.0
  %555 = vmatpush1.xpose.msra.mxu0 0.0
  %556 = vmatprep.subr.mxu0 0.0
  %557 = vmatpush1.xpose.msra.mxu0 0.0
  %558 = vmatprep.subr.mxu0 0.0
  %559 = vmatpush1.xpose.msra.mxu0 0.0
  %560 = vmatprep.subr.mxu0 0.0
  %561 = vmatpush1.xpose.msra.mxu0 0.0
  %562 = vmatprep.subr.mxu0 0.0
  %563 = vmatpush1.xpose.msra.mxu0 0.0
  %564 = vmatprep.subr.mxu0 0.0
  %565 = vmatpush1.xpose.msra.mxu0 0.0
  %566 = vmatprep.subr.mxu0 0.0
  %567 = vmatpush1.xpose.msra.mxu0 0.0
  %568 = vmatprep.subr.mxu0 0.0
  %569 = vmatpush1.xpose.msra.mxu0 0.0
  %570 = vmatprep.subr.mxu0 0.0
  %571 = vmatpush1.xpose.msra.mxu0 0.0
  %572 = vmatprep.subr.mxu0 0.0
  %573 = vmatpush1.xpose.msra.mxu0 0.0
  %574 = vmatprep.subr.mxu0 0.0
  %575 = vmatpush1.xpose.msra.mxu0 0.0
  %576 = vmatprep.subr.mxu0 0.0
  %577 = vmatpush1.xpose.msra.mxu0 0.0
  %578 = vmatprep.subr.mxu0 0.0
  %579 = vmatpush1.xpose.msra.mxu0 0.0
  %580 = vmatprep.subr.mxu0 0.0
  %581 = vmatpush1.xpose.msra.mxu0 0.0
  %582 = vmatprep.subr.mxu0 0.0
  %583 = vmatpush1.xpose.msra.mxu0 0.0
  %584 = vmatprep.subr.mxu0 0.0
  %585 = vmatpush1.xpose.msra.mxu0 0.0
  %586 = vmatprep.subr.mxu0 0.0
  %587 = vmatpush1.xpose.msra.mxu0 0.0
  %588 = vmatprep.mubr.f32.mxu0 0.0
  %589 = vmatmul.mubr.f32.gmra.mrb[0].mxu0 %v495
  %v590 = vpop.f32.mrb[0].mxu0
  %v591 = vadd.f32 %v195, %v590
  %v592 = vpop.f32.mrb[0].mxu0
  %593 = vmatprep.mubr.f32.mxu0 0.0
  %594 = vmatmul.mubr.f32.gmra.mrb[0].mxu0 %v498
  %v595 = vpop.f32.mrb[0].mxu0
  %v596 = vadd.f32 %v196, %v595
  %v597 = vpop.f32.mrb[0].mxu0
  %598 = vmatprep.mubr.f32.mxu0 0.0
  %599 = vmatmul.mubr.f32.gmra.mrb[0].mxu0 %v501
  %v600 = vpop.f32.mrb[0].mxu0
  %v601 = vadd.f32 %v197, %v600
  %v602 = vpop.f32.mrb[0].mxu0
  %603 = vmatprep.mubr.f32.mxu0 0.0
  %604 = vmatmul.mubr.f32.gmra.mrb[0].mxu0 %v504
  %v605 = vpop.f32.mrb[0].mxu0
  %v606 = vadd.f32 %v198, %v605
  %v607 = vpop.f32.mrb[0].mxu0
  %608 = vmatprep.mubr.f32.mxu0 0.0
  %609 = vmatmul.mubr.f32.gmra.mrb[0].mxu0 %v507
  %v610 = vpop.f32.mrb[0].mxu0
  %v611 = vadd.f32 %v199, %v610
  %v612 = vpop.f32.mrb[0].mxu0
  %613 = vmatprep.mubr.f32.mxu0 0.0
  %614 = vmatmul.mubr.f32.gmra.mrb[0].mxu0 %v510
  %v615 = vpop.f32.mrb[0].mxu0
  %v616 = vadd.f32 %v200, %v615
  %v617 = vpop.f32.mrb[0].mxu0
  %618 = vmatprep.mubr.f32.mxu0 0.0
  %619 = vmatmul.mubr.f32.gmra.mrb[0].mxu0 %v513
  %v620 = vpop.f32.mrb[0].mxu0
  %v621 = vadd.f32 %v201, %v620
  %v622 = vpop.f32.mrb[0].mxu0
  %623 = vmatprep.mubr.f32.mxu0 0.0
  %624 = vmatmul.mubr.f32.gmra.mrb[0].mxu0 %v516
  %v625 = vpop.f32.mrb[0].mxu0
  %v626 = vadd.f32 %v202, %v625
  %v627 = vpop.f32.mrb[0].mxu0
  %628 = vdwg.mxu0
  %vm629 = vcmask 523264
  %v630 = vsel %vm629, %v591, -inf
  %631 = vmax.xlane.f32.xlu0 %v630
  %v632 = vpop.xlane.xlu0 %631
  %v633 = vsel %vm629, %v596, -inf
  %634 = vmax.xlane.f32.xlu0 %v633
  %v635 = vpop.xlane.xlu0 %634
  %v636 = vsel %vm629, %v601, -inf
  %637 = vmax.xlane.f32.xlu0 %v636
  %v638 = vpop.xlane.xlu0 %637
  %v639 = vsel %vm629, %v606, -inf
  %640 = vmax.xlane.f32.xlu0 %v639
  %v641 = vpop.xlane.xlu0 %640
  %v642 = vsel %vm629, %v611, -inf
  %643 = vmax.xlane.f32.xlu0 %v642
  %v644 = vpop.xlane.xlu0 %643
  %v645 = vsel %vm629, %v616, -inf
  %646 = vmax.xlane.f32.xlu0 %v645
  %v647 = vpop.xlane.xlu0 %646
  %v648 = vsel %vm629, %v621, -inf
  %649 = vmax.xlane.f32.xlu0 %v648
  %v650 = vpop.xlane.xlu0 %649
  %v651 = vsel %vm629, %v626, -inf
  %652 = vmax.xlane.f32.xlu0 %v651
  %v653 = vpop.xlane.xlu0 %652
  %v654 = vsub.f32 %v591, %v632
  %v655 = vsub.f32 %v596, %v635
  %v656 = vsub.f32 %v601, %v638
  %v657 = vsub.f32 %v606, %v641
  %v658 = vsub.f32 %v611, %v644
  %v659 = vsub.f32 %v616, %v647
  %v660 = vsub.f32 %v621, %v650
  %v661 = vsub.f32 %v626, %v653
  %v662 = vmul.f32 %v654, 1.442695
  %v663 = vpow.pop %v662
  %v664 = vmul.f32 %v655, 1.442695
  %v665 = vpow.pop %v664
  %v666 = vmul.f32 %v656, 1.442695
  %v667 = vpow.pop %v666
  %v668 = vmul.f32 %v657, 1.442695
  %v669 = vpow.pop %v668
  %v670 = vmul.f32 %v658, 1.442695
  %v671 = vpow.pop %v670
  %v672 = vmul.f32 %v659, 1.442695
  %v673 = vpow.pop %v672
  %v674 = vmul.f32 %v660, 1.442695
  %v675 = vpow.pop %v674
  %v676 = vmul.f32 %v661, 1.442695
  %v677 = vpow.pop %v676
  %v678 = vsel %vm629, %v663, 0.0
  %679 = vadd.xlane.f32.xlu0 %v678
  %v680 = vpop.xlane.xlu0 %679
  %v681 = vsel %vm629, %v665, 0.0
  %682 = vadd.xlane.f32.xlu0 %v681
  %v683 = vpop.xlane.xlu0 %682
  %v684 = vsel %vm629, %v667, 0.0
  %685 = vadd.xlane.f32.xlu0 %v684
  %v686 = vpop.xlane.xlu0 %685
  %v687 = vsel %vm629, %v669, 0.0
  %688 = vadd.xlane.f32.xlu0 %v687
  %v689 = vpop.xlane.xlu0 %688
  %v690 = vsel %vm629, %v671, 0.0
  %691 = vadd.xlane.f32.xlu0 %v690
  %v692 = vpop.xlane.xlu0 %691
  %v693 = vsel %vm629, %v673, 0.0
  %694 = vadd.xlane.f32.xlu0 %v693
  %v695 = vpop.xlane.xlu0 %694
  %v696 = vsel %vm629, %v675, 0.0
  %697 = vadd.xlane.f32.xlu0 %v696
  %v698 = vpop.xlane.xlu0 %697
  %v699 = vsel %vm629, %v677, 0.0
  %700 = vadd.xlane.f32.xlu0 %v699
  %v701 = vpop.xlane.xlu0 %700
  %v702 = vrcp.pop %v680
  %v703 = vrcp.pop %v683
  %v704 = vrcp.pop %v686
  %v705 = vrcp.pop %v689
  %v706 = vrcp.pop %v692
  %v707 = vrcp.pop %v695
  %v708 = vrcp.pop %v698
  %v709 = vrcp.pop %v701
  %v710 = vmul.f32 %v663, %v702
  %v711 = vmul.f32 %v665, %v703
  %v712 = vmul.f32 %v667, %v704
  %v713 = vmul.f32 %v669, %v705
  %v714 = vmul.f32 %v671, %v706
  %v715 = vmul.f32 %v673, %v707
  %v716 = vmul.f32 %v675, %v708
  %v717 = vmul.f32 %v677, %v709
  %v719 = vsel %vm629, %v710, 0
  %v722 = vsel %vm629, %v711, 0
  %v725 = vsel %vm629, %v712, 0
  %v728 = vsel %vm629, %v713, 0
  %v731 = vsel %vm629, %v714, 0
  %v734 = vsel %vm629, %v715, 0
  %v737 = vsel %vm629, %v716, 0
  %v740 = vsel %vm629, %v717, 0
  %742 = vmatprep.subr.mxu0 0.0
  %743 = vmatpush1.msra.mxu0 %v462
  %744 = vmatprep.subr.mxu0 0.0
  %745 = vmatpush1.msra.mxu0 %v467
  %746 = vmatprep.subr.mxu0 0.0
  %747 = vmatpush1.msra.mxu0 %v462
  %748 = vmatprep.subr.mxu0 0.0
  %749 = vmatpush1.msra.mxu0 %v467
  %750 = vmatprep.subr.mxu0 0.0
  %751 = vmatpush1.msra.mxu0 %v462
  %752 = vmatprep.subr.mxu0 0.0
  %753 = vmatpush1.msra.mxu0 %v467
  %754 = vmatprep.subr.mxu0 0.0
  %755 = vmatpush1.msra.mxu0 %v462
  %756 = vmatprep.subr.mxu0 0.0
  %757 = vmatpush1.msra.mxu0 %v467
  %758 = vmatprep.subr.mxu0 0.0
  %759 = vmatpush1.msra.mxu0 0.0
  %760 = vmatprep.subr.mxu0 0.0
  %761 = vmatpush1.msra.mxu0 0.0
  %762 = vmatprep.subr.mxu0 0.0
  %763 = vmatpush1.msra.mxu0 0.0
  %764 = vmatprep.subr.mxu0 0.0
  %765 = vmatpush1.msra.mxu0 0.0
  %766 = vmatprep.subr.mxu0 0.0
  %767 = vmatpush1.msra.mxu0 0.0
  %768 = vmatprep.subr.mxu0 0.0
  %769 = vmatpush1.msra.mxu0 0.0
  %770 = vmatprep.subr.mxu0 0.0
  %771 = vmatpush1.msra.mxu0 0.0
  %772 = vmatprep.subr.mxu0 0.0
  %773 = vmatpush1.msra.mxu0 0.0
  %774 = vmatprep.subr.mxu0 0.0
  %775 = vmatpush1.msra.mxu0 0.0
  %776 = vmatprep.subr.mxu0 0.0
  %777 = vmatpush1.msra.mxu0 0.0
  %778 = vmatprep.subr.mxu0 0.0
  %779 = vmatpush1.msra.mxu0 0.0
  %780 = vmatprep.subr.mxu0 0.0
  %781 = vmatpush1.msra.mxu0 0.0
  %782 = vmatprep.subr.mxu0 0.0
  %783 = vmatpush1.msra.mxu0 0.0
  %784 = vmatprep.subr.mxu0 0.0
  %785 = vmatpush1.msra.mxu0 0.0
  %786 = vmatprep.subr.mxu0 0.0
  %787 = vmatpush1.msra.mxu0 0.0
  %788 = vmatprep.subr.mxu0 0.0
  %789 = vmatpush1.msra.mxu0 0.0
  %790 = vmatprep.subr.mxu0 0.0
  %791 = vmatpush1.msra.mxu0 0.0
  %792 = vmatprep.subr.mxu0 0.0
  %793 = vmatpush1.msra.mxu0 0.0
  %794 = vmatprep.subr.mxu0 0.0
  %795 = vmatpush1.msra.mxu0 0.0
  %796 = vmatprep.subr.mxu0 0.0
  %797 = vmatpush1.msra.mxu0 0.0
  %798 = vmatprep.subr.mxu0 0.0
  %799 = vmatpush1.msra.mxu0 0.0
  %800 = vmatprep.subr.mxu0 0.0
  %801 = vmatpush1.msra.mxu0 0.0
  %802 = vmatprep.subr.mxu0 0.0
  %803 = vmatpush1.msra.mxu0 0.0
  %804 = vmatprep.subr.mxu0 0.0
  %805 = vmatpush1.msra.mxu0 0.0
  %806 = vmatprep.mubr.f32.mxu0 0.0
  %807 = vmatmul.mubr.f32.gmra.mrb[0].mxu0 %v719
  %v808 = vpop.f32.mrb[0].mxu0
  %v809 = vadd.f32 0.0, %v808
  %v810 = vpop.f32.mrb[0].mxu0
  %811 = vmatprep.mubr.f32.mxu0 0.0
  %812 = vmatmul.mubr.f32.gmra.mrb[0].mxu0 %v722
  %v813 = vpop.f32.mrb[0].mxu0
  %v814 = vadd.f32 0.0, %v813
  %v815 = vpop.f32.mrb[0].mxu0
  %816 = vmatprep.mubr.f32.mxu0 0.0
  %817 = vmatmul.mubr.f32.gmra.mrb[0].mxu0 %v725
  %v818 = vpop.f32.mrb[0].mxu0
  %v819 = vadd.f32 0.0, %v818
  %v820 = vpop.f32.mrb[0].mxu0
  %821 = vmatprep.mubr.f32.mxu0 0.0
  %822 = vmatmul.mubr.f32.gmra.mrb[0].mxu0 %v728
  %v823 = vpop.f32.mrb[0].mxu0
  %v824 = vadd.f32 0.0, %v823
  %v825 = vpop.f32.mrb[0].mxu0
  %826 = vmatprep.mubr.f32.mxu0 0.0
  %827 = vmatmul.mubr.f32.gmra.mrb[0].mxu0 %v731
  %v828 = vpop.f32.mrb[0].mxu0
  %v829 = vadd.f32 0.0, %v828
  %v830 = vpop.f32.mrb[0].mxu0
  %831 = vmatprep.mubr.f32.mxu0 0.0
  %832 = vmatmul.mubr.f32.gmra.mrb[0].mxu0 %v734
  %v833 = vpop.f32.mrb[0].mxu0
  %v834 = vadd.f32 0.0, %v833
  %v835 = vpop.f32.mrb[0].mxu0
  %836 = vmatprep.mubr.f32.mxu0 0.0
  %837 = vmatmul.mubr.f32.gmra.mrb[0].mxu0 %v737
  %v838 = vpop.f32.mrb[0].mxu0
  %v839 = vadd.f32 0.0, %v838
  %v840 = vpop.f32.mrb[0].mxu0
  %841 = vmatprep.mubr.f32.mxu0 0.0
  %842 = vmatmul.mubr.f32.gmra.mrb[0].mxu0 %v740
  %v843 = vpop.f32.mrb[0].mxu0
  %v844 = vadd.f32 0.0, %v843
  %v845 = vpop.f32.mrb[0].mxu0
  %846 = vdwg.mxu0
  %v847 = vmul.f32 %v809, %v473
  %v848 = vmul.f32 %v814, %v473
  %v849 = vmul.f32 %v819, %v479
  %v850 = vmul.f32 %v824, %v479
  %v851 = vadd.f32 %v847, %v849
  %v852 = vadd.f32 %v848, %v850
  %v853 = vmul.f32 %v829, %v485
  %v854 = vmul.f32 %v834, %v485
  %v855 = vadd.f32 %v851, %v853
  %v856 = vadd.f32 %v852, %v854
  %v857 = vmul.f32 %v839, %v491
  %v858 = vmul.f32 %v844, %v491
  %v859 = vadd.f32 %v855, %v857
  %v860 = vadd.f32 %v856, %v858
  %v861 = vld [vmem:[%s6] sm:$0xff]
  %v862 = vld [vmem:[%s6 + $0x8] sm:$0xff]
  %v863 = vld [vmem:[%s6 + $0x10] sm:$0xff]
  %v864 = vld [vmem:[%s6 + $0x18] sm:$0xff]
  %v865 = vlaneseq
  %v866 = vshrl.u32 %v865, 7
  %v867 = vsub.s32 0, %v866
  %v868 = vrot.slane %v206, %v867
  %v870 = vsel %vm155, %v859, 0
  %v873 = vsel %vm155, %v860, 0
  %875 = vmatprep.subr.mxu0 0.0
  %876 = vmatpush1.msra.mxu0 %v861
  %877 = vmatprep.subr.mxu0 0.0
  %878 = vmatpush1.msra.mxu0 %v862
  %879 = vmatprep.subr.mxu0 0.0
  %880 = vmatpush1.msra.mxu0 %v863
  %881 = vmatprep.subr.mxu0 0.0
  %882 = vmatpush1.msra.mxu0 %v864
  %883 = vmatprep.subr.mxu0 0.0
  %884 = vmatpush1.msra.mxu0 0.0
  %885 = vmatprep.subr.mxu0 0.0
  %886 = vmatpush1.msra.mxu0 0.0
  %887 = vmatprep.subr.mxu0 0.0
  %888 = vmatpush1.msra.mxu0 0.0
  %889 = vmatprep.subr.mxu0 0.0
  %890 = vmatpush1.msra.mxu0 0.0
  %891 = vmatprep.subr.mxu0 0.0
  %892 = vmatpush1.msra.mxu0 0.0
  %893 = vmatprep.subr.mxu0 0.0
  %894 = vmatpush1.msra.mxu0 0.0
  %895 = vmatprep.subr.mxu0 0.0
  %896 = vmatpush1.msra.mxu0 0.0
  %897 = vmatprep.subr.mxu0 0.0
  %898 = vmatpush1.msra.mxu0 0.0
  %899 = vmatprep.subr.mxu0 0.0
  %900 = vmatpush1.msra.mxu0 0.0
  %901 = vmatprep.subr.mxu0 0.0
  %902 = vmatpush1.msra.mxu0 0.0
  %903 = vmatprep.subr.mxu0 0.0
  %904 = vmatpush1.msra.mxu0 0.0
  %905 = vmatprep.subr.mxu0 0.0
  %906 = vmatpush1.msra.mxu0 0.0
  %907 = vmatprep.subr.mxu0 0.0
  %908 = vmatpush1.msra.mxu0 0.0
  %909 = vmatprep.subr.mxu0 0.0
  %910 = vmatpush1.msra.mxu0 0.0
  %911 = vmatprep.subr.mxu0 0.0
  %912 = vmatpush1.msra.mxu0 0.0
  %913 = vmatprep.subr.mxu0 0.0
  %914 = vmatpush1.msra.mxu0 0.0
  %915 = vmatprep.subr.mxu0 0.0
  %916 = vmatpush1.msra.mxu0 0.0
  %917 = vmatprep.subr.mxu0 0.0
  %918 = vmatpush1.msra.mxu0 0.0
  %919 = vmatprep.subr.mxu0 0.0
  %920 = vmatpush1.msra.mxu0 0.0
  %921 = vmatprep.subr.mxu0 0.0
  %922 = vmatpush1.msra.mxu0 0.0
  %923 = vmatprep.subr.mxu0 0.0
  %924 = vmatpush1.msra.mxu0 0.0
  %925 = vmatprep.subr.mxu0 0.0
  %926 = vmatpush1.msra.mxu0 0.0
  %927 = vmatprep.subr.mxu0 0.0
  %928 = vmatpush1.msra.mxu0 0.0
  %929 = vmatprep.subr.mxu0 0.0
  %930 = vmatpush1.msra.mxu0 0.0
  %931 = vmatprep.subr.mxu0 0.0
  %932 = vmatpush1.msra.mxu0 0.0
  %933 = vmatprep.subr.mxu0 0.0
  %934 = vmatpush1.msra.mxu0 0.0
  %935 = vmatprep.subr.mxu0 0.0
  %936 = vmatpush1.msra.mxu0 0.0
  %937 = vmatprep.subr.mxu0 0.0
  %938 = vmatpush1.msra.mxu0 0.0
  %939 = vmatprep.mubr.f32.mxu0 0.0
  %940 = vmatmul.mubr.f32.gmra.mrb[0].mxu0 %v870
  %v941 = vpop.f32.mrb[0].mxu0
  %v942 = vadd.f32 %v868, %v941
  %v943 = vpop.f32.mrb[0].mxu0
  %944 = vmatprep.mubr.f32.mxu0 0.0
  %945 = vmatmul.mubr.f32.gmra.mrb[0].mxu0 %v873
  %v946 = vpop.f32.mrb[0].mxu0
  %v947 = vadd.f32 %v868, %v946
  %v948 = vpop.f32.mrb[0].mxu0
  %949 = vdwg.mxu0
  %v950 = vadd.f32 %v193, %v942
  %v951 = vadd.f32 %v194, %v947
  %v952 = vsel %vm155, %v950, 0.0
  %953 = vadd.xlane.f32.xlu0 %v952
  %v954 = vpop.xlane.xlu0 %953
  %v955 = vsel %vm155, %v951, 0.0
  %956 = vadd.xlane.f32.xlu0 %v955
  %v957 = vpop.xlane.xlu0 %956
  %v958 = vmul.f32 %v954, %v162
  %v959 = vmul.f32 %v957, %v162
  %v960 = vsub.f32 %v950, %v958
  %v961 = vsub.f32 %v951, %v959
  %v962 = vmul.f32 %v960, %v960
  %v963 = vmul.f32 %v961, %v961
  %v964 = vsel %vm155, %v962, 0.0
  %965 = vadd.xlane.f32.xlu0 %v964
  %v966 = vpop.xlane.xlu0 %965
  %v967 = vsel %vm155, %v963, 0.0
  %968 = vadd.xlane.f32.xlu0 %v967
  %v969 = vpop.xlane.xlu0 %968
  %v970 = vmul.f32 %v966, %v162
  %v971 = vmul.f32 %v969, %v162
  %v972 = vadd.f32 %v970, 1e-12
  %v973 = vadd.f32 %v971, 1e-12
  %v974 = vrsqrt.pop %v972
  %v975 = vrsqrt.pop %v973
  %v976 = vmul.f32 %v960, %v974
  %v977 = vmul.f32 %v961, %v975
  %v978 = vlaneseq
  %v979 = vshrl.u32 %v978, 7
  %v980 = vsub.s32 0, %v979
  %v981 = vrot.slane %v207, %v980
  %v982 = vmul.f32 %v976, %v981
  %v983 = vmul.f32 %v977, %v981
  %v984 = vlaneseq
  %v985 = vshrl.u32 %v984, 7
  %v986 = vsub.s32 0, %v985
  %v987 = vrot.slane %v208, %v986
  %v988 = vadd.f32 %v982, %v987
  %v989 = vadd.f32 %v983, %v987
  %v990 = vld [vmem:[%s7] sm:$0xff]
  %v991 = vld [vmem:[%s7 + $0x8] sm:$0xff]
  %v992 = vld [vmem:[%s7 + $0x10] sm:$0xff]
  %v993 = vld [vmem:[%s7 + $0x18] sm:$0xff]
  %v994 = vlaneseq
  %v995 = vshrl.u32 %v994, 7
  %v996 = vsub.s32 0, %v995
  %v997 = vrot.slane %v209, %v996
  %v999 = vsel %vm155, %v988, 0
  %v1002 = vsel %vm155, %v989, 0
  %1004 = vmatprep.subr.mxu0 0.0
  %1005 = vmatpush1.msra.mxu0 %v990
  %1006 = vmatprep.subr.mxu0 0.0
  %1007 = vmatpush1.msra.mxu0 %v991
  %1008 = vmatprep.subr.mxu0 0.0
  %1009 = vmatpush1.msra.mxu0 %v992
  %1010 = vmatprep.subr.mxu0 0.0
  %1011 = vmatpush1.msra.mxu0 %v993
  %1012 = vmatprep.subr.mxu0 0.0
  %1013 = vmatpush1.msra.mxu0 0.0
  %1014 = vmatprep.subr.mxu0 0.0
  %1015 = vmatpush1.msra.mxu0 0.0
  %1016 = vmatprep.subr.mxu0 0.0
  %1017 = vmatpush1.msra.mxu0 0.0
  %1018 = vmatprep.subr.mxu0 0.0
  %1019 = vmatpush1.msra.mxu0 0.0
  %1020 = vmatprep.subr.mxu0 0.0
  %1021 = vmatpush1.msra.mxu0 0.0
  %1022 = vmatprep.subr.mxu0 0.0
  %1023 = vmatpush1.msra.mxu0 0.0
  %1024 = vmatprep.subr.mxu0 0.0
  %1025 = vmatpush1.msra.mxu0 0.0
  %1026 = vmatprep.subr.mxu0 0.0
  %1027 = vmatpush1.msra.mxu0 0.0
  %1028 = vmatprep.subr.mxu0 0.0
  %1029 = vmatpush1.msra.mxu0 0.0
  %1030 = vmatprep.subr.mxu0 0.0
  %1031 = vmatpush1.msra.mxu0 0.0
  %1032 = vmatprep.subr.mxu0 0.0
  %1033 = vmatpush1.msra.mxu0 0.0
  %1034 = vmatprep.subr.mxu0 0.0
  %1035 = vmatpush1.msra.mxu0 0.0
  %1036 = vmatprep.subr.mxu0 0.0
  %1037 = vmatpush1.msra.mxu0 0.0
  %1038 = vmatprep.subr.mxu0 0.0
  %1039 = vmatpush1.msra.mxu0 0.0
  %1040 = vmatprep.subr.mxu0 0.0
  %1041 = vmatpush1.msra.mxu0 0.0
  %1042 = vmatprep.subr.mxu0 0.0
  %1043 = vmatpush1.msra.mxu0 0.0
  %1044 = vmatprep.subr.mxu0 0.0
  %1045 = vmatpush1.msra.mxu0 0.0
  %1046 = vmatprep.subr.mxu0 0.0
  %1047 = vmatpush1.msra.mxu0 0.0
  %1048 = vmatprep.subr.mxu0 0.0
  %1049 = vmatpush1.msra.mxu0 0.0
  %1050 = vmatprep.subr.mxu0 0.0
  %1051 = vmatpush1.msra.mxu0 0.0
  %1052 = vmatprep.subr.mxu0 0.0
  %1053 = vmatpush1.msra.mxu0 0.0
  %1054 = vmatprep.subr.mxu0 0.0
  %1055 = vmatpush1.msra.mxu0 0.0
  %1056 = vmatprep.subr.mxu0 0.0
  %1057 = vmatpush1.msra.mxu0 0.0
  %1058 = vmatprep.subr.mxu0 0.0
  %1059 = vmatpush1.msra.mxu0 0.0
  %1060 = vmatprep.subr.mxu0 0.0
  %1061 = vmatpush1.msra.mxu0 0.0
  %1062 = vmatprep.subr.mxu0 0.0
  %1063 = vmatpush1.msra.mxu0 0.0
  %1064 = vmatprep.subr.mxu0 0.0
  %1065 = vmatpush1.msra.mxu0 0.0
  %1066 = vmatprep.subr.mxu0 0.0
  %1067 = vmatpush1.msra.mxu0 0.0
  %1068 = vmatprep.mubr.f32.mxu0 0.0
  %1069 = vmatmul.mubr.f32.gmra.mrb[0].mxu0 %v999
  %v1070 = vpop.f32.mrb[0].mxu0
  %v1071 = vadd.f32 %v997, %v1070
  %v1072 = vpop.f32.mrb[0].mxu0
  %1073 = vmatprep.mubr.f32.mxu0 0.0
  %1074 = vmatmul.mubr.f32.gmra.mrb[0].mxu0 %v1002
  %v1075 = vpop.f32.mrb[0].mxu0
  %v1076 = vadd.f32 %v997, %v1075
  %v1077 = vpop.f32.mrb[0].mxu0
  %1078 = vdwg.mxu0
  %v1079 = vmul.f32 %v1071, %v1071
  %v1080 = vmul.f32 %v1076, %v1076
  %v1081 = vmul.f32 %v1071, %v1079
  %v1082 = vmul.f32 %v1076, %v1080
  %v1083 = vmul.f32 %v1081, 0.044715
  %v1084 = vmul.f32 %v1082, 0.044715
  %v1085 = vadd.f32 %v1071, %v1083
  %v1086 = vadd.f32 %v1076, %v1084
  %v1087 = vmul.f32 %v1085, 0.7978846
  %v1088 = vmul.f32 %v1086, 0.7978846
  %v1089 = vtanh.pop %v1087
  %v1090 = vtanh.pop %v1088
  %v1091 = vadd.f32 %v1089, 1.0
  %v1092 = vadd.f32 %v1090, 1.0
  %v1093 = vmul.f32 %v1091, 0.5
  %v1094 = vmul.f32 %v1092, 0.5
  %v1095 = vmul.f32 %v1071, %v1093
  %v1096 = vmul.f32 %v1076, %v1094
  %v1097 = vld [vmem:[%s8] sm:$0xff]
  %v1098 = vld [vmem:[%s8 + $0x8] sm:$0xff]
  %v1099 = vld [vmem:[%s8 + $0x10] sm:$0xff]
  %v1100 = vld [vmem:[%s8 + $0x18] sm:$0xff]
  %v1101 = vld [vmem:[%s8 + $0x20] sm:$0xff]
  %v1102 = vld [vmem:[%s8 + $0x28] sm:$0xff]
  %v1103 = vld [vmem:[%s8 + $0x30] sm:$0xff]
  %v1104 = vld [vmem:[%s8 + $0x38] sm:$0xff]
  %v1105 = vld [vmem:[%s8 + $0x40] sm:$0xff]
  %v1106 = vld [vmem:[%s8 + $0x48] sm:$0xff]
  %v1107 = vld [vmem:[%s8 + $0x50] sm:$0xff]
  %v1108 = vld [vmem:[%s8 + $0x58] sm:$0xff]
  %v1109 = vld [vmem:[%s8 + $0x60] sm:$0xff]
  %v1110 = vld [vmem:[%s8 + $0x68] sm:$0xff]
  %v1111 = vld [vmem:[%s8 + $0x70] sm:$0xff]
  %v1112 = vld [vmem:[%s8 + $0x78] sm:$0xff]
  %v1113 = vlaneseq
  %v1114 = vshrl.u32 %v1113, 7
  %v1115 = vsub.s32 0, %v1114
  %v1116 = vrot.slane %v210, %v1115
  %1117 = vmatprep.subr.mxu0 0.0
  %1118 = vmatpush1.msra.mxu0 %v1097
  %1119 = vmatprep.subr.mxu0 0.0
  %1120 = vmatpush1.msra.mxu0 %v1098
  %1121 = vmatprep.subr.mxu0 0.0
  %1122 = vmatpush1.msra.mxu0 %v1099
  %1123 = vmatprep.subr.mxu0 0.0
  %1124 = vmatpush1.msra.mxu0 %v1100
  %1125 = vmatprep.subr.mxu0 0.0
  %1126 = vmatpush1.msra.mxu0 %v1101
  %1127 = vmatprep.subr.mxu0 0.0
  %1128 = vmatpush1.msra.mxu0 %v1102
  %1129 = vmatprep.subr.mxu0 0.0
  %1130 = vmatpush1.msra.mxu0 %v1103
  %1131 = vmatprep.subr.mxu0 0.0
  %1132 = vmatpush1.msra.mxu0 %v1104
  %1133 = vmatprep.subr.mxu0 0.0
  %1134 = vmatpush1.msra.mxu0 %v1105
  %1135 = vmatprep.subr.mxu0 0.0
  %1136 = vmatpush1.msra.mxu0 %v1106
  %1137 = vmatprep.subr.mxu0 0.0
  %1138 = vmatpush1.msra.mxu0 %v1107
  %1139 = vmatprep.subr.mxu0 0.0
  %1140 = vmatpush1.msra.mxu0 %v1108
  %1141 = vmatprep.subr.mxu0 0.0
  %1142 = vmatpush1.msra.mxu0 %v1109
  %1143 = vmatprep.subr.mxu0 0.0
  %1144 = vmatpush1.msra.mxu0 %v1110
  %1145 = vmatprep.subr.mxu0 0.0
  %1146 = vmatpush1.msra.mxu0 %v1111
  %1147 = vmatprep.subr.mxu0 0.0
  %1148 = vmatpush1.msra.mxu0 %v1112
  %1149 = vmatprep.subr.mxu0 0.0
  %1150 = vmatpush1.msra.mxu0 0.0
  %1151 = vmatprep.subr.mxu0 0.0
  %1152 = vmatpush1.msra.mxu0 0.0
  %1153 = vmatprep.subr.mxu0 0.0
  %1154 = vmatpush1.msra.mxu0 0.0
  %1155 = vmatprep.subr.mxu0 0.0
  %1156 = vmatpush1.msra.mxu0 0.0
  %1157 = vmatprep.subr.mxu0 0.0
  %1158 = vmatpush1.msra.mxu0 0.0
  %1159 = vmatprep.subr.mxu0 0.0
  %1160 = vmatpush1.msra.mxu0 0.0
  %1161 = vmatprep.subr.mxu0 0.0
  %1162 = vmatpush1.msra.mxu0 0.0
  %1163 = vmatprep.subr.mxu0 0.0
  %1164 = vmatpush1.msra.mxu0 0.0
  %1165 = vmatprep.subr.mxu0 0.0
  %1166 = vmatpush1.msra.mxu0 0.0
  %1167 = vmatprep.subr.mxu0 0.0
  %1168 = vmatpush1.msra.mxu0 0.0
  %1169 = vmatprep.subr.mxu0 0.0
  %1170 = vmatpush1.msra.mxu0 0.0
  %1171 = vmatprep.subr.mxu0 0.0
  %1172 = vmatpush1.msra.mxu0 0.0
  %1173 = vmatprep.subr.mxu0 0.0
  %1174 = vmatpush1.msra.mxu0 0.0
  %1175 = vmatprep.subr.mxu0 0.0
  %1176 = vmatpush1.msra.mxu0 0.0
  %1177 = vmatprep.subr.mxu0 0.0
  %1178 = vmatpush1.msra.mxu0 0.0
  %1179 = vmatprep.subr.mxu0 0.0
  %1180 = vmatpush1.msra.mxu0 0.0
  %1181 = vmatprep.mubr.f32.mxu0 0.0
  %1182 = vmatmul.mubr.f32.gmra.mrb[0].mxu0 %v1095
  %v1183 = vpop.f32.mrb[0].mxu0
  %v1184 = vadd.f32 %v1116, %v1183
  %v1185 = vpop.f32.mrb[0].mxu0
  %1186 = vmatprep.mubr.f32.mxu0 0.0
  %1187 = vmatmul.mubr.f32.gmra.mrb[0].mxu0 %v1096
  %v1188 = vpop.f32.mrb[0].mxu0
  %v1189 = vadd.f32 %v1116, %v1188
  %v1190 = vpop.f32.mrb[0].mxu0
  %1191 = vdwg.mxu0
  %v1192 = vadd.f32 %v988, %v1184
  %v1193 = vadd.f32 %v989, %v1189
  %v1194 = vsel %vm155, %v1192, 0.0
  %1195 = vadd.xlane.f32.xlu0 %v1194
  %v1196 = vpop.xlane.xlu0 %1195
  %v1197 = vsel %vm155, %v1193, 0.0
  %1198 = vadd.xlane.f32.xlu0 %v1197
  %v1199 = vpop.xlane.xlu0 %1198
  %v1200 = vmul.f32 %v1196, %v162
  %v1201 = vmul.f32 %v1199, %v162
  %v1202 = vsub.f32 %v1192, %v1200
  %v1203 = vsub.f32 %v1193, %v1201
  %v1204 = vmul.f32 %v1202, %v1202
  %v1205 = vmul.f32 %v1203, %v1203
  %v1206 = vsel %vm155, %v1204, 0.0
  %1207 = vadd.xlane.f32.xlu0 %v1206
  %v1208 = vpop.xlane.xlu0 %1207
  %v1209 = vsel %vm155, %v1205, 0.0
  %1210 = vadd.xlane.f32.xlu0 %v1209
  %v1211 = vpop.xlane.xlu0 %1210
  %v1212 = vmul.f32 %v1208, %v162
  %v1213 = vmul.f32 %v1211, %v162
  %v1214 = vadd.f32 %v1212, 1e-12
  %v1215 = vadd.f32 %v1213, 1e-12
  %v1216 = vrsqrt.pop %v1214
  %v1217 = vrsqrt.pop %v1215
  %v1218 = vmul.f32 %v1202, %v1216
  %v1219 = vmul.f32 %v1203, %v1217
  %v1220 = vlaneseq
  %v1221 = vshrl.u32 %v1220, 7
  %v1222 = vsub.s32 0, %v1221
  %v1223 = vrot.slane %v211, %v1222
  %v1224 = vmul.f32 %v1218, %v1223
  %v1225 = vmul.f32 %v1219, %v1223
  %v1226 = vlaneseq
  %v1227 = vshrl.u32 %v1226, 7
  %v1228 = vsub.s32 0, %v1227
  %v1229 = vrot.slane %v212, %v1228
  %v1230 = vadd.f32 %v1224, %v1229
  %v1231 = vadd.f32 %v1225, %v1229
  %s1232 = scalar_lea.vmem %s9, 16
  %v1233 = vld [vmem:[%s1232] sm:$0x1]
  %v1234 = vld [vmem:[%s1232 + $0x1] sm:$0x1]
  %v1235 = vld [vmem:[%s1232 + $0x2] sm:$0x1]
  %v1236 = vld [vmem:[%s1232 + $0x3] sm:$0x1]
  %v1237 = vld [vmem:[%s1232 + $0x4] sm:$0x1]
  %v1238 = vld [vmem:[%s1232 + $0x5] sm:$0x1]
  %v1239 = vld [vmem:[%s1232 + $0x6] sm:$0x1]
  %v1240 = vld [vmem:[%s1232 + $0x7] sm:$0x1]
  %v1241 = vld [vmem:[%s1232 + $0x8] sm:$0x1]
  %v1242 = vld [vmem:[%s1232 + $0x9] sm:$0x1]
  %s1243 = scalar_lea.vmem %s5, 96
  %v1244 = vld [vmem:[%s1243] sm:$0xff]
  %v1245 = vld [vmem:[%s1243 + $0x8] sm:$0xff]
  %v1246 = vld [vmem:[%s1243 + $0x10] sm:$0xff]
  %v1247 = vld [vmem:[%s1243 + $0x18] sm:$0xff]
  %v1248 = vlaneseq
  %v1249 = vshrl.u32 %v1248, 7
  %v1250 = vsub.s32 0, %v1249
  %v1251 = vrot.slane %v1233, %v1250
  %v1253 = vsel %vm155, %v1230, 0
  %v1256 = vsel %vm155, %v1231, 0
  %1258 = vmatprep.subr.mxu0 0.0
  %1259 = vmatpush1.msra.mxu0 %v1244
  %1260 = vmatprep.subr.mxu0 0.0
  %1261 = vmatpush1.msra.mxu0 %v1245
  %1262 = vmatprep.subr.mxu0 0.0
  %1263 = vmatpush1.msra.mxu0 %v1246
  %1264 = vmatprep.subr.mxu0 0.0
  %1265 = vmatpush1.msra.mxu0 %v1247
  %1266 = vmatprep.subr.mxu0 0.0
  %1267 = vmatpush1.msra.mxu0 0.0
  %1268 = vmatprep.subr.mxu0 0.0
  %1269 = vmatpush1.msra.mxu0 0.0
  %1270 = vmatprep.subr.mxu0 0.0
  %1271 = vmatpush1.msra.mxu0 0.0
  %1272 = vmatprep.subr.mxu0 0.0
  %1273 = vmatpush1.msra.mxu0 0.0
  %1274 = vmatprep.subr.mxu0 0.0
  %1275 = vmatpush1.msra.mxu0 0.0
  %1276 = vmatprep.subr.mxu0 0.0
  %1277 = vmatpush1.msra.mxu0 0.0
  %1278 = vmatprep.subr.mxu0 0.0
  %1279 = vmatpush1.msra.mxu0 0.0
  %1280 = vmatprep.subr.mxu0 0.0
  %1281 = vmatpush1.msra.mxu0 0.0
  %1282 = vmatprep.subr.mxu0 0.0
  %1283 = vmatpush1.msra.mxu0 0.0
  %1284 = vmatprep.subr.mxu0 0.0
  %1285 = vmatpush1.msra.mxu0 0.0
  %1286 = vmatprep.subr.mxu0 0.0
  %1287 = vmatpush1.msra.mxu0 0.0
  %1288 = vmatprep.subr.mxu0 0.0
  %1289 = vmatpush1.msra.mxu0 0.0
  %1290 = vmatprep.subr.mxu0 0.0
  %1291 = vmatpush1.msra.mxu0 0.0
  %1292 = vmatprep.subr.mxu0 0.0
  %1293 = vmatpush1.msra.mxu0 0.0
  %1294 = vmatprep.subr.mxu0 0.0
  %1295 = vmatpush1.msra.mxu0 0.0
  %1296 = vmatprep.subr.mxu0 0.0
  %1297 = vmatpush1.msra.mxu0 0.0
  %1298 = vmatprep.subr.mxu0 0.0
  %1299 = vmatpush1.msra.mxu0 0.0
  %1300 = vmatprep.subr.mxu0 0.0
  %1301 = vmatpush1.msra.mxu0 0.0
  %1302 = vmatprep.subr.mxu0 0.0
  %1303 = vmatpush1.msra.mxu0 0.0
  %1304 = vmatprep.subr.mxu0 0.0
  %1305 = vmatpush1.msra.mxu0 0.0
  %1306 = vmatprep.subr.mxu0 0.0
  %1307 = vmatpush1.msra.mxu0 0.0
  %1308 = vmatprep.subr.mxu0 0.0
  %1309 = vmatpush1.msra.mxu0 0.0
  %1310 = vmatprep.subr.mxu0 0.0
  %1311 = vmatpush1.msra.mxu0 0.0
  %1312 = vmatprep.subr.mxu0 0.0
  %1313 = vmatpush1.msra.mxu0 0.0
  %1314 = vmatprep.subr.mxu0 0.0
  %1315 = vmatpush1.msra.mxu0 0.0
  %1316 = vmatprep.subr.mxu0 0.0
  %1317 = vmatpush1.msra.mxu0 0.0
  %1318 = vmatprep.subr.mxu0 0.0
  %1319 = vmatpush1.msra.mxu0 0.0
  %1320 = vmatprep.subr.mxu0 0.0
  %1321 = vmatpush1.msra.mxu0 0.0
  %1322 = vmatprep.mubr.f32.mxu0 0.0
  %1323 = vmatmul.mubr.f32.gmra.mrb[0].mxu0 %v1253
  %v1324 = vpop.f32.mrb[0].mxu0
  %v1325 = vadd.f32 %v1251, %v1324
  %v1326 = vpop.f32.mrb[0].mxu0
  %1327 = vmatprep.mubr.f32.mxu0 0.0
  %1328 = vmatmul.mubr.f32.gmra.mrb[0].mxu0 %v1256
  %v1329 = vpop.f32.mrb[0].mxu0
  %v1330 = vadd.f32 %v1251, %v1329
  %v1331 = vpop.f32.mrb[0].mxu0
  %1332 = vdwg.mxu0
  %s1333 = scalar_lea.vmem %s5, 128
  %v1334 = vld [vmem:[%s1333] sm:$0xff]
  %v1335 = vld [vmem:[%s1333 + $0x8] sm:$0xff]
  %v1336 = vld [vmem:[%s1333 + $0x10] sm:$0xff]
  %v1337 = vld [vmem:[%s1333 + $0x18] sm:$0xff]
  %v1338 = vlaneseq
  %v1339 = vshrl.u32 %v1338, 7
  %v1340 = vsub.s32 0, %v1339
  %v1341 = vrot.slane %v1234, %v1340
  %1342 = vmatprep.subr.mxu0 0.0
  %1343 = vmatpush1.msra.mxu0 %v1334
  %1344 = vmatprep.subr.mxu0 0.0
  %1345 = vmatpush1.msra.mxu0 %v1335
  %1346 = vmatprep.subr.mxu0 0.0
  %1347 = vmatpush1.msra.mxu0 %v1336
  %1348 = vmatprep.subr.mxu0 0.0
  %1349 = vmatpush1.msra.mxu0 %v1337
  %1350 = vmatprep.subr.mxu0 0.0
  %1351 = vmatpush1.msra.mxu0 0.0
  %1352 = vmatprep.subr.mxu0 0.0
  %1353 = vmatpush1.msra.mxu0 0.0
  %1354 = vmatprep.subr.mxu0 0.0
  %1355 = vmatpush1.msra.mxu0 0.0
  %1356 = vmatprep.subr.mxu0 0.0
  %1357 = vmatpush1.msra.mxu0 0.0
  %1358 = vmatprep.subr.mxu0 0.0
  %1359 = vmatpush1.msra.mxu0 0.0
  %1360 = vmatprep.subr.mxu0 0.0
  %1361 = vmatpush1.msra.mxu0 0.0
  %1362 = vmatprep.subr.mxu0 0.0
  %1363 = vmatpush1.msra.mxu0 0.0
  %1364 = vmatprep.subr.mxu0 0.0
  %1365 = vmatpush1.msra.mxu0 0.0
  %1366 = vmatprep.subr.mxu0 0.0
  %1367 = vmatpush1.msra.mxu0 0.0
  %1368 = vmatprep.subr.mxu0 0.0
  %1369 = vmatpush1.msra.mxu0 0.0
  %1370 = vmatprep.subr.mxu0 0.0
  %1371 = vmatpush1.msra.mxu0 0.0
  %1372 = vmatprep.subr.mxu0 0.0
  %1373 = vmatpush1.msra.mxu0 0.0
  %1374 = vmatprep.subr.mxu0 0.0
  %1375 = vmatpush1.msra.mxu0 0.0
  %1376 = vmatprep.subr.mxu0 0.0
  %1377 = vmatpush1.msra.mxu0 0.0
  %1378 = vmatprep.subr.mxu0 0.0
  %1379 = vmatpush1.msra.mxu0 0.0
  %1380 = vmatprep.subr.mxu0 0.0
  %1381 = vmatpush1.msra.mxu0 0.0
  %1382 = vmatprep.subr.mxu0 0.0
  %1383 = vmatpush1.msra.mxu0 0.0
  %1384 = vmatprep.subr.mxu0 0.0
  %1385 = vmatpush1.msra.mxu0 0.0
  %1386 = vmatprep.subr.mxu0 0.0
  %1387 = vmatpush1.msra.mxu0 0.0
  %1388 = vmatprep.subr.mxu0 0.0
  %1389 = vmatpush1.msra.mxu0 0.0
  %1390 = vmatprep.subr.mxu0 0.0
  %1391 = vmatpush1.msra.mxu0 0.0
  %1392 = vmatprep.subr.mxu0 0.0
  %1393 = vmatpush1.msra.mxu0 0.0
  %1394 = vmatprep.subr.mxu0 0.0
  %1395 = vmatpush1.msra.mxu0 0.0
  %1396 = vmatprep.subr.mxu0 0.0
  %1397 = vmatpush1.msra.mxu0 0.0
  %1398 = vmatprep.subr.mxu0 0.0
  %1399 = vmatpush1.msra.mxu0 0.0
  %1400 = vmatprep.subr.mxu0 0.0
  %1401 = vmatpush1.msra.mxu0 0.0
  %1402 = vmatprep.subr.mxu0 0.0
  %1403 = vmatpush1.msra.mxu0 0.0
  %1404 = vmatprep.subr.mxu0 0.0
  %1405 = vmatpush1.msra.mxu0 0.0
  %1406 = vmatprep.mubr.f32.mxu0 0.0
  %1407 = vmatmul.mubr.f32.gmra.mrb[0].mxu0 %v1253
  %v1408 = vpop.f32.mrb[0].mxu0
  %v1409 = vadd.f32 %v1341, %v1408
  %v1410 = vpop.f32.mrb[0].mxu0
  %1411 = vmatprep.mubr.f32.mxu0 0.0
  %1412 = vmatmul.mubr.f32.gmra.mrb[0].mxu0 %v1256
  %v1413 = vpop.f32.mrb[0].mxu0
  %v1414 = vadd.f32 %v1341, %v1413
  %v1415 = vpop.f32.mrb[0].mxu0
  %1416 = vdwg.mxu0
  %s1417 = scalar_lea.vmem %s5, 160
  %v1418 = vld [vmem:[%s1417] sm:$0xff]
  %v1419 = vld [vmem:[%s1417 + $0x8] sm:$0xff]
  %v1420 = vld [vmem:[%s1417 + $0x10] sm:$0xff]
  %v1421 = vld [vmem:[%s1417 + $0x18] sm:$0xff]
  %v1422 = vlaneseq
  %v1423 = vshrl.u32 %v1422, 7
  %v1424 = vsub.s32 0, %v1423
  %v1425 = vrot.slane %v1235, %v1424
  %1426 = vmatprep.subr.mxu0 0.0
  %1427 = vmatpush1.msra.mxu0 %v1418
  %1428 = vmatprep.subr.mxu0 0.0
  %1429 = vmatpush1.msra.mxu0 %v1419
  %1430 = vmatprep.subr.mxu0 0.0
  %1431 = vmatpush1.msra.mxu0 %v1420
  %1432 = vmatprep.subr.mxu0 0.0
  %1433 = vmatpush1.msra.mxu0 %v1421
  %1434 = vmatprep.subr.mxu0 0.0
  %1435 = vmatpush1.msra.mxu0 0.0
  %1436 = vmatprep.subr.mxu0 0.0
  %1437 = vmatpush1.msra.mxu0 0.0
  %1438 = vmatprep.subr.mxu0 0.0
  %1439 = vmatpush1.msra.mxu0 0.0
  %1440 = vmatprep.subr.mxu0 0.0
  %1441 = vmatpush1.msra.mxu0 0.0
  %1442 = vmatprep.subr.mxu0 0.0
  %1443 = vmatpush1.msra.mxu0 0.0
  %1444 = vmatprep.subr.mxu0 0.0
  %1445 = vmatpush1.msra.mxu0 0.0
  %1446 = vmatprep.subr.mxu0 0.0
  %1447 = vmatpush1.msra.mxu0 0.0
  %1448 = vmatprep.subr.mxu0 0.0
  %1449 = vmatpush1.msra.mxu0 0.0
  %1450 = vmatprep.subr.mxu0 0.0
  %1451 = vmatpush1.msra.mxu0 0.0
  %1452 = vmatprep.subr.mxu0 0.0
  %1453 = vmatpush1.msra.mxu0 0.0
  %1454 = vmatprep.subr.mxu0 0.0
  %1455 = vmatpush1.msra.mxu0 0.0
  %1456 = vmatprep.subr.mxu0 0.0
  %1457 = vmatpush1.msra.mxu0 0.0
  %1458 = vmatprep.subr.mxu0 0.0
  %1459 = vmatpush1.msra.mxu0 0.0
  %1460 = vmatprep.subr.mxu0 0.0
  %1461 = vmatpush1.msra.mxu0 0.0
  %1462 = vmatprep.subr.mxu0 0.0
  %1463 = vmatpush1.msra.mxu0 0.0
  %1464 = vmatprep.subr.mxu0 0.0
  %1465 = vmatpush1.msra.mxu0 0.0
  %1466 = vmatprep.subr.mxu0 0.0
  %1467 = vmatpush1.msra.mxu0 0.0
  %1468 = vmatprep.subr.mxu0 0.0
  %1469 = vmatpush1.msra.mxu0 0.0
  %1470 = vmatprep.subr.mxu0 0.0
  %1471 = vmatpush1.msra.mxu0 0.0
  %1472 = vmatprep.subr.mxu0 0.0
  %1473 = vmatpush1.msra.mxu0 0.0
  %1474 = vmatprep.subr.mxu0 0.0
  %1475 = vmatpush1.msra.mxu0 0.0
  %1476 = vmatprep.subr.mxu0 0.0
  %1477 = vmatpush1.msra.mxu0 0.0
  %1478 = vmatprep.subr.mxu0 0.0
  %1479 = vmatpush1.msra.mxu0 0.0
  %1480 = vmatprep.subr.mxu0 0.0
  %1481 = vmatpush1.msra.mxu0 0.0
  %1482 = vmatprep.subr.mxu0 0.0
  %1483 = vmatpush1.msra.mxu0 0.0
  %1484 = vmatprep.subr.mxu0 0.0
  %1485 = vmatpush1.msra.mxu0 0.0
  %1486 = vmatprep.subr.mxu0 0.0
  %1487 = vmatpush1.msra.mxu0 0.0
  %1488 = vmatprep.subr.mxu0 0.0
  %1489 = vmatpush1.msra.mxu0 0.0
  %1490 = vmatprep.mubr.f32.mxu0 0.0
  %1491 = vmatmul.mubr.f32.gmra.mrb[0].mxu0 %v1253
  %v1492 = vpop.f32.mrb[0].mxu0
  %v1493 = vadd.f32 %v1425, %v1492
  %v1494 = vpop.f32.mrb[0].mxu0
  %1495 = vmatprep.mubr.f32.mxu0 0.0
  %1496 = vmatmul.mubr.f32.gmra.mrb[0].mxu0 %v1256
  %v1497 = vpop.f32.mrb[0].mxu0
  %v1498 = vadd.f32 %v1425, %v1497
  %v1499 = vpop.f32.mrb[0].mxu0
  %1500 = vdwg.mxu0
  %v1501 = vmul.f32 %v1325, %v473
  %v1502 = vmul.f32 %v1330, %v473
  %v1503 = vmul.f32 %v1325, %v479
  %v1504 = vmul.f32 %v1330, %v479
  %v1505 = vmul.f32 %v1325, %v485
  %v1506 = vmul.f32 %v1330, %v485
  %v1507 = vmul.f32 %v1325, %v491
  %v1508 = vmul.f32 %v1330, %v491
  %v1510 = vsel %vm155, %v1501, 0
  %v1513 = vsel %vm155, %v1502, 0
  %v1516 = vsel %vm155, %v1503, 0
  %v1519 = vsel %vm155, %v1504, 0
  %v1522 = vsel %vm155, %v1505, 0
  %v1525 = vsel %vm155, %v1506, 0
  %v1528 = vsel %vm155, %v1507, 0
  %v1531 = vsel %vm155, %v1508, 0
  %v1534 = vsel %vm155, %v1409, 0
  %v1537 = vsel %vm155, %v1414, 0
  %1539 = vmatprep.subr.mxu0 0.0
  %1540 = vmatpush1.xpose.msra.mxu0 %v1534
  %1541 = vmatprep.subr.mxu0 0.0
  %1542 = vmatpush1.xpose.msra.mxu0 %v1537
  %1543 = vmatprep.subr.mxu0 0.0
  %1544 = vmatpush1.xpose.msra.mxu0 %v1534
  %1545 = vmatprep.subr.mxu0 0.0
  %1546 = vmatpush1.xpose.msra.mxu0 %v1537
  %1547 = vmatprep.subr.mxu0 0.0
  %1548 = vmatpush1.xpose.msra.mxu0 %v1534
  %1549 = vmatprep.subr.mxu0 0.0
  %1550 = vmatpush1.xpose.msra.mxu0 %v1537
  %1551 = vmatprep.subr.mxu0 0.0
  %1552 = vmatpush1.xpose.msra.mxu0 %v1534
  %1553 = vmatprep.subr.mxu0 0.0
  %1554 = vmatpush1.xpose.msra.mxu0 %v1537
  %1555 = vmatprep.subr.mxu0 0.0
  %1556 = vmatpush1.xpose.msra.mxu0 0.0
  %1557 = vmatprep.subr.mxu0 0.0
  %1558 = vmatpush1.xpose.msra.mxu0 0.0
  %1559 = vmatprep.subr.mxu0 0.0
  %1560 = vmatpush1.xpose.msra.mxu0 0.0
  %1561 = vmatprep.subr.mxu0 0.0
  %1562 = vmatpush1.xpose.msra.mxu0 0.0
  %1563 = vmatprep.subr.mxu0 0.0
  %1564 = vmatpush1.xpose.msra.mxu0 0.0
  %1565 = vmatprep.subr.mxu0 0.0
  %1566 = vmatpush1.xpose.msra.mxu0 0.0
  %1567 = vmatprep.subr.mxu0 0.0
  %1568 = vmatpush1.xpose.msra.mxu0 0.0
  %1569 = vmatprep.subr.mxu0 0.0
  %1570 = vmatpush1.xpose.msra.mxu0 0.0
  %1571 = vmatprep.subr.mxu0 0.0
  %1572 = vmatpush1.xpose.msra.mxu0 0.0
  %1573 = vmatprep.subr.mxu0 0.0
  %1574 = vmatpush1.xpose.msra.mxu0 0.0
  %1575 = vmatprep.subr.mxu0 0.0
  %1576 = vmatpush1.xpose.msra.mxu0 0.0
  %1577 = vmatprep.subr.mxu0 0.0
  %1578 = vmatpush1.xpose.msra.mxu0 0.0
  %1579 = vmatprep.subr.mxu0 0.0
  %1580 = vmatpush1.xpose.msra.mxu0 0.0
  %1581 = vmatprep.subr.mxu0 0.0
  %1582 = vmatpush1.xpose.msra.mxu0 0.0
  %1583 = vmatprep.subr.mxu0 0.0
  %1584 = vmatpush1.xpose.msra.mxu0 0.0
  %1585 = vmatprep.subr.mxu0 0.0
  %1586 = vmatpush1.xpose.msra.mxu0 0.0
  %1587 = vmatprep.subr.mxu0 0.0
  %1588 = vmatpush1.xpose.msra.mxu0 0.0
  %1589 = vmatprep.subr.mxu0 0.0
  %1590 = vmatpush1.xpose.msra.mxu0 0.0
  %1591 = vmatprep.subr.mxu0 0.0
  %1592 = vmatpush1.xpose.msra.mxu0 0.0
  %1593 = vmatprep.subr.mxu0 0.0
  %1594 = vmatpush1.xpose.msra.mxu0 0.0
  %1595 = vmatprep.subr.mxu0 0.0
  %1596 = vmatpush1.xpose.msra.mxu0 0.0
  %1597 = vmatprep.subr.mxu0 0.0
  %1598 = vmatpush1.xpose.msra.mxu0 0.0
  %1599 = vmatprep.subr.mxu0 0.0
  %1600 = vmatpush1.xpose.msra.mxu0 0.0
  %1601 = vmatprep.subr.mxu0 0.0
  %1602 = vmatpush1.xpose.msra.mxu0 0.0
  %1603 = vmatprep.mubr.f32.mxu0 0.0
  %1604 = vmatmul.mubr.f32.gmra.mrb[0].mxu0 %v1510
  %v1605 = vpop.f32.mrb[0].mxu0
  %v1606 = vadd.f32 %v195, %v1605
  %v1607 = vpop.f32.mrb[0].mxu0
  %1608 = vmatprep.mubr.f32.mxu0 0.0
  %1609 = vmatmul.mubr.f32.gmra.mrb[0].mxu0 %v1513
  %v1610 = vpop.f32.mrb[0].mxu0
  %v1611 = vadd.f32 %v196, %v1610
  %v1612 = vpop.f32.mrb[0].mxu0
  %1613 = vmatprep.mubr.f32.mxu0 0.0
  %1614 = vmatmul.mubr.f32.gmra.mrb[0].mxu0 %v1516
  %v1615 = vpop.f32.mrb[0].mxu0
  %v1616 = vadd.f32 %v197, %v1615
  %v1617 = vpop.f32.mrb[0].mxu0
  %1618 = vmatprep.mubr.f32.mxu0 0.0
  %1619 = vmatmul.mubr.f32.gmra.mrb[0].mxu0 %v1519
  %v1620 = vpop.f32.mrb[0].mxu0
  %v1621 = vadd.f32 %v198, %v1620
  %v1622 = vpop.f32.mrb[0].mxu0
  %1623 = vmatprep.mubr.f32.mxu0 0.0
  %1624 = vmatmul.mubr.f32.gmra.mrb[0].mxu0 %v1522
  %v1625 = vpop.f32.mrb[0].mxu0
  %v1626 = vadd.f32 %v199, %v1625
  %v1627 = vpop.f32.mrb[0].mxu0
  %1628 = vmatprep.mubr.f32.mxu0 0.0
  %1629 = vmatmul.mubr.f32.gmra.mrb[0].mxu0 %v1525
  %v1630 = vpop.f32.mrb[0].mxu0
  %v1631 = vadd.f32 %v200, %v1630
  %v1632 = vpop.f32.mrb[0].mxu0
  %1633 = vmatprep.mubr.f32.mxu0 0.0
  %1634 = vmatmul.mubr.f32.gmra.mrb[0].mxu0 %v1528
  %v1635 = vpop.f32.mrb[0].mxu0
  %v1636 = vadd.f32 %v201, %v1635
  %v1637 = vpop.f32.mrb[0].mxu0
  %1638 = vmatprep.mubr.f32.mxu0 0.0
  %1639 = vmatmul.mubr.f32.gmra.mrb[0].mxu0 %v1531
  %v1640 = vpop.f32.mrb[0].mxu0
  %v1641 = vadd.f32 %v202, %v1640
  %v1642 = vpop.f32.mrb[0].mxu0
  %1643 = vdwg.mxu0
  %v1644 = vsel %vm629, %v1606, -inf
  %1645 = vmax.xlane.f32.xlu0 %v1644
  %v1646 = vpop.xlane.xlu0 %1645
  %v1647 = vsel %vm629, %v1611, -inf
  %1648 = vmax.xlane.f32.xlu0 %v1647
  %v1649 = vpop.xlane.xlu0 %1648
  %v1650 = vsel %vm629, %v1616, -inf
  %1651 = vmax.xlane.f32.xlu0 %v1650
  %v1652 = vpop.xlane.xlu0 %1651
  %v1653 = vsel %vm629, %v1621, -inf
  %1654 = vmax.xlane.f32.xlu0 %v1653
  %v1655 = vpop.xlane.xlu0 %1654
  %v1656 = vsel %vm629, %v1626, -inf
  %1657 = vmax.xlane.f32.xlu0 %v1656
  %v1658 = vpop.xlane.xlu0 %1657
  %v1659 = vsel %vm629, %v1631, -inf
  %1660 = vmax.xlane.f32.xlu0 %v1659
  %v1661 = vpop.xlane.xlu0 %1660
  %v1662 = vsel %vm629, %v1636, -inf
  %1663 = vmax.xlane.f32.xlu0 %v1662
  %v1664 = vpop.xlane.xlu0 %1663
  %v1665 = vsel %vm629, %v1641, -inf
  %1666 = vmax.xlane.f32.xlu0 %v1665
  %v1667 = vpop.xlane.xlu0 %1666
  %v1668 = vsub.f32 %v1606, %v1646
  %v1669 = vsub.f32 %v1611, %v1649
  %v1670 = vsub.f32 %v1616, %v1652
  %v1671 = vsub.f32 %v1621, %v1655
  %v1672 = vsub.f32 %v1626, %v1658
  %v1673 = vsub.f32 %v1631, %v1661
  %v1674 = vsub.f32 %v1636, %v1664
  %v1675 = vsub.f32 %v1641, %v1667
  %v1676 = vmul.f32 %v1668, 1.442695
  %v1677 = vpow.pop %v1676
  %v1678 = vmul.f32 %v1669, 1.442695
  %v1679 = vpow.pop %v1678
  %v1680 = vmul.f32 %v1670, 1.442695
  %v1681 = vpow.pop %v1680
  %v1682 = vmul.f32 %v1671, 1.442695
  %v1683 = vpow.pop %v1682
  %v1684 = vmul.f32 %v1672, 1.442695
  %v1685 = vpow.pop %v1684
  %v1686 = vmul.f32 %v1673, 1.442695
  %v1687 = vpow.pop %v1686
  %v1688 = vmul.f32 %v1674, 1.442695
  %v1689 = vpow.pop %v1688
  %v1690 = vmul.f32 %v1675, 1.442695
  %v1691 = vpow.pop %v1690
  %v1692 = vsel %vm629, %v1677, 0.0
  %1693 = vadd.xlane.f32.xlu0 %v1692
  %v1694 = vpop.xlane.xlu0 %1693
  %v1695 = vsel %vm629, %v1679, 0.0
  %1696 = vadd.xlane.f32.xlu0 %v1695
  %v1697 = vpop.xlane.xlu0 %1696
  %v1698 = vsel %vm629, %v1681, 0.0
  %1699 = vadd.xlane.f32.xlu0 %v1698
  %v1700 = vpop.xlane.xlu0 %1699
  %v1701 = vsel %vm629, %v1683, 0.0
  %1702 = vadd.xlane.f32.xlu0 %v1701
  %v1703 = vpop.xlane.xlu0 %1702
  %v1704 = vsel %vm629, %v1685, 0.0
  %1705 = vadd.xlane.f32.xlu0 %v1704
  %v1706 = vpop.xlane.xlu0 %1705
  %v1707 = vsel %vm629, %v1687, 0.0
  %1708 = vadd.xlane.f32.xlu0 %v1707
  %v1709 = vpop.xlane.xlu0 %1708
  %v1710 = vsel %vm629, %v1689, 0.0
  %1711 = vadd.xlane.f32.xlu0 %v1710
  %v1712 = vpop.xlane.xlu0 %1711
  %v1713 = vsel %vm629, %v1691, 0.0
  %1714 = vadd.xlane.f32.xlu0 %v1713
  %v1715 = vpop.xlane.xlu0 %1714
  %v1716 = vrcp.pop %v1694
  %v1717 = vrcp.pop %v1697
  %v1718 = vrcp.pop %v1700
  %v1719 = vrcp.pop %v1703
  %v1720 = vrcp.pop %v1706
  %v1721 = vrcp.pop %v1709
  %v1722 = vrcp.pop %v1712
  %v1723 = vrcp.pop %v1715
  %v1724 = vmul.f32 %v1677, %v1716
  %v1725 = vmul.f32 %v1679, %v1717
  %v1726 = vmul.f32 %v1681, %v1718
  %v1727 = vmul.f32 %v1683, %v1719
  %v1728 = vmul.f32 %v1685, %v1720
  %v1729 = vmul.f32 %v1687, %v1721
  %v1730 = vmul.f32 %v1689, %v1722
  %v1731 = vmul.f32 %v1691, %v1723
  %v1733 = vsel %vm629, %v1724, 0
  %v1736 = vsel %vm629, %v1725, 0
  %v1739 = vsel %vm629, %v1726, 0
  %v1742 = vsel %vm629, %v1727, 0
  %v1745 = vsel %vm629, %v1728, 0
  %v1748 = vsel %vm629, %v1729, 0
  %v1751 = vsel %vm629, %v1730, 0
  %v1754 = vsel %vm629, %v1731, 0
  %1756 = vmatprep.subr.mxu0 0.0
  %1757 = vmatpush1.msra.mxu0 %v1493
  %1758 = vmatprep.subr.mxu0 0.0
  %1759 = vmatpush1.msra.mxu0 %v1498
  %1760 = vmatprep.subr.mxu0 0.0
  %1761 = vmatpush1.msra.mxu0 %v1493
  %1762 = vmatprep.subr.mxu0 0.0
  %1763 = vmatpush1.msra.mxu0 %v1498
  %1764 = vmatprep.subr.mxu0 0.0
  %1765 = vmatpush1.msra.mxu0 %v1493
  %1766 = vmatprep.subr.mxu0 0.0
  %1767 = vmatpush1.msra.mxu0 %v1498
  %1768 = vmatprep.subr.mxu0 0.0
  %1769 = vmatpush1.msra.mxu0 %v1493
  %1770 = vmatprep.subr.mxu0 0.0
  %1771 = vmatpush1.msra.mxu0 %v1498
  %1772 = vmatprep.subr.mxu0 0.0
  %1773 = vmatpush1.msra.mxu0 0.0
  %1774 = vmatprep.subr.mxu0 0.0
  %1775 = vmatpush1.msra.mxu0 0.0
  %1776 = vmatprep.subr.mxu0 0.0
  %1777 = vmatpush1.msra.mxu0 0.0
  %1778 = vmatprep.subr.mxu0 0.0
  %1779 = vmatpush1.msra.mxu0 0.0
  %1780 = vmatprep.subr.mxu0 0.0
  %1781 = vmatpush1.msra.mxu0 0.0
  %1782 = vmatprep.subr.mxu0 0.0
  %1783 = vmatpush1.msra.mxu0 0.0
  %1784 = vmatprep.subr.mxu0 0.0
  %1785 = vmatpush1.msra.mxu0 0.0
  %1786 = vmatprep.subr.mxu0 0.0
  %1787 = vmatpush1.msra.mxu0 0.0
  %1788 = vmatprep.subr.mxu0 0.0
  %1789 = vmatpush1.msra.mxu0 0.0
  %1790 = vmatprep.subr.mxu0 0.0
  %1791 = vmatpush1.msra.mxu0 0.0
  %1792 = vmatprep.subr.mxu0 0.0
  %1793 = vmatpush1.msra.mxu0 0.0
  %1794 = vmatprep.subr.mxu0 0.0
  %1795 = vmatpush1.msra.mxu0 0.0
  %1796 = vmatprep.subr.mxu0 0.0
  %1797 = vmatpush1.msra.mxu0 0.0
  %1798 = vmatprep.subr.mxu0 0.0
  %1799 = vmatpush1.msra.mxu0 0.0
  %1800 = vmatprep.subr.mxu0 0.0
  %1801 = vmatpush1.msra.mxu0 0.0
  %1802 = vmatprep.subr.mxu0 0.0
  %1803 = vmatpush1.msra.mxu0 0.0
  %1804 = vmatprep.subr.mxu0 0.0
  %1805 = vmatpush1.msra.mxu0 0.0
  %1806 = vmatprep.subr.mxu0 0.0
  %1807 = vmatpush1.msra.mxu0 0.0
  %1808 = vmatprep.subr.mxu0 0.0
  %1809 = vmatpush1.msra.mxu0 0.0
  %1810 = vmatprep.subr.mxu0 0.0
  %1811 = vmatpush1.msra.mxu0 0.0
  %1812 = vmatprep.subr.mxu0 0.0
  %1813 = vmatpush1.msra.mxu0 0.0
  %1814 = vmatprep.subr.mxu0 0.0
  %1815 = vmatpush1.msra.mxu0 0.0
  %1816 = vmatprep.subr.mxu0 0.0
  %1817 = vmatpush1.msra.mxu0 0.0
  %1818 = vmatprep.subr.mxu0 0.0
  %1819 = vmatpush1.msra.mxu0 0.0
  %1820 = vmatprep.mubr.f32.mxu0 0.0
  %1821 = vmatmul.mubr.f32.gmra.mrb[0].mxu0 %v1733
  %v1822 = vpop.f32.mrb[0].mxu0
  %v1823 = vadd.f32 0.0, %v1822
  %v1824 = vpop.f32.mrb[0].mxu0
  %1825 = vmatprep.mubr.f32.mxu0 0.0
  %1826 = vmatmul.mubr.f32.gmra.mrb[0].mxu0 %v1736
  %v1827 = vpop.f32.mrb[0].mxu0
  %v1828 = vadd.f32 0.0, %v1827
  %v1829 = vpop.f32.mrb[0].mxu0
  %1830 = vmatprep.mubr.f32.mxu0 0.0
  %1831 = vmatmul.mubr.f32.gmra.mrb[0].mxu0 %v1739
  %v1832 = vpop.f32.mrb[0].mxu0
  %v1833 = vadd.f32 0.0, %v1832
  %v1834 = vpop.f32.mrb[0].mxu0
  %1835 = vmatprep.mubr.f32.mxu0 0.0
  %1836 = vmatmul.mubr.f32.gmra.mrb[0].mxu0 %v1742
  %v1837 = vpop.f32.mrb[0].mxu0
  %v1838 = vadd.f32 0.0, %v1837
  %v1839 = vpop.f32.mrb[0].mxu0
  %1840 = vmatprep.mubr.f32.mxu0 0.0
  %1841 = vmatmul.mubr.f32.gmra.mrb[0].mxu0 %v1745
  %v1842 = vpop.f32.mrb[0].mxu0
  %v1843 = vadd.f32 0.0, %v1842
  %v1844 = vpop.f32.mrb[0].mxu0
  %1845 = vmatprep.mubr.f32.mxu0 0.0
  %1846 = vmatmul.mubr.f32.gmra.mrb[0].mxu0 %v1748
  %v1847 = vpop.f32.mrb[0].mxu0
  %v1848 = vadd.f32 0.0, %v1847
  %v1849 = vpop.f32.mrb[0].mxu0
  %1850 = vmatprep.mubr.f32.mxu0 0.0
  %1851 = vmatmul.mubr.f32.gmra.mrb[0].mxu0 %v1751
  %v1852 = vpop.f32.mrb[0].mxu0
  %v1853 = vadd.f32 0.0, %v1852
  %v1854 = vpop.f32.mrb[0].mxu0
  %1855 = vmatprep.mubr.f32.mxu0 0.0
  %1856 = vmatmul.mubr.f32.gmra.mrb[0].mxu0 %v1754
  %v1857 = vpop.f32.mrb[0].mxu0
  %v1858 = vadd.f32 0.0, %v1857
  %v1859 = vpop.f32.mrb[0].mxu0
  %1860 = vdwg.mxu0
  %v1861 = vmul.f32 %v1823, %v473
  %v1862 = vmul.f32 %v1828, %v473
  %v1863 = vmul.f32 %v1833, %v479
  %v1864 = vmul.f32 %v1838, %v479
  %v1865 = vadd.f32 %v1861, %v1863
  %v1866 = vadd.f32 %v1862, %v1864
  %v1867 = vmul.f32 %v1843, %v485
  %v1868 = vmul.f32 %v1848, %v485
  %v1869 = vadd.f32 %v1865, %v1867
  %v1870 = vadd.f32 %v1866, %v1868
  %v1871 = vmul.f32 %v1853, %v491
  %v1872 = vmul.f32 %v1858, %v491
  %v1873 = vadd.f32 %v1869, %v1871
  %v1874 = vadd.f32 %v1870, %v1872
  %s1875 = scalar_lea.vmem %s6, 32
  %v1876 = vld [vmem:[%s1875] sm:$0xff]
  %v1877 = vld [vmem:[%s1875 + $0x8] sm:$0xff]
  %v1878 = vld [vmem:[%s1875 + $0x10] sm:$0xff]
  %v1879 = vld [vmem:[%s1875 + $0x18] sm:$0xff]
  %v1880 = vlaneseq
  %v1881 = vshrl.u32 %v1880, 7
  %v1882 = vsub.s32 0, %v1881
  %v1883 = vrot.slane %v1236, %v1882
  %v1885 = vsel %vm155, %v1873, 0
  %v1888 = vsel %vm155, %v1874, 0
  %1890 = vmatprep.subr.mxu0 0.0
  %1891 = vmatpush1.msra.mxu0 %v1876
  %1892 = vmatprep.subr.mxu0 0.0
  %1893 = vmatpush1.msra.mxu0 %v1877
  %1894 = vmatprep.subr.mxu0 0.0
  %1895 = vmatpush1.msra.mxu0 %v1878
  %1896 = vmatprep.subr.mxu0 0.0
  %1897 = vmatpush1.msra.mxu0 %v1879
  %1898 = vmatprep.subr.mxu0 0.0
  %1899 = vmatpush1.msra.mxu0 0.0
  %1900 = vmatprep.subr.mxu0 0.0
  %1901 = vmatpush1.msra.mxu0 0.0
  %1902 = vmatprep.subr.mxu0 0.0
  %1903 = vmatpush1.msra.mxu0 0.0
  %1904 = vmatprep.subr.mxu0 0.0
  %1905 = vmatpush1.msra.mxu0 0.0
  %1906 = vmatprep.subr.mxu0 0.0
  %1907 = vmatpush1.msra.mxu0 0.0
  %1908 = vmatprep.subr.mxu0 0.0
  %1909 = vmatpush1.msra.mxu0 0.0
  %1910 = vmatprep.subr.mxu0 0.0
  %1911 = vmatpush1.msra.mxu0 0.0
  %1912 = vmatprep.subr.mxu0 0.0
  %1913 = vmatpush1.msra.mxu0 0.0
  %1914 = vmatprep.subr.mxu0 0.0
  %1915 = vmatpush1.msra.mxu0 0.0
  %1916 = vmatprep.subr.mxu0 0.0
  %1917 = vmatpush1.msra.mxu0 0.0
  %1918 = vmatprep.subr.mxu0 0.0
  %1919 = vmatpush1.msra.mxu0 0.0
  %1920 = vmatprep.subr.mxu0 0.0
  %1921 = vmatpush1.msra.mxu0 0.0
  %1922 = vmatprep.subr.mxu0 0.0
  %1923 = vmatpush1.msra.mxu0 0.0
  %1924 = vmatprep.subr.mxu0 0.0
  %1925 = vmatpush1.msra.mxu0 0.0
  %1926 = vmatprep.subr.mxu0 0.0
  %1927 = vmatpush1.msra.mxu0 0.0
  %1928 = vmatprep.subr.mxu0 0.0
  %1929 = vmatpush1.msra.mxu0 0.0
  %1930 = vmatprep.subr.mxu0 0.0
  %1931 = vmatpush1.msra.mxu0 0.0
  %1932 = vmatprep.subr.mxu0 0.0
  %1933 = vmatpush1.msra.mxu0 0.0
  %1934 = vmatprep.subr.mxu0 0.0
  %1935 = vmatpush1.msra.mxu0 0.0
  %1936 = vmatprep.subr.mxu0 0.0
  %1937 = vmatpush1.msra.mxu0 0.0
  %1938 = vmatprep.subr.mxu0 0.0
  %1939 = vmatpush1.msra.mxu0 0.0
  %1940 = vmatprep.subr.mxu0 0.0
  %1941 = vmatpush1.msra.mxu0 0.0
  %1942 = vmatprep.subr.mxu0 0.0
  %1943 = vmatpush1.msra.mxu0 0.0
  %1944 = vmatprep.subr.mxu0 0.0
  %1945 = vmatpush1.msra.mxu0 0.0
  %1946 = vmatprep.subr.mxu0 0.0
  %1947 = vmatpush1.msra.mxu0 0.0
  %1948 = vmatprep.subr.mxu0 0.0
  %1949 = vmatpush1.msra.mxu0 0.0
  %1950 = vmatprep.subr.mxu0 0.0
  %1951 = vmatpush1.msra.mxu0 0.0
  %1952 = vmatprep.subr.mxu0 0.0
  %1953 = vmatpush1.msra.mxu0 0.0
  %1954 = vmatprep.mubr.f32.mxu0 0.0
  %1955 = vmatmul.mubr.f32.gmra.mrb[0].mxu0 %v1885
  %v1956 = vpop.f32.mrb[0].mxu0
  %v1957 = vadd.f32 %v1883, %v1956
  %v1958 = vpop.f32.mrb[0].mxu0
  %1959 = vmatprep.mubr.f32.mxu0 0.0
  %1960 = vmatmul.mubr.f32.gmra.mrb[0].mxu0 %v1888
  %v1961 = vpop.f32.mrb[0].mxu0
  %v1962 = vadd.f32 %v1883, %v1961
  %v1963 = vpop.f32.mrb[0].mxu0
  %1964 = vdwg.mxu0
  %v1965 = vadd.f32 %v1230, %v1957
  %v1966 = vadd.f32 %v1231, %v1962
  %v1967 = vsel %vm155, %v1965, 0.0
  %1968 = vadd.xlane.f32.xlu0 %v1967
  %v1969 = vpop.xlane.xlu0 %1968
  %v1970 = vsel %vm155, %v1966, 0.0
  %1971 = vadd.xlane.f32.xlu0 %v1970
  %v1972 = vpop.xlane.xlu0 %1971
  %v1973 = vmul.f32 %v1969, %v162
  %v1974 = vmul.f32 %v1972, %v162
  %v1975 = vsub.f32 %v1965, %v1973
  %v1976 = vsub.f32 %v1966, %v1974
  %v1977 = vmul.f32 %v1975, %v1975
  %v1978 = vmul.f32 %v1976, %v1976
  %v1979 = vsel %vm155, %v1977, 0.0
  %1980 = vadd.xlane.f32.xlu0 %v1979
  %v1981 = vpop.xlane.xlu0 %1980
  %v1982 = vsel %vm155, %v1978, 0.0
  %1983 = vadd.xlane.f32.xlu0 %v1982
  %v1984 = vpop.xlane.xlu0 %1983
  %v1985 = vmul.f32 %v1981, %v162
  %v1986 = vmul.f32 %v1984, %v162
  %v1987 = vadd.f32 %v1985, 1e-12
  %v1988 = vadd.f32 %v1986, 1e-12
  %v1989 = vrsqrt.pop %v1987
  %v1990 = vrsqrt.pop %v1988
  %v1991 = vmul.f32 %v1975, %v1989
  %v1992 = vmul.f32 %v1976, %v1990
  %v1993 = vlaneseq
  %v1994 = vshrl.u32 %v1993, 7
  %v1995 = vsub.s32 0, %v1994
  %v1996 = vrot.slane %v1237, %v1995
  %v1997 = vmul.f32 %v1991, %v1996
  %v1998 = vmul.f32 %v1992, %v1996
  %v1999 = vlaneseq
  %v2000 = vshrl.u32 %v1999, 7
  %v2001 = vsub.s32 0, %v2000
  %v2002 = vrot.slane %v1238, %v2001
  %v2003 = vadd.f32 %v1997, %v2002
  %v2004 = vadd.f32 %v1998, %v2002
  %s2005 = scalar_lea.vmem %s7, 32
  %v2006 = vld [vmem:[%s2005] sm:$0xff]
  %v2007 = vld [vmem:[%s2005 + $0x8] sm:$0xff]
  %v2008 = vld [vmem:[%s2005 + $0x10] sm:$0xff]
  %v2009 = vld [vmem:[%s2005 + $0x18] sm:$0xff]
  %v2010 = vlaneseq
  %v2011 = vshrl.u32 %v2010, 7
  %v2012 = vsub.s32 0, %v2011
  %v2013 = vrot.slane %v1239, %v2012
  %v2015 = vsel %vm155, %v2003, 0
  %v2018 = vsel %vm155, %v2004, 0
  %2020 = vmatprep.subr.mxu0 0.0
  %2021 = vmatpush1.msra.mxu0 %v2006
  %2022 = vmatprep.subr.mxu0 0.0
  %2023 = vmatpush1.msra.mxu0 %v2007
  %2024 = vmatprep.subr.mxu0 0.0
  %2025 = vmatpush1.msra.mxu0 %v2008
  %2026 = vmatprep.subr.mxu0 0.0
  %2027 = vmatpush1.msra.mxu0 %v2009
  %2028 = vmatprep.subr.mxu0 0.0
  %2029 = vmatpush1.msra.mxu0 0.0
  %2030 = vmatprep.subr.mxu0 0.0
  %2031 = vmatpush1.msra.mxu0 0.0
  %2032 = vmatprep.subr.mxu0 0.0
  %2033 = vmatpush1.msra.mxu0 0.0
  %2034 = vmatprep.subr.mxu0 0.0
  %2035 = vmatpush1.msra.mxu0 0.0
  %2036 = vmatprep.subr.mxu0 0.0
  %2037 = vmatpush1.msra.mxu0 0.0
  %2038 = vmatprep.subr.mxu0 0.0
  %2039 = vmatpush1.msra.mxu0 0.0
  %2040 = vmatprep.subr.mxu0 0.0
  %2041 = vmatpush1.msra.mxu0 0.0
  %2042 = vmatprep.subr.mxu0 0.0
  %2043 = vmatpush1.msra.mxu0 0.0
  %2044 = vmatprep.subr.mxu0 0.0
  %2045 = vmatpush1.msra.mxu0 0.0
  %2046 = vmatprep.subr.mxu0 0.0
  %2047 = vmatpush1.msra.mxu0 0.0
  %2048 = vmatprep.subr.mxu0 0.0
  %2049 = vmatpush1.msra.mxu0 0.0
  %2050 = vmatprep.subr.mxu0 0.0
  %2051 = vmatpush1.msra.mxu0 0.0
  %2052 = vmatprep.subr.mxu0 0.0
  %2053 = vmatpush1.msra.mxu0 0.0
  %2054 = vmatprep.subr.mxu0 0.0
  %2055 = vmatpush1.msra.mxu0 0.0
  %2056 = vmatprep.subr.mxu0 0.0
  %2057 = vmatpush1.msra.mxu0 0.0
  %2058 = vmatprep.subr.mxu0 0.0
  %2059 = vmatpush1.msra.mxu0 0.0
  %2060 = vmatprep.subr.mxu0 0.0
  %2061 = vmatpush1.msra.mxu0 0.0
  %2062 = vmatprep.subr.mxu0 0.0
  %2063 = vmatpush1.msra.mxu0 0.0
  %2064 = vmatprep.subr.mxu0 0.0
  %2065 = vmatpush1.msra.mxu0 0.0
  %2066 = vmatprep.subr.mxu0 0.0
  %2067 = vmatpush1.msra.mxu0 0.0
  %2068 = vmatprep.subr.mxu0 0.0
  %2069 = vmatpush1.msra.mxu0 0.0
  %2070 = vmatprep.subr.mxu0 0.0
  %2071 = vmatpush1.msra.mxu0 0.0
  %2072 = vmatprep.subr.mxu0 0.0
  %2073 = vmatpush1.msra.mxu0 0.0
  %2074 = vmatprep.subr.mxu0 0.0
  %2075 = vmatpush1.msra.mxu0 0.0
  %2076 = vmatprep.subr.mxu0 0.0
  %2077 = vmatpush1.msra.mxu0 0.0
  %2078 = vmatprep.subr.mxu0 0.0
  %2079 = vmatpush1.msra.mxu0 0.0
  %2080 = vmatprep.subr.mxu0 0.0
  %2081 = vmatpush1.msra.mxu0 0.0
  %2082 = vmatprep.subr.mxu0 0.0
  %2083 = vmatpush1.msra.mxu0 0.0
  %2084 = vmatprep.mubr.f32.mxu0 0.0
  %2085 = vmatmul.mubr.f32.gmra.mrb[0].mxu0 %v2015
  %v2086 = vpop.f32.mrb[0].mxu0
  %v2087 = vadd.f32 %v2013, %v2086
  %v2088 = vpop.f32.mrb[0].mxu0
  %2089 = vmatprep.mubr.f32.mxu0 0.0
  %2090 = vmatmul.mubr.f32.gmra.mrb[0].mxu0 %v2018
  %v2091 = vpop.f32.mrb[0].mxu0
  %v2092 = vadd.f32 %v2013, %v2091
  %v2093 = vpop.f32.mrb[0].mxu0
  %2094 = vdwg.mxu0
  %v2095 = vmul.f32 %v2087, %v2087
  %v2096 = vmul.f32 %v2092, %v2092
  %v2097 = vmul.f32 %v2087, %v2095
  %v2098 = vmul.f32 %v2092, %v2096
  %v2099 = vmul.f32 %v2097, 0.044715
  %v2100 = vmul.f32 %v2098, 0.044715
  %v2101 = vadd.f32 %v2087, %v2099
  %v2102 = vadd.f32 %v2092, %v2100
  %v2103 = vmul.f32 %v2101, 0.7978846
  %v2104 = vmul.f32 %v2102, 0.7978846
  %v2105 = vtanh.pop %v2103
  %v2106 = vtanh.pop %v2104
  %v2107 = vadd.f32 %v2105, 1.0
  %v2108 = vadd.f32 %v2106, 1.0
  %v2109 = vmul.f32 %v2107, 0.5
  %v2110 = vmul.f32 %v2108, 0.5
  %v2111 = vmul.f32 %v2087, %v2109
  %v2112 = vmul.f32 %v2092, %v2110
  %s2113 = scalar_lea.vmem %s8, 128
  %v2114 = vld [vmem:[%s2113] sm:$0xff]
  %v2115 = vld [vmem:[%s2113 + $0x8] sm:$0xff]
  %v2116 = vld [vmem:[%s2113 + $0x10] sm:$0xff]
  %v2117 = vld [vmem:[%s2113 + $0x18] sm:$0xff]
  %v2118 = vld [vmem:[%s2113 + $0x20] sm:$0xff]
  %v2119 = vld [vmem:[%s2113 + $0x28] sm:$0xff]
  %v2120 = vld [vmem:[%s2113 + $0x30] sm:$0xff]
  %v2121 = vld [vmem:[%s2113 + $0x38] sm:$0xff]
  %v2122 = vld [vmem:[%s2113 + $0x40] sm:$0xff]
  %v2123 = vld [vmem:[%s2113 + $0x48] sm:$0xff]
  %v2124 = vld [vmem:[%s2113 + $0x50] sm:$0xff]
  %v2125 = vld [vmem:[%s2113 + $0x58] sm:$0xff]
  %v2126 = vld [vmem:[%s2113 + $0x60] sm:$0xff]
  %v2127 = vld [vmem:[%s2113 + $0x68] sm:$0xff]
  %v2128 = vld [vmem:[%s2113 + $0x70] sm:$0xff]
  %v2129 = vld [vmem:[%s2113 + $0x78] sm:$0xff]
  %v2130 = vlaneseq
  %v2131 = vshrl.u32 %v2130, 7
  %v2132 = vsub.s32 0, %v2131
  %v2133 = vrot.slane %v1240, %v2132
  %2134 = vmatprep.subr.mxu0 0.0
  %2135 = vmatpush1.msra.mxu0 %v2114
  %2136 = vmatprep.subr.mxu0 0.0
  %2137 = vmatpush1.msra.mxu0 %v2115
  %2138 = vmatprep.subr.mxu0 0.0
  %2139 = vmatpush1.msra.mxu0 %v2116
  %2140 = vmatprep.subr.mxu0 0.0
  %2141 = vmatpush1.msra.mxu0 %v2117
  %2142 = vmatprep.subr.mxu0 0.0
  %2143 = vmatpush1.msra.mxu0 %v2118
  %2144 = vmatprep.subr.mxu0 0.0
  %2145 = vmatpush1.msra.mxu0 %v2119
  %2146 = vmatprep.subr.mxu0 0.0
  %2147 = vmatpush1.msra.mxu0 %v2120
  %2148 = vmatprep.subr.mxu0 0.0
  %2149 = vmatpush1.msra.mxu0 %v2121
  %2150 = vmatprep.subr.mxu0 0.0
  %2151 = vmatpush1.msra.mxu0 %v2122
  %2152 = vmatprep.subr.mxu0 0.0
  %2153 = vmatpush1.msra.mxu0 %v2123
  %2154 = vmatprep.subr.mxu0 0.0
  %2155 = vmatpush1.msra.mxu0 %v2124
  %2156 = vmatprep.subr.mxu0 0.0
  %2157 = vmatpush1.msra.mxu0 %v2125
  %2158 = vmatprep.subr.mxu0 0.0
  %2159 = vmatpush1.msra.mxu0 %v2126
  %2160 = vmatprep.subr.mxu0 0.0
  %2161 = vmatpush1.msra.mxu0 %v2127
  %2162 = vmatprep.subr.mxu0 0.0
  %2163 = vmatpush1.msra.mxu0 %v2128
  %2164 = vmatprep.subr.mxu0 0.0
  %2165 = vmatpush1.msra.mxu0 %v2129
  %2166 = vmatprep.subr.mxu0 0.0
  %2167 = vmatpush1.msra.mxu0 0.0
  %2168 = vmatprep.subr.mxu0 0.0
  %2169 = vmatpush1.msra.mxu0 0.0
  %2170 = vmatprep.subr.mxu0 0.0
  %2171 = vmatpush1.msra.mxu0 0.0
  %2172 = vmatprep.subr.mxu0 0.0
  %2173 = vmatpush1.msra.mxu0 0.0
  %2174 = vmatprep.subr.mxu0 0.0
  %2175 = vmatpush1.msra.mxu0 0.0
  %2176 = vmatprep.subr.mxu0 0.0
  %2177 = vmatpush1.msra.mxu0 0.0
  %2178 = vmatprep.subr.mxu0 0.0
  %2179 = vmatpush1.msra.mxu0 0.0
  %2180 = vmatprep.subr.mxu0 0.0
  %2181 = vmatpush1.msra.mxu0 0.0
  %2182 = vmatprep.subr.mxu0 0.0
  %2183 = vmatpush1.msra.mxu0 0.0
  %2184 = vmatprep.subr.mxu0 0.0
  %2185 = vmatpush1.msra.mxu0 0.0
  %2186 = vmatprep.subr.mxu0 0.0
  %2187 = vmatpush1.msra.mxu0 0.0
  %2188 = vmatprep.subr.mxu0 0.0
  %2189 = vmatpush1.msra.mxu0 0.0
  %2190 = vmatprep.subr.mxu0 0.0
  %2191 = vmatpush1.msra.mxu0 0.0
  %2192 = vmatprep.subr.mxu0 0.0
  %2193 = vmatpush1.msra.mxu0 0.0
  %2194 = vmatprep.subr.mxu0 0.0
  %2195 = vmatpush1.msra.mxu0 0.0
  %2196 = vmatprep.subr.mxu0 0.0
  %2197 = vmatpush1.msra.mxu0 0.0
  %2198 = vmatprep.mubr.f32.mxu0 0.0
  %2199 = vmatmul.mubr.f32.gmra.mrb[0].mxu0 %v2111
  %v2200 = vpop.f32.mrb[0].mxu0
  %v2201 = vadd.f32 %v2133, %v2200
  %v2202 = vpop.f32.mrb[0].mxu0
  %2203 = vmatprep.mubr.f32.mxu0 0.0
  %2204 = vmatmul.mubr.f32.gmra.mrb[0].mxu0 %v2112
  %v2205 = vpop.f32.mrb[0].mxu0
  %v2206 = vadd.f32 %v2133, %v2205
  %v2207 = vpop.f32.mrb[0].mxu0
  %2208 = vdwg.mxu0
  %v2209 = vadd.f32 %v2003, %v2201
  %v2210 = vadd.f32 %v2004, %v2206
  %v2211 = vsel %vm155, %v2209, 0.0
  %2212 = vadd.xlane.f32.xlu0 %v2211
  %v2213 = vpop.xlane.xlu0 %2212
  %v2214 = vsel %vm155, %v2210, 0.0
  %2215 = vadd.xlane.f32.xlu0 %v2214
  %v2216 = vpop.xlane.xlu0 %2215
  %v2217 = vmul.f32 %v2213, %v162
  %v2218 = vmul.f32 %v2216, %v162
  %v2219 = vsub.f32 %v2209, %v2217
  %v2220 = vsub.f32 %v2210, %v2218
  %v2221 = vmul.f32 %v2219, %v2219
  %v2222 = vmul.f32 %v2220, %v2220
  %v2223 = vsel %vm155, %v2221, 0.0
  %2224 = vadd.xlane.f32.xlu0 %v2223
  %v2225 = vpop.xlane.xlu0 %2224
  %v2226 = vsel %vm155, %v2222, 0.0
  %2227 = vadd.xlane.f32.xlu0 %v2226
  %v2228 = vpop.xlane.xlu0 %2227
  %v2229 = vmul.f32 %v2225, %v162
  %v2230 = vmul.f32 %v2228, %v162
  %v2231 = vadd.f32 %v2229, 1e-12
  %v2232 = vadd.f32 %v2230, 1e-12
  %v2233 = vrsqrt.pop %v2231
  %v2234 = vrsqrt.pop %v2232
  %v2235 = vmul.f32 %v2219, %v2233
  %v2236 = vmul.f32 %v2220, %v2234
  %v2237 = vlaneseq
  %v2238 = vshrl.u32 %v2237, 7
  %v2239 = vsub.s32 0, %v2238
  %v2240 = vrot.slane %v1241, %v2239
  %v2241 = vmul.f32 %v2235, %v2240
  %v2242 = vmul.f32 %v2236, %v2240
  %v2243 = vlaneseq
  %v2244 = vshrl.u32 %v2243, 7
  %v2245 = vsub.s32 0, %v2244
  %v2246 = vrot.slane %v1242, %v2245
  %v2247 = vadd.f32 %v2241, %v2246
  %v2248 = vadd.f32 %v2242, %v2246
  %v2249 = vld [vmem:[%s10] sm:$0xff]
  %v2250 = vld [vmem:[%s10 + $0x8] sm:$0xff]
  %v2251 = vld [vmem:[%s10 + $0x10] sm:$0xff]
  %v2252 = vld [vmem:[%s10 + $0x18] sm:$0xff]
  %v2253 = vlaneseq
  %v2254 = vshrl.u32 %v2253, 7
  %v2255 = vsub.s32 0, %v2254
  %v2256 = vrot.slane %v43, %v2255
  %v2258 = vsel %vm155, %v2247, 0
  %v2261 = vsel %vm155, %v2248, 0
  %2263 = vmatprep.subr.mxu0 0.0
  %2264 = vmatpush1.msra.mxu0 %v2249
  %2265 = vmatprep.subr.mxu0 0.0
  %2266 = vmatpush1.msra.mxu0 %v2250
  %2267 = vmatprep.subr.mxu0 0.0
  %2268 = vmatpush1.msra.mxu0 %v2251
  %2269 = vmatprep.subr.mxu0 0.0
  %2270 = vmatpush1.msra.mxu0 %v2252
  %2271 = vmatprep.subr.mxu0 0.0
  %2272 = vmatpush1.msra.mxu0 0.0
  %2273 = vmatprep.subr.mxu0 0.0
  %2274 = vmatpush1.msra.mxu0 0.0
  %2275 = vmatprep.subr.mxu0 0.0
  %2276 = vmatpush1.msra.mxu0 0.0
  %2277 = vmatprep.subr.mxu0 0.0
  %2278 = vmatpush1.msra.mxu0 0.0
  %2279 = vmatprep.subr.mxu0 0.0
  %2280 = vmatpush1.msra.mxu0 0.0
  %2281 = vmatprep.subr.mxu0 0.0
  %2282 = vmatpush1.msra.mxu0 0.0
  %2283 = vmatprep.subr.mxu0 0.0
  %2284 = vmatpush1.msra.mxu0 0.0
  %2285 = vmatprep.subr.mxu0 0.0
  %2286 = vmatpush1.msra.mxu0 0.0
  %2287 = vmatprep.subr.mxu0 0.0
  %2288 = vmatpush1.msra.mxu0 0.0
  %2289 = vmatprep.subr.mxu0 0.0
  %2290 = vmatpush1.msra.mxu0 0.0
  %2291 = vmatprep.subr.mxu0 0.0
  %2292 = vmatpush1.msra.mxu0 0.0
  %2293 = vmatprep.subr.mxu0 0.0
  %2294 = vmatpush1.msra.mxu0 0.0
  %2295 = vmatprep.subr.mxu0 0.0
  %2296 = vmatpush1.msra.mxu0 0.0
  %2297 = vmatprep.subr.mxu0 0.0
  %2298 = vmatpush1.msra.mxu0 0.0
  %2299 = vmatprep.subr.mxu0 0.0
  %2300 = vmatpush1.msra.mxu0 0.0
  %2301 = vmatprep.subr.mxu0 0.0
  %2302 = vmatpush1.msra.mxu0 0.0
  %2303 = vmatprep.subr.mxu0 0.0
  %2304 = vmatpush1.msra.mxu0 0.0
  %2305 = vmatprep.subr.mxu0 0.0
  %2306 = vmatpush1.msra.mxu0 0.0
  %2307 = vmatprep.subr.mxu0 0.0
  %2308 = vmatpush1.msra.mxu0 0.0
  %2309 = vmatprep.subr.mxu0 0.0
  %2310 = vmatpush1.msra.mxu0 0.0
  %2311 = vmatprep.subr.mxu0 0.0
  %2312 = vmatpush1.msra.mxu0 0.0
  %2313 = vmatprep.subr.mxu0 0.0
  %2314 = vmatpush1.msra.mxu0 0.0
  %2315 = vmatprep.subr.mxu0 0.0
  %2316 = vmatpush1.msra.mxu0 0.0
  %2317 = vmatprep.subr.mxu0 0.0
  %2318 = vmatpush1.msra.mxu0 0.0
  %2319 = vmatprep.subr.mxu0 0.0
  %2320 = vmatpush1.msra.mxu0 0.0
  %2321 = vmatprep.subr.mxu0 0.0
  %2322 = vmatpush1.msra.mxu0 0.0
  %2323 = vmatprep.subr.mxu0 0.0
  %2324 = vmatpush1.msra.mxu0 0.0
  %2325 = vmatprep.subr.mxu0 0.0
  %2326 = vmatpush1.msra.mxu0 0.0
  %2327 = vmatprep.mubr.f32.mxu0 0.0
  %2328 = vmatmul.mubr.f32.gmra.mrb[0].mxu0 %v2258
  %v2329 = vpop.f32.mrb[0].mxu0
  %v2330 = vadd.f32 %v2256, %v2329
  %v2331 = vpop.f32.mrb[0].mxu0
  %2332 = vmatprep.mubr.f32.mxu0 0.0
  %2333 = vmatmul.mubr.f32.gmra.mrb[0].mxu0 %v2261
  %v2334 = vpop.f32.mrb[0].mxu0
  %v2335 = vadd.f32 %v2256, %v2334
  %v2336 = vpop.f32.mrb[0].mxu0
  %2337 = vdwg.mxu0
  %v2338 = vtanh.pop %v2330
  %v2339 = vtanh.pop %v2335
  %v2340 = vld [vmem:[%s11] sm:$0xff]
  %v2341 = vld [vmem:[%s11 + $0x8] sm:$0xff]
  %v2342 = vld [vmem:[%s11 + $0x10] sm:$0xff]
  %v2343 = vld [vmem:[%s11 + $0x18] sm:$0xff]
  %v2344 = vlaneseq
  %v2345 = vshrl.u32 %v2344, 7
  %v2346 = vsub.s32 0, %v2345
  %v2347 = vrot.slane %v44, %v2346
  %v2349 = vsel %vm155, %v2338, 0
  %v2352 = vsel %vm155, %v2339, 0
  %2354 = vmatprep.subr.mxu0 0.0
  %2355 = vmatpush1.msra.mxu0 %v2340
  %2356 = vmatprep.subr.mxu0 0.0
  %2357 = vmatpush1.msra.mxu0 %v2341
  %2358 = vmatprep.subr.mxu0 0.0
  %2359 = vmatpush1.msra.mxu0 %v2342
  %2360 = vmatprep.subr.mxu0 0.0
  %2361 = vmatpush1.msra.mxu0 %v2343
  %2362 = vmatprep.subr.mxu0 0.0
  %2363 = vmatpush1.msra.mxu0 0.0
  %2364 = vmatprep.subr.mxu0 0.0
  %2365 = vmatpush1.msra.mxu0 0.0
  %2366 = vmatprep.subr.mxu0 0.0
  %2367 = vmatpush1.msra.mxu0 0.0
  %2368 = vmatprep.subr.mxu0 0.0
  %2369 = vmatpush1.msra.mxu0 0.0
  %2370 = vmatprep.subr.mxu0 0.0
  %2371 = vmatpush1.msra.mxu0 0.0
  %2372 = vmatprep.subr.mxu0 0.0
  %2373 = vmatpush1.msra.mxu0 0.0
  %2374 = vmatprep.subr.mxu0 0.0
  %2375 = vmatpush1.msra.mxu0 0.0
  %2376 = vmatprep.subr.mxu0 0.0
  %2377 = vmatpush1.msra.mxu0 0.0
  %2378 = vmatprep.subr.mxu0 0.0
  %2379 = vmatpush1.msra.mxu0 0.0
  %2380 = vmatprep.subr.mxu0 0.0
  %2381 = vmatpush1.msra.mxu0 0.0
  %2382 = vmatprep.subr.mxu0 0.0
  %2383 = vmatpush1.msra.mxu0 0.0
  %2384 = vmatprep.subr.mxu0 0.0
  %2385 = vmatpush1.msra.mxu0 0.0
  %2386 = vmatprep.subr.mxu0 0.0
  %2387 = vmatpush1.msra.mxu0 0.0
  %2388 = vmatprep.subr.mxu0 0.0
  %2389 = vmatpush1.msra.mxu0 0.0
  %2390 = vmatprep.subr.mxu0 0.0
  %2391 = vmatpush1.msra.mxu0 0.0
  %2392 = vmatprep.subr.mxu0 0.0
  %2393 = vmatpush1.msra.mxu0 0.0
  %2394 = vmatprep.subr.mxu0 0.0
  %2395 = vmatpush1.msra.mxu0 0.0
  %2396 = vmatprep.subr.mxu0 0.0
  %2397 = vmatpush1.msra.mxu0 0.0
  %2398 = vmatprep.subr.mxu0 0.0
  %2399 = vmatpush1.msra.mxu0 0.0
  %2400 = vmatprep.subr.mxu0 0.0
  %2401 = vmatpush1.msra.mxu0 0.0
  %2402 = vmatprep.subr.mxu0 0.0
  %2403 = vmatpush1.msra.mxu0 0.0
  %2404 = vmatprep.subr.mxu0 0.0
  %2405 = vmatpush1.msra.mxu0 0.0
  %2406 = vmatprep.subr.mxu0 0.0
  %2407 = vmatpush1.msra.mxu0 0.0
  %2408 = vmatprep.subr.mxu0 0.0
  %2409 = vmatpush1.msra.mxu0 0.0
  %2410 = vmatprep.subr.mxu0 0.0
  %2411 = vmatpush1.msra.mxu0 0.0
  %2412 = vmatprep.subr.mxu0 0.0
  %2413 = vmatpush1.msra.mxu0 0.0
  %2414 = vmatprep.subr.mxu0 0.0
  %2415 = vmatpush1.msra.mxu0 0.0
  %2416 = vmatprep.subr.mxu0 0.0
  %2417 = vmatpush1.msra.mxu0 0.0
  %2418 = vmatprep.mubr.f32.mxu0 0.0
  %2419 = vmatmul.mubr.f32.gmra.mrb[0].mxu0 %v2349
  %v2420 = vpop.f32.mrb[0].mxu0
  %v2421 = vadd.f32 %v2347, %v2420
  %v2422 = vpop.f32.mrb[0].mxu0
  %2423 = vmatprep.mubr.f32.mxu0 0.0
  %2424 = vmatmul.mubr.f32.gmra.mrb[0].mxu0 %v2352
  %v2425 = vpop.f32.mrb[0].mxu0
  %v2426 = vadd.f32 %v2347, %v2425
  %v2427 = vpop.f32.mrb[0].mxu0
  %2428 = vdwg.mxu0
  %2429 = vst [vmem:[%s12] sm:$0xff] %v2421
  %2430 = vst [vmem:[%s12 + $0x8] sm:$0xff] %v2426
  // Predicated region
  $region50: #{bert_classifier_forward.1} parent=0 // pred_check
    _
  $region51: #{bert_classifier_forward.1} parent=0 // pred_check_branch
    %2432 = sbr.rel (0) target = $region53
  $region52: #{bert_classifier_forward.1} parent=0 // pred_region
    _
  $region53: #{bert_classifier_forward.1} parent=0 // pred_fallthru
    _
  // Predicated region
  $region54: #{bert_classifier_forward.1} parent=0 // pred_check
    _
  $region55: #{bert_classifier_forward.1} parent=0 // pred_check_branch
    %2434 = sbr.rel (0) target = $region57
  $region56: #{bert_classifier_forward.1} parent=0 // pred_region
    _
  $region57: #{bert_classifier_forward.1} parent=0 // pred_fallthru
    _

</llo_original>
